<compile_context>
chip_gen: v7x
topology: tpu7x:2x2x1
jax: 0.10.0
libtpu: 0.0.40
codegen_flags: <defaults>
</compile_context>

<pallas_src>
import functools

import jax
import jax.numpy as jnp
import numpy as np
from jax import lax
from jax.experimental import pallas as pl
from jax.experimental.pallas import tpu as pltpu

EPS = 1e-5   # BatchNorm2d default eps
LANE = 128


def _round_up(x, m):
    return (x + m - 1) // m * m


def _block_kernel(x_ref, w1_ref, b1_ref, w2_ref, b2_ref, o_ref, *, W, R1, R2):
    # x_ref block: (1, Rx, Cin)  -- flattened (row-major) spatial rows, channels on lanes
    x = x_ref[0]                                            # (Rx, Cin), f32
    Cmid = w1_ref.shape[2]
    Cp = w2_ref.shape[2]                                    # Cout padded to 128 lanes

    # --- conv1 (BN1 already folded into w1/b1): 9 dense channel-contraction matmuls ---
    acc1 = jnp.broadcast_to(b1_ref[...], (R1, Cmid))        # bias-initialised accumulator
    for dy in range(3):
        for dx in range(3):
            off = dy * W + dx                               # pure sublane shift
            acc1 = acc1 + jnp.dot(x[off:off + R1, :], w1_ref[dy * 3 + dx],
                                  preferred_element_type=jnp.float32)

    # dropout: identity at inference; ReLU
    y = jnp.maximum(acc1, 0.0)                              # (R1, Cmid)

    # --- conv2 (BN2 folded into w2/b2), output channels zero-padded to lane-dense Cp ---
    acc2 = jnp.broadcast_to(b2_ref[...], (R2, Cp))
    for dy in range(3):
        for dx in range(3):
            off = dy * W + dx
            acc2 = acc2 + jnp.dot(y[off:off + R2, :], w2_ref[dy * 3 + dx],
                                  preferred_element_type=jnp.float32)

    # dropout: identity at inference
    o_ref[0] = acc2.astype(o_ref.dtype)                     # unmasked, 128-lane stores


def block_forward(x_nchw, params):
    N, Cin, H, W = x_nchw.shape
    w1, b1, w2, b2 = params["w1"], params["b1"], params["w2"], params["b2"]
    Cmid, Cout = w1.shape[0], w2.shape[0]
    H1, W1 = H - 2, W - 2
    H2, W2 = H1 - 2, W1 - 2

    # ---- fold eval-mode BatchNorms into the conv weights / biases (exact) ----
    s1 = params["g1"] / jnp.sqrt(params["v1"] + EPS)
    t1 = params["bt1"] - params["m1"] * s1
    s2 = params["g2"] / jnp.sqrt(params["v2"] + EPS)
    t2 = params["bt2"] - params["m2"] * s2
    w1f = w1 * s1[None, :, None, None]
    b1f = b1 + jnp.einsum("oihw,i->o", w1, t1)
    w2f = w2 * s2[None, :, None, None]
    b2f = b2 + jnp.einsum("oihw,i->o", w2, t2)

    # ---- dense per-tap weights: (9, Cin, Cmid) and (9, Cmid, Cp) with Cp lane-dense ----
    w1_taps = jnp.transpose(w1f, (2, 3, 1, 0)).reshape(9, Cin, Cmid)
    w2_taps = jnp.transpose(w2f, (2, 3, 1, 0)).reshape(9, Cmid, Cout)
    Cp = _round_up(Cout, LANE)
    w2_taps = jnp.pad(w2_taps, ((0, 0), (0, 0), (0, Cp - Cout)))
    b1_row = b1f[None, :]                                   # (1, Cmid)
    b2_row = jnp.pad(b2f, (0, Cp - Cout))[None, :]          # (1, Cp)

    # ---- row-major flattened spatial layout, zero-padded so shifted slices fit ----
    R2 = _round_up(H2 * W, 8)            # conv2 output rows per image (sublane aligned)
    R1 = R2 + 2 * W + 2                  # conv1 rows needed by conv2's shifted slices
    Rx = _round_up(R1 + 2 * W + 2, 8)    # input rows per image (>= H*W always)
    x_rows = jnp.transpose(x_nchw, (0, 2, 3, 1)).reshape(N, H * W, Cin)
    x_rows = jnp.pad(x_rows, ((0, 0), (0, Rx - H * W), (0, 0)))

    kernel = functools.partial(_block_kernel, W=W, R1=R1, R2=R2)
    out = pl.pallas_call(
        kernel,
        out_shape=jax.ShapeDtypeStruct((N, R2, Cp), x_nchw.dtype),
        grid_spec=pltpu.PrefetchScalarGridSpec(
            num_scalar_prefetch=0,
            grid=(N,),
            in_specs=[
                pl.BlockSpec((1, Rx, Cin), lambda n: (n, 0, 0)),
                pl.BlockSpec((9, Cin, Cmid), lambda n: (0, 0, 0)),
                pl.BlockSpec((1, Cmid), lambda n: (0, 0)),
                pl.BlockSpec((9, Cmid, Cp), lambda n: (0, 0, 0)),
                pl.BlockSpec((1, Cp), lambda n: (0, 0)),
            ],
            out_specs=pl.BlockSpec((1, R2, Cp), lambda n: (n, 0, 0)),
        ),
        compiler_params=pltpu.CompilerParams(
            dimension_semantics=("parallel",)),
    )(x_rows, w1_taps, b1_row, w2_taps, b2_row)

    # strip row/column/channel padding: (N, R2, Cp) -> (N, Cout, H2, W2)
    out = out[:, :H2 * W, :Cout].reshape(N, H2, W, Cout)[:, :, :W2, :]
    return jnp.transpose(out, (0, 3, 1, 2))


def ref_forward(x, params):
    """Pure-JAX reference (eval-mode BN, dropout = identity), NCHW."""
    s1 = params["g1"] / jnp.sqrt(params["v1"] + EPS)
    t1 = params["bt1"] - params["m1"] * s1
    s2 = params["g2"] / jnp.sqrt(params["v2"] + EPS)
    t2 = params["bt2"] - params["m2"] * s2
    x = x * s1[None, :, None, None] + t1[None, :, None, None]
    x = lax.conv_general_dilated(x, params["w1"], (1, 1), "VALID",
                                 dimension_numbers=("NCHW", "OIHW", "NCHW"))
    x = x + params["b1"][None, :, None, None]
    x = jnp.maximum(x, 0.0)
    x = x * s2[None, :, None, None] + t2[None, :, None, None]
    x = lax.conv_general_dilated(x, params["w2"], (1, 1), "VALID",
                                 dimension_numbers=("NCHW", "OIHW", "NCHW"))
    x = x + params["b2"][None, :, None, None]
    return x


if __name__ == "__main__":
    N, Cin, Cout, H, W = 2, 4, 8, 16, 16

    key = jax.random.PRNGKey(0)
    ks = jax.random.split(key, 12)
    params = {
        # Conv2d(inChannels, outChannels, 3)
        "w1": 0.1 * jax.random.normal(ks[0], (Cout, Cin, 3, 3), jnp.float32),
        "b1": 0.1 * jax.random.normal(ks[1], (Cout,), jnp.float32),
        # Conv2d(outChannels, outChannels, 3)
        "w2": 0.1 * jax.random.normal(ks[2], (Cout, Cout, 3, 3), jnp.float32),
        "b2": 0.1 * jax.random.normal(ks[3], (Cout,), jnp.float32),
        # BatchNorm2d(inChannels): weight, bias, running_mean, running_var
        "g1": 1.0 + 0.1 * jax.random.normal(ks[4], (Cin,), jnp.float32),
        "bt1": 0.1 * jax.random.normal(ks[5], (Cin,), jnp.float32),
        "m1": 0.1 * jax.random.normal(ks[6], (Cin,), jnp.float32),
        "v1": jax.random.uniform(ks[7], (Cin,), jnp.float32, 0.5, 1.5),
        # BatchNorm2d(outChannels)
        "g2": 1.0 + 0.1 * jax.random.normal(ks[8], (Cout,), jnp.float32),
        "bt2": 0.1 * jax.random.normal(ks[9], (Cout,), jnp.float32),
        "m2": 0.1 * jax.random.normal(ks[10], (Cout,), jnp.float32),
        "v2": jax.random.uniform(ks[11], (Cout,), jnp.float32, 0.5, 1.5),
    }

    x = jax.random.normal(jax.random.PRNGKey(42), (N, Cin, H, W), jnp.float32)

    out = jax.block_until_ready(block_forward(x, params))
    ref = jax.block_until_ready(ref_forward(x, params))

    assert out.shape == (N, Cout, H - 4, W - 4), out.shape
    np.testing.assert_allclose(np.asarray(out), np.asarray(ref),
                               rtol=1e-4, atol=1e-4)
    print("KERNEL_OK")
</pallas_src>

<mosaic_0001>
module attributes {stable_mosaic.version = 11 : i64} {
  func.func @_block_kernel(%arg0: i32, %arg1: memref<1x264x4xf32, #tpu.memory_space<vmem>>, %arg2: memref<9x4x8xf32, #tpu.memory_space<vmem>>, %arg3: memref<1x8xf32, #tpu.memory_space<vmem>>, %arg4: memref<9x8x128xf32, #tpu.memory_space<vmem>>, %arg5: memref<1x128xf32, #tpu.memory_space<vmem>>, %arg6: memref<1x192x128xf32, #tpu.memory_space<vmem>>) attributes {dimension_semantics = [#tpu.dimension_semantics<parallel>], iteration_bounds = array<i64: 2>, scalar_prefetch = 0 : i64, scratch_operands = 0 : i64, tpu.core_type = #tpu.core_type<tc>, window_params = [{transform_indices = @transform_0, window_bounds = array<i64: 1, 264, 4>}, {pipeline_mode = #tpu.pipeline_mode<synchronous>, transform_indices = @transform_1, window_bounds = array<i64: 9, 4, 8>}, {pipeline_mode = #tpu.pipeline_mode<synchronous>, transform_indices = @transform_2, window_bounds = array<i64: 1, 8>}, {pipeline_mode = #tpu.pipeline_mode<synchronous>, transform_indices = @transform_3, window_bounds = array<i64: 9, 8, 128>}, {pipeline_mode = #tpu.pipeline_mode<synchronous>, transform_indices = @transform_4, window_bounds = array<i64: 1, 128>}, {transform_indices = @transform_5, window_bounds = array<i64: 1, 192, 128>}]} {
    %c0 = arith.constant 0 : index
    %c0_0 = arith.constant 0 : index
    %c0_1 = arith.constant 0 : index
    %0 = vector.load %arg1[%c0, %c0_0, %c0_1] : memref<1x264x4xf32, #tpu.memory_space<vmem>>, vector<1x264x4xf32>
    %1 = vector.shape_cast %0 : vector<1x264x4xf32> to vector<264x4xf32>
    %c0_2 = arith.constant 0 : index
    %c0_3 = arith.constant 0 : index
    %2 = vector.load %arg3[%c0_2, %c0_3] : memref<1x8xf32, #tpu.memory_space<vmem>>, vector<1x8xf32>
    %3 = vector.shape_cast %2 : vector<1x8xf32> to vector<1x8xf32>
    %4 = vector.broadcast %3 : vector<1x8xf32> to vector<226x8xf32>
    %5 = vector.extract_strided_slice %1 {offsets = [0, 0], sizes = [226, 4], strides = [1, 1]} : vector<264x4xf32> to vector<226x4xf32>
    %c0_4 = arith.constant 0 : index
    %c0_5 = arith.constant 0 : index
    %c0_6 = arith.constant 0 : index
    %6 = vector.load %arg2[%c0_4, %c0_5, %c0_6] : memref<9x4x8xf32, #tpu.memory_space<vmem>>, vector<1x4x8xf32>
    %7 = vector.shape_cast %6 : vector<1x4x8xf32> to vector<4x8xf32>
    %cst = arith.constant dense<0.000000e+00> : vector<226x8xf32>
    %8 = tpu.matmul %5, %7, %cst {dimension_numbers = #tpu.dot_dimension_numbers<[1], [0], [0], [1], [0, 0, 1, 1], [], []>} : vector<226x4xf32>, vector<4x8xf32>, vector<226x8xf32> -> vector<226x8xf32>
    %9 = arith.addf %4, %8 : vector<226x8xf32>
    %10 = vector.extract_strided_slice %1 {offsets = [1, 0], sizes = [226, 4], strides = [1, 1]} : vector<264x4xf32> to vector<226x4xf32>
    %c1 = arith.constant 1 : index
    %c0_7 = arith.constant 0 : index
    %c0_8 = arith.constant 0 : index
    %11 = vector.load %arg2[%c1, %c0_7, %c0_8] : memref<9x4x8xf32, #tpu.memory_space<vmem>>, vector<1x4x8xf32>
    %12 = vector.shape_cast %11 : vector<1x4x8xf32> to vector<4x8xf32>
    %cst_9 = arith.constant dense<0.000000e+00> : vector<226x8xf32>
    %13 = tpu.matmul %10, %12, %cst_9 {dimension_numbers = #tpu.dot_dimension_numbers<[1], [0], [0], [1], [0, 0, 1, 1], [], []>} : vector<226x4xf32>, vector<4x8xf32>, vector<226x8xf32> -> vector<226x8xf32>
    %14 = arith.addf %9, %13 : vector<226x8xf32>
    %15 = vector.extract_strided_slice %1 {offsets = [2, 0], sizes = [226, 4], strides = [1, 1]} : vector<264x4xf32> to vector<226x4xf32>
    %c2 = arith.constant 2 : index
    %c0_10 = arith.constant 0 : index
    %c0_11 = arith.constant 0 : index
    %16 = vector.load %arg2[%c2, %c0_10, %c0_11] : memref<9x4x8xf32, #tpu.memory_space<vmem>>, vector<1x4x8xf32>
    %17 = vector.shape_cast %16 : vector<1x4x8xf32> to vector<4x8xf32>
    %cst_12 = arith.constant dense<0.000000e+00> : vector<226x8xf32>
    %18 = tpu.matmul %15, %17, %cst_12 {dimension_numbers = #tpu.dot_dimension_numbers<[1], [0], [0], [1], [0, 0, 1, 1], [], []>} : vector<226x4xf32>, vector<4x8xf32>, vector<226x8xf32> -> vector<226x8xf32>
    %19 = arith.addf %14, %18 : vector<226x8xf32>
    %20 = vector.extract_strided_slice %1 {offsets = [16, 0], sizes = [226, 4], strides = [1, 1]} : vector<264x4xf32> to vector<226x4xf32>
    %c3 = arith.constant 3 : index
    %c0_13 = arith.constant 0 : index
    %c0_14 = arith.constant 0 : index
    %21 = vector.load %arg2[%c3, %c0_13, %c0_14] : memref<9x4x8xf32, #tpu.memory_space<vmem>>, vector<1x4x8xf32>
    %22 = vector.shape_cast %21 : vector<1x4x8xf32> to vector<4x8xf32>
    %cst_15 = arith.constant dense<0.000000e+00> : vector<226x8xf32>
    %23 = tpu.matmul %20, %22, %cst_15 {dimension_numbers = #tpu.dot_dimension_numbers<[1], [0], [0], [1], [0, 0, 1, 1], [], []>} : vector<226x4xf32>, vector<4x8xf32>, vector<226x8xf32> -> vector<226x8xf32>
    %24 = arith.addf %19, %23 : vector<226x8xf32>
    %25 = vector.extract_strided_slice %1 {offsets = [17, 0], sizes = [226, 4], strides = [1, 1]} : vector<264x4xf32> to vector<226x4xf32>
    %c4 = arith.constant 4 : index
    %c0_16 = arith.constant 0 : index
    %c0_17 = arith.constant 0 : index
    %26 = vector.load %arg2[%c4, %c0_16, %c0_17] : memref<9x4x8xf32, #tpu.memory_space<vmem>>, vector<1x4x8xf32>
    %27 = vector.shape_cast %26 : vector<1x4x8xf32> to vector<4x8xf32>
    %cst_18 = arith.constant dense<0.000000e+00> : vector<226x8xf32>
    %28 = tpu.matmul %25, %27, %cst_18 {dimension_numbers = #tpu.dot_dimension_numbers<[1], [0], [0], [1], [0, 0, 1, 1], [], []>} : vector<226x4xf32>, vector<4x8xf32>, vector<226x8xf32> -> vector<226x8xf32>
    %29 = arith.addf %24, %28 : vector<226x8xf32>
    %30 = vector.extract_strided_slice %1 {offsets = [18, 0], sizes = [226, 4], strides = [1, 1]} : vector<264x4xf32> to vector<226x4xf32>
    %c5 = arith.constant 5 : index
    %c0_19 = arith.constant 0 : index
    %c0_20 = arith.constant 0 : index
    %31 = vector.load %arg2[%c5, %c0_19, %c0_20] : memref<9x4x8xf32, #tpu.memory_space<vmem>>, vector<1x4x8xf32>
    %32 = vector.shape_cast %31 : vector<1x4x8xf32> to vector<4x8xf32>
    %cst_21 = arith.constant dense<0.000000e+00> : vector<226x8xf32>
    %33 = tpu.matmul %30, %32, %cst_21 {dimension_numbers = #tpu.dot_dimension_numbers<[1], [0], [0], [1], [0, 0, 1, 1], [], []>} : vector<226x4xf32>, vector<4x8xf32>, vector<226x8xf32> -> vector<226x8xf32>
    %34 = arith.addf %29, %33 : vector<226x8xf32>
    %35 = vector.extract_strided_slice %1 {offsets = [32, 0], sizes = [226, 4], strides = [1, 1]} : vector<264x4xf32> to vector<226x4xf32>
    %c6 = arith.constant 6 : index
    %c0_22 = arith.constant 0 : index
    %c0_23 = arith.constant 0 : index
    %36 = vector.load %arg2[%c6, %c0_22, %c0_23] : memref<9x4x8xf32, #tpu.memory_space<vmem>>, vector<1x4x8xf32>
    %37 = vector.shape_cast %36 : vector<1x4x8xf32> to vector<4x8xf32>
    %cst_24 = arith.constant dense<0.000000e+00> : vector<226x8xf32>
    %38 = tpu.matmul %35, %37, %cst_24 {dimension_numbers = #tpu.dot_dimension_numbers<[1], [0], [0], [1], [0, 0, 1, 1], [], []>} : vector<226x4xf32>, vector<4x8xf32>, vector<226x8xf32> -> vector<226x8xf32>
    %39 = arith.addf %34, %38 : vector<226x8xf32>
    %40 = vector.extract_strided_slice %1 {offsets = [33, 0], sizes = [226, 4], strides = [1, 1]} : vector<264x4xf32> to vector<226x4xf32>
    %c7 = arith.constant 7 : index
    %c0_25 = arith.constant 0 : index
    %c0_26 = arith.constant 0 : index
    %41 = vector.load %arg2[%c7, %c0_25, %c0_26] : memref<9x4x8xf32, #tpu.memory_space<vmem>>, vector<1x4x8xf32>
    %42 = vector.shape_cast %41 : vector<1x4x8xf32> to vector<4x8xf32>
    %cst_27 = arith.constant dense<0.000000e+00> : vector<226x8xf32>
    %43 = tpu.matmul %40, %42, %cst_27 {dimension_numbers = #tpu.dot_dimension_numbers<[1], [0], [0], [1], [0, 0, 1, 1], [], []>} : vector<226x4xf32>, vector<4x8xf32>, vector<226x8xf32> -> vector<226x8xf32>
    %44 = arith.addf %39, %43 : vector<226x8xf32>
    %45 = vector.extract_strided_slice %1 {offsets = [34, 0], sizes = [226, 4], strides = [1, 1]} : vector<264x4xf32> to vector<226x4xf32>
    %c8 = arith.constant 8 : index
    %c0_28 = arith.constant 0 : index
    %c0_29 = arith.constant 0 : index
    %46 = vector.load %arg2[%c8, %c0_28, %c0_29] : memref<9x4x8xf32, #tpu.memory_space<vmem>>, vector<1x4x8xf32>
    %47 = vector.shape_cast %46 : vector<1x4x8xf32> to vector<4x8xf32>
    %cst_30 = arith.constant dense<0.000000e+00> : vector<226x8xf32>
    %48 = tpu.matmul %45, %47, %cst_30 {dimension_numbers = #tpu.dot_dimension_numbers<[1], [0], [0], [1], [0, 0, 1, 1], [], []>} : vector<226x4xf32>, vector<4x8xf32>, vector<226x8xf32> -> vector<226x8xf32>
    %49 = arith.addf %44, %48 : vector<226x8xf32>
    %cst_31 = arith.constant 0.000000e+00 : f32
    %50 = vector.broadcast %cst_31 : f32 to vector<226x8xf32>
    %51 = arith.maximumf %49, %50 : vector<226x8xf32>
    %c0_32 = arith.constant 0 : index
    %c0_33 = arith.constant 0 : index
    %52 = vector.load %arg5[%c0_32, %c0_33] : memref<1x128xf32, #tpu.memory_space<vmem>>, vector<1x128xf32>
    %53 = vector.shape_cast %52 : vector<1x128xf32> to vector<1x128xf32>
    %54 = vector.broadcast %53 : vector<1x128xf32> to vector<192x128xf32>
    %55 = vector.extract_strided_slice %51 {offsets = [0, 0], sizes = [192, 8], strides = [1, 1]} : vector<226x8xf32> to vector<192x8xf32>
    %c0_34 = arith.constant 0 : index
    %c0_35 = arith.constant 0 : index
    %c0_36 = arith.constant 0 : index
    %56 = vector.load %arg4[%c0_34, %c0_35, %c0_36] : memref<9x8x128xf32, #tpu.memory_space<vmem>>, vector<1x8x128xf32>
    %57 = vector.shape_cast %56 : vector<1x8x128xf32> to vector<8x128xf32>
    %cst_37 = arith.constant dense<0.000000e+00> : vector<192x128xf32>
    %58 = tpu.matmul %55, %57, %cst_37 {dimension_numbers = #tpu.dot_dimension_numbers<[1], [0], [0], [1], [0, 0, 1, 1], [], []>} : vector<192x8xf32>, vector<8x128xf32>, vector<192x128xf32> -> vector<192x128xf32>
    %59 = arith.addf %54, %58 : vector<192x128xf32>
    %60 = vector.extract_strided_slice %51 {offsets = [1, 0], sizes = [192, 8], strides = [1, 1]} : vector<226x8xf32> to vector<192x8xf32>
    %c1_38 = arith.constant 1 : index
    %c0_39 = arith.constant 0 : index
    %c0_40 = arith.constant 0 : index
    %61 = vector.load %arg4[%c1_38, %c0_39, %c0_40] : memref<9x8x128xf32, #tpu.memory_space<vmem>>, vector<1x8x128xf32>
    %62 = vector.shape_cast %61 : vector<1x8x128xf32> to vector<8x128xf32>
    %cst_41 = arith.constant dense<0.000000e+00> : vector<192x128xf32>
    %63 = tpu.matmul %60, %62, %cst_41 {dimension_numbers = #tpu.dot_dimension_numbers<[1], [0], [0], [1], [0, 0, 1, 1], [], []>} : vector<192x8xf32>, vector<8x128xf32>, vector<192x128xf32> -> vector<192x128xf32>
    %64 = arith.addf %59, %63 : vector<192x128xf32>
    %65 = vector.extract_strided_slice %51 {offsets = [2, 0], sizes = [192, 8], strides = [1, 1]} : vector<226x8xf32> to vector<192x8xf32>
    %c2_42 = arith.constant 2 : index
    %c0_43 = arith.constant 0 : index
    %c0_44 = arith.constant 0 : index
    %66 = vector.load %arg4[%c2_42, %c0_43, %c0_44] : memref<9x8x128xf32, #tpu.memory_space<vmem>>, vector<1x8x128xf32>
    %67 = vector.shape_cast %66 : vector<1x8x128xf32> to vector<8x128xf32>
    %cst_45 = arith.constant dense<0.000000e+00> : vector<192x128xf32>
    %68 = tpu.matmul %65, %67, %cst_45 {dimension_numbers = #tpu.dot_dimension_numbers<[1], [0], [0], [1], [0, 0, 1, 1], [], []>} : vector<192x8xf32>, vector<8x128xf32>, vector<192x128xf32> -> vector<192x128xf32>
    %69 = arith.addf %64, %68 : vector<192x128xf32>
    %70 = vector.extract_strided_slice %51 {offsets = [16, 0], sizes = [192, 8], strides = [1, 1]} : vector<226x8xf32> to vector<192x8xf32>
    %c3_46 = arith.constant 3 : index
    %c0_47 = arith.constant 0 : index
    %c0_48 = arith.constant 0 : index
    %71 = vector.load %arg4[%c3_46, %c0_47, %c0_48] : memref<9x8x128xf32, #tpu.memory_space<vmem>>, vector<1x8x128xf32>
    %72 = vector.shape_cast %71 : vector<1x8x128xf32> to vector<8x128xf32>
    %cst_49 = arith.constant dense<0.000000e+00> : vector<192x128xf32>
    %73 = tpu.matmul %70, %72, %cst_49 {dimension_numbers = #tpu.dot_dimension_numbers<[1], [0], [0], [1], [0, 0, 1, 1], [], []>} : vector<192x8xf32>, vector<8x128xf32>, vector<192x128xf32> -> vector<192x128xf32>
    %74 = arith.addf %69, %73 : vector<192x128xf32>
    %75 = vector.extract_strided_slice %51 {offsets = [17, 0], sizes = [192, 8], strides = [1, 1]} : vector<226x8xf32> to vector<192x8xf32>
    %c4_50 = arith.constant 4 : index
    %c0_51 = arith.constant 0 : index
    %c0_52 = arith.constant 0 : index
    %76 = vector.load %arg4[%c4_50, %c0_51, %c0_52] : memref<9x8x128xf32, #tpu.memory_space<vmem>>, vector<1x8x128xf32>
    %77 = vector.shape_cast %76 : vector<1x8x128xf32> to vector<8x128xf32>
    %cst_53 = arith.constant dense<0.000000e+00> : vector<192x128xf32>
    %78 = tpu.matmul %75, %77, %cst_53 {dimension_numbers = #tpu.dot_dimension_numbers<[1], [0], [0], [1], [0, 0, 1, 1], [], []>} : vector<192x8xf32>, vector<8x128xf32>, vector<192x128xf32> -> vector<192x128xf32>
    %79 = arith.addf %74, %78 : vector<192x128xf32>
    %80 = vector.extract_strided_slice %51 {offsets = [18, 0], sizes = [192, 8], strides = [1, 1]} : vector<226x8xf32> to vector<192x8xf32>
    %c5_54 = arith.constant 5 : index
    %c0_55 = arith.constant 0 : index
    %c0_56 = arith.constant 0 : index
    %81 = vector.load %arg4[%c5_54, %c0_55, %c0_56] : memref<9x8x128xf32, #tpu.memory_space<vmem>>, vector<1x8x128xf32>
    %82 = vector.shape_cast %81 : vector<1x8x128xf32> to vector<8x128xf32>
    %cst_57 = arith.constant dense<0.000000e+00> : vector<192x128xf32>
    %83 = tpu.matmul %80, %82, %cst_57 {dimension_numbers = #tpu.dot_dimension_numbers<[1], [0], [0], [1], [0, 0, 1, 1], [], []>} : vector<192x8xf32>, vector<8x128xf32>, vector<192x128xf32> -> vector<192x128xf32>
    %84 = arith.addf %79, %83 : vector<192x128xf32>
    %85 = vector.extract_strided_slice %51 {offsets = [32, 0], sizes = [192, 8], strides = [1, 1]} : vector<226x8xf32> to vector<192x8xf32>
    %c6_58 = arith.constant 6 : index
    %c0_59 = arith.constant 0 : index
    %c0_60 = arith.constant 0 : index
    %86 = vector.load %arg4[%c6_58, %c0_59, %c0_60] : memref<9x8x128xf32, #tpu.memory_space<vmem>>, vector<1x8x128xf32>
    %87 = vector.shape_cast %86 : vector<1x8x128xf32> to vector<8x128xf32>
    %cst_61 = arith.constant dense<0.000000e+00> : vector<192x128xf32>
    %88 = tpu.matmul %85, %87, %cst_61 {dimension_numbers = #tpu.dot_dimension_numbers<[1], [0], [0], [1], [0, 0, 1, 1], [], []>} : vector<192x8xf32>, vector<8x128xf32>, vector<192x128xf32> -> vector<192x128xf32>
    %89 = arith.addf %84, %88 : vector<192x128xf32>
    %90 = vector.extract_strided_slice %51 {offsets = [33, 0], sizes = [192, 8], strides = [1, 1]} : vector<226x8xf32> to vector<192x8xf32>
    %c7_62 = arith.constant 7 : index
    %c0_63 = arith.constant 0 : index
    %c0_64 = arith.constant 0 : index
    %91 = vector.load %arg4[%c7_62, %c0_63, %c0_64] : memref<9x8x128xf32, #tpu.memory_space<vmem>>, vector<1x8x128xf32>
    %92 = vector.shape_cast %91 : vector<1x8x128xf32> to vector<8x128xf32>
    %cst_65 = arith.constant dense<0.000000e+00> : vector<192x128xf32>
    %93 = tpu.matmul %90, %92, %cst_65 {dimension_numbers = #tpu.dot_dimension_numbers<[1], [0], [0], [1], [0, 0, 1, 1], [], []>} : vector<192x8xf32>, vector<8x128xf32>, vector<192x128xf32> -> vector<192x128xf32>
    %94 = arith.addf %89, %93 : vector<192x128xf32>
    %95 = vector.extract_strided_slice %51 {offsets = [34, 0], sizes = [192, 8], strides = [1, 1]} : vector<226x8xf32> to vector<192x8xf32>
    %c8_66 = arith.constant 8 : index
    %c0_67 = arith.constant 0 : index
    %c0_68 = arith.constant 0 : index
    %96 = vector.load %arg4[%c8_66, %c0_67, %c0_68] : memref<9x8x128xf32, #tpu.memory_space<vmem>>, vector<1x8x128xf32>
    %97 = vector.shape_cast %96 : vector<1x8x128xf32> to vector<8x128xf32>
    %cst_69 = arith.constant dense<0.000000e+00> : vector<192x128xf32>
    %98 = tpu.matmul %95, %97, %cst_69 {dimension_numbers = #tpu.dot_dimension_numbers<[1], [0], [0], [1], [0, 0, 1, 1], [], []>} : vector<192x8xf32>, vector<8x128xf32>, vector<192x128xf32> -> vector<192x128xf32>
    %99 = arith.addf %94, %98 : vector<192x128xf32>
    %c0_70 = arith.constant 0 : index
    %c0_71 = arith.constant 0 : index
    %c0_72 = arith.constant 0 : index
    %100 = vector.load %arg6[%c0_70, %c0_71, %c0_72] : memref<1x192x128xf32, #tpu.memory_space<vmem>>, vector<1x192x128xf32>
    %101 = vector.shape_cast %100 : vector<1x192x128xf32> to vector<192x128xf32>
    %102 = vector.shape_cast %99 : vector<192x128xf32> to vector<1x192x128xf32>
    tpu.vector_store %arg6[%c0_70, %c0_71, %c0_72], %102 {strides = array<i32>} : memref<1x192x128xf32, #tpu.memory_space<vmem>>, vector<1x192x128xf32>,
    return
  }
  func.func @transform_0(%arg0: i32) -> (i32, i32, i32) {
    %c0_i32 = arith.constant 0 : i32
    %c0_i32_0 = arith.constant 0 : i32
    %c0_i32_1 = arith.constant 0 : i32
    return %arg0, %c0_i32, %c0_i32_0 : i32, i32, i32
  }
  func.func @transform_1(%arg0: i32) -> (i32, i32, i32) {
    %c0_i32 = arith.constant 0 : i32
    %c0_i32_0 = arith.constant 0 : i32
    %c0_i32_1 = arith.constant 0 : i32
    %c0_i32_2 = arith.constant 0 : i32
    return %c0_i32, %c0_i32_0, %c0_i32_1 : i32, i32, i32
  }
  func.func @transform_2(%arg0: i32) -> (i32, i32) {
    %c0_i32 = arith.constant 0 : i32
    %c0_i32_0 = arith.constant 0 : i32
    %c0_i32_1 = arith.constant 0 : i32
    return %c0_i32, %c0_i32_0 : i32, i32
  }
  func.func @transform_3(%arg0: i32) -> (i32, i32, i32) {
    %c0_i32 = arith.constant 0 : i32
    %c0_i32_0 = arith.constant 0 : i32
    %c0_i32_1 = arith.constant 0 : i32
    %c0_i32_2 = arith.constant 0 : i32
    return %c0_i32, %c0_i32_0, %c0_i32_1 : i32, i32, i32
  }
  func.func @transform_4(%arg0: i32) -> (i32, i32) {
    %c0_i32 = arith.constant 0 : i32
    %c0_i32_0 = arith.constant 0 : i32
    %c0_i32_1 = arith.constant 0 : i32
    return %c0_i32, %c0_i32_0 : i32, i32
  }
  func.func @transform_5(%arg0: i32) -> (i32, i32, i32) {
    %c0_i32 = arith.constant 0 : i32
    %c0_i32_0 = arith.constant 0 : i32
    %c0_i32_1 = arith.constant 0 : i32
    return %arg0, %c0_i32, %c0_i32_0 : i32, i32, i32
  }
}

</mosaic_0001>

<llo_original>
// kernel: tpu_custom_call.1
$region0: #{tpu_custom_call.1}
  #allocation0 [shape = 'u32[]', space=smem, size = 0x4, offset = 0x4, fixed_abs, tag = 'smem constant byte address 0x4 - core index']
  #allocation1 [shape = 'u32[144,128]{1,0:T(1,128)}', space=vmem, size = 0x12000, scoped, tag = 'internal scratch']
  %s0 = inlined_call_operand.vmem [shape: f32[2,264,4], index: 0, kind: input, shape index: {}]
  %s1 = inlined_call_operand.vmem [shape: f32[9,4,8], index: 1, kind: input, shape index: {}]
  %s2 = inlined_call_operand.vmem [shape: f32[1,8], index: 2, kind: input, shape index: {}]
  %s3 = inlined_call_operand.vmem [shape: f32[9,8,128], index: 3, kind: input, shape index: {}]
  %s4 = inlined_call_operand.vmem [shape: f32[1,128], index: 4, kind: input, shape index: {}]
  %s5 = inlined_call_operand.hbm [shape: f32[2,192,128], index: 5, kind: output, shape index: {}]
  %s6 = sld [smem:[#allocation0]]
  $region53: #{tpu_custom_call.1} parent=0
    _
  %s8 = ssub.s32 1, %s6
  %s9 = scalar_select 0, %s8, %s6
  $region1: #{tpu_custom_call.1} parent=0
    #allocation2 [shape = 'u8[196608]{0}', space=vmem, size = 0x30000, scoped, tag = 'output window, operand 0']
    #allocation3 [shape = 's32[2]{0}', space=sflag, size = 0x8, scoped, tag = 'scoped memory for tpu_custom_call.1']
    %10 = vsyncpa [#allocation3], 0
    %s11 = scalar_lea.sflag [#allocation3], 1
    %12 = vsyncpa %s11, 0
    loop: start=0, step=1, limit=4
    $region2: #{tpu_custom_call.1} parent=1 // loop_pre_header
      _
    $region3: #{tpu_custom_call.1} parent=1 // loop_header
      %s14 = sphi 0, %s18
      %p15 = scmp.ge.s32.totalorder %s14, 4
      %s24 = sphi 0, %s26
      %s27 = sphi 0, %s24
      %s28 = sphi 0, %s27
      %s44 = sphi 0, %s28
      %s48 = sphi 0, %s48
      %s50 = sphi 0, %s48
      %s51 = sphi 0, %s50
      %s65 = sphi 0, %s51
      %s69 = sphi 0, %s69
      %s71 = sphi 0, %s69
      %s72 = sphi 0, %s71
      %s86 = sphi 0, %s72
      %s90 = sphi 0, %s90
      %s92 = sphi 0, %s90
      %s93 = sphi 0, %s92
      %s107 = sphi 0, %s93
      %s111 = sphi 0, %s111
      %s113 = sphi 0, %s111
      %s114 = sphi 0, %s113
      %s128 = sphi 0, %s114
      %s134 = sphi 0, %s136
      %s137 = sphi 0, %s134
      %s138 = sphi 0, %s137
      %s154 = sphi 0, %s138
    $region4: #{tpu_custom_call.1} parent=1 // loop_header_branch
      %17 = sbr.rel (%p15) target = $region8
    $region5: #{tpu_custom_call.1} parent=1 // loop_body
      %s19 = ssub.s32 %s14, 1
      %s20 = ssub.s32 %s14, 2
      %s21 = sadd.s32 %s14, 1
      %s22 = ssub.s32 %s14, %s21
      %p23 = scmp.eq.s32.totalorder %s22, 0
      %s25 = sadd.s32 %s24, 1
      %s26 = scalar_select %p23, %s24, %s25
      %p29 = pneg %p23
      %p30 = scmp.eq.s32.totalorder %s14, 1
      %p31 = por %p29, %p30
      %p32 = scmp.ne.s32.totalorder %s24, %s27
      %p33 = scmp.eq.s32.totalorder %s14, 0
      %p34 = por %p32, %p33
      %p35 = scmp.ne.s32.totalorder %s24, %s27
      %p36 = scmp.eq.s32.totalorder %s19, 1
      %p37 = por %p35, %p36
      %p38 = scmp.ne.s32.totalorder %s27, %s28
      %p39 = scmp.eq.s32.totalorder %s19, 0
      %p40 = por %p38, %p39
      %p41 = scmp.ne.s32.totalorder %s27, %s28
      %p42 = scmp.eq.s32.totalorder %s20, 1
      %p43 = por %p41, %p42
      %p45 = scmp.ne.s32.totalorder %s28, %s44
      %p46 = scmp.eq.s32.totalorder %s20, 0
      %p47 = por %p45, %p46
      %s49 = sadd.s32 %s48, 1
      %p52 = scmp.eq.s32.totalorder %s14, 1
      %p53 = scmp.ne.s32.totalorder %s48, %s50
      %p54 = scmp.eq.s32.totalorder %s14, 0
      %p55 = por %p53, %p54
      %p56 = scmp.ne.s32.totalorder %s48, %s50
      %p57 = scmp.eq.s32.totalorder %s19, 1
      %p58 = por %p56, %p57
      %p59 = scmp.ne.s32.totalorder %s50, %s51
      %p60 = scmp.eq.s32.totalorder %s19, 0
      %p61 = por %p59, %p60
      %p62 = scmp.ne.s32.totalorder %s50, %s51
      %p63 = scmp.eq.s32.totalorder %s20, 1
      %p64 = por %p62, %p63
      %p66 = scmp.ne.s32.totalorder %s51, %s65
      %p67 = scmp.eq.s32.totalorder %s20, 0
      %p68 = por %p66, %p67
      %s70 = sadd.s32 %s69, 1
      %p73 = scmp.eq.s32.totalorder %s14, 1
      %p74 = scmp.ne.s32.totalorder %s69, %s71
      %p75 = scmp.eq.s32.totalorder %s14, 0
      %p76 = por %p74, %p75
      %p77 = scmp.ne.s32.totalorder %s69, %s71
      %p78 = scmp.eq.s32.totalorder %s19, 1
      %p79 = por %p77, %p78
      %p80 = scmp.ne.s32.totalorder %s71, %s72
      %p81 = scmp.eq.s32.totalorder %s19, 0
      %p82 = por %p80, %p81
      %p83 = scmp.ne.s32.totalorder %s71, %s72
      %p84 = scmp.eq.s32.totalorder %s20, 1
      %p85 = por %p83, %p84
      %p87 = scmp.ne.s32.totalorder %s72, %s86
      %p88 = scmp.eq.s32.totalorder %s20, 0
      %p89 = por %p87, %p88
      %s91 = sadd.s32 %s90, 1
      %p94 = scmp.eq.s32.totalorder %s14, 1
      %p95 = scmp.ne.s32.totalorder %s90, %s92
      %p96 = scmp.eq.s32.totalorder %s14, 0
      %p97 = por %p95, %p96
      %p98 = scmp.ne.s32.totalorder %s90, %s92
      %p99 = scmp.eq.s32.totalorder %s19, 1
      %p100 = por %p98, %p99
      %p101 = scmp.ne.s32.totalorder %s92, %s93
      %p102 = scmp.eq.s32.totalorder %s19, 0
      %p103 = por %p101, %p102
      %p104 = scmp.ne.s32.totalorder %s92, %s93
      %p105 = scmp.eq.s32.totalorder %s20, 1
      %p106 = por %p104, %p105
      %p108 = scmp.ne.s32.totalorder %s93, %s107
      %p109 = scmp.eq.s32.totalorder %s20, 0
      %p110 = por %p108, %p109
      %s112 = sadd.s32 %s111, 1
      %p115 = scmp.eq.s32.totalorder %s14, 1
      %p116 = scmp.ne.s32.totalorder %s111, %s113
      %p117 = scmp.eq.s32.totalorder %s14, 0
      %p118 = por %p116, %p117
      %p119 = scmp.ne.s32.totalorder %s111, %s113
      %p120 = scmp.eq.s32.totalorder %s19, 1
      %p121 = por %p119, %p120
      %p122 = scmp.ne.s32.totalorder %s113, %s114
      %p123 = scmp.eq.s32.totalorder %s19, 0
      %p124 = por %p122, %p123
      %p125 = scmp.ne.s32.totalorder %s113, %s114
      %p126 = scmp.eq.s32.totalorder %s20, 1
      %p127 = por %p125, %p126
      %p129 = scmp.ne.s32.totalorder %s114, %s128
      %p130 = scmp.eq.s32.totalorder %s20, 0
      %p131 = por %p129, %p130
      %s132 = ssub.s32 %s14, %s21
      %p133 = scmp.eq.s32.totalorder %s132, 0
      %s135 = sadd.s32 %s134, 1
      %s136 = scalar_select %p133, %s134, %s135
      %p139 = pneg %p133
      %p140 = scmp.eq.s32.totalorder %s14, 1
      %p141 = por %p139, %p140
      %p142 = scmp.ne.s32.totalorder %s134, %s137
      %p143 = scmp.eq.s32.totalorder %s14, 0
      %p144 = por %p142, %p143
      %p145 = scmp.ne.s32.totalorder %s134, %s137
      %p146 = scmp.eq.s32.totalorder %s19, 1
      %p147 = por %p145, %p146
      %p148 = scmp.ne.s32.totalorder %s137, %s138
      %p149 = scmp.eq.s32.totalorder %s19, 0
      %p150 = por %p148, %p149
      %p151 = scmp.ne.s32.totalorder %s137, %s138
      %p152 = scmp.eq.s32.totalorder %s20, 1
      %p153 = por %p151, %p152
      %p155 = scmp.ne.s32.totalorder %s138, %s154
      %p156 = scmp.eq.s32.totalorder %s20, 0
      %p157 = por %p155, %p156
      %p158 = scmp.le.s32.totalorder 1, %s14
      %p159 = scmp.lt.s32.totalorder %s14, 3
      %p160 = pnand %p158, %p159
      %p161 = pneg %p160
      // Predicated region
      $region9: #{tpu_custom_call.1} parent=5 // pred_check
        _
      $region10: #{tpu_custom_call.1} parent=5 // pred_check_branch
        %163 = sbr.rel (%p160) target = $region12
      $region11: #{tpu_custom_call.1} parent=5 // pred_region
        %s164 = ssub.s32 %s14, 1
        // Predicated region
        $region13: #{tpu_custom_call.1} parent=11 // pred_check
          %p165 = pneg %p61
        $region14: #{tpu_custom_call.1} parent=11 // pred_check_branch
          %167 = sbr.rel (%p165) target = $region16
        $region15: #{tpu_custom_call.1} parent=11 // pred_region
          _
        $region16: #{tpu_custom_call.1} parent=11 // pred_fallthru
          _
        // Predicated region
        $region17: #{tpu_custom_call.1} parent=11 // pred_check
          %p168 = pneg %p82
        $region18: #{tpu_custom_call.1} parent=11 // pred_check_branch
          %170 = sbr.rel (%p168) target = $region20
        $region19: #{tpu_custom_call.1} parent=11 // pred_region
          _
        $region20: #{tpu_custom_call.1} parent=11 // pred_fallthru
          _
        // Predicated region
        $region21: #{tpu_custom_call.1} parent=11 // pred_check
          %p171 = pneg %p103
        $region22: #{tpu_custom_call.1} parent=11 // pred_check_branch
          %173 = sbr.rel (%p171) target = $region24
        $region23: #{tpu_custom_call.1} parent=11 // pred_region
          _
        $region24: #{tpu_custom_call.1} parent=11 // pred_fallthru
          _
        // Predicated region
        $region25: #{tpu_custom_call.1} parent=11 // pred_check
          %p174 = pneg %p124
        $region26: #{tpu_custom_call.1} parent=11 // pred_check_branch
          %176 = sbr.rel (%p174) target = $region28
        $region27: #{tpu_custom_call.1} parent=11 // pred_region
          _
        $region28: #{tpu_custom_call.1} parent=11 // pred_fallthru
          _
      $region12: #{tpu_custom_call.1} parent=5 // pred_fallthru
        _
      %p177 = scmp.lt.s32.totalorder %s14, 2
      // Predicated region
      $region29: #{tpu_custom_call.1} parent=5 // pred_check
        %p178 = pneg %p177
      $region30: #{tpu_custom_call.1} parent=5 // pred_check_branch
        %180 = sbr.rel (%p178) target = $region32
      $region31: #{tpu_custom_call.1} parent=5 // pred_region
        // Predicated region
        $region33: #{tpu_custom_call.1} parent=31 // pred_check
          %p181 = pneg %p34
        $region34: #{tpu_custom_call.1} parent=31 // pred_check_branch
          %183 = sbr.rel (%p181) target = $region36
        $region35: #{tpu_custom_call.1} parent=31 // pred_region
          %p184 = scmp.lt.s32.totalorder %s14, 1
          %s185 = scalar_select %p184, %s14, 1
          %s186 = smul.addr %s185, 33
          %s187 = smul.addr %s186, 8
          %s188 = scalar_lea.vmem %s0, %s187
        $region36: #{tpu_custom_call.1} parent=31 // pred_fallthru
          _
      $region32: #{tpu_custom_call.1} parent=5 // pred_fallthru
        _
      %p189 = scmp.le.s32.totalorder 1, %s14
      %p190 = scmp.lt.s32.totalorder %s14, 3
      %p191 = pnand %p189, %p190
      %p192 = pneg %p191
      // Predicated region
      $region37: #{tpu_custom_call.1} parent=5 // pred_check
        _
      $region38: #{tpu_custom_call.1} parent=5 // pred_check_branch
        %194 = sbr.rel (%p191) target = $region40
      $region39: #{tpu_custom_call.1} parent=5 // pred_region
        %s195 = ssub.s32 %s14, 1
        %p196 = scmp.lt.s32.totalorder %s19, 1
        %s197 = scalar_select %p196, %s19, 1
        %s198 = smul.addr %s197, 33
        %s199 = smul.addr %s198, 8
        %s200 = scalar_lea.vmem %s0, %s199
        %p201 = pneg %p40
        %p202 = pneg %p37
        %p203 = pneg %p61
        %p204 = pneg %p58
        %p205 = pneg %p82
        %p206 = pneg %p79
        %p207 = pneg %p103
        %p208 = pneg %p100
        %p209 = pneg %p124
        %p210 = pneg %p121
        %p211 = pneg %p150
        %p212 = pneg %p147
        %s213 = sand.u32 %s137, 1
        %s214 = scalar_lea.sflag [#allocation3], %s213
        %s215 = sand.u32 %s137, 1
        %s216 = smul.addr %s215, 192
        %s217 = scalar_lea.vmem [#allocation2], %s216
        %p218 = scmp.lt.s32.totalorder %s19, 1
        %s219 = scalar_select %p218, %s19, 1
        %s220 = smul.addr %s219, 33
        %s221 = smul.addr %s220, 8
        %s222 = scalar_lea.vmem %s0, %s221
        %v223 = vld [vmem:[%s222] sm:$0xff]
        %v224 = vld [vmem:[%s222 + $0x8] sm:$0xff]
        %v225 = vld [vmem:[%s222 + $0x10] sm:$0xff]
        %v226 = vld [vmem:[%s222 + $0x18] sm:$0xff]
        %v227 = vld [vmem:[%s222 + $0x20] sm:$0xff]
        %v228 = vld [vmem:[%s222 + $0x28] sm:$0xff]
        %v229 = vld [vmem:[%s222 + $0x30] sm:$0xff]
        %v230 = vld [vmem:[%s222 + $0x38] sm:$0xff]
        %v231 = vld [vmem:[%s222 + $0x40] sm:$0xff]
        %v232 = vld [vmem:[%s222 + $0x48] sm:$0xff]
        %v233 = vld [vmem:[%s222 + $0x50] sm:$0xff]
        %v234 = vld [vmem:[%s222 + $0x58] sm:$0xff]
        %v235 = vld [vmem:[%s222 + $0x60] sm:$0xff]
        %v236 = vld [vmem:[%s222 + $0x68] sm:$0xff]
        %v237 = vld [vmem:[%s222 + $0x70] sm:$0xff]
        %v238 = vld [vmem:[%s222 + $0x78] sm:$0xff]
        %v239 = vld [vmem:[%s222 + $0x80] sm:$0xff]
        %v240 = vld [vmem:[%s222 + $0x88] sm:$0xff]
        %v241 = vld [vmem:[%s222 + $0x90] sm:$0xff]
        %v242 = vld [vmem:[%s222 + $0x98] sm:$0xff]
        %v243 = vld [vmem:[%s222 + $0xa0] sm:$0xff]
        %v244 = vld [vmem:[%s222 + $0xa8] sm:$0xff]
        %v245 = vld [vmem:[%s222 + $0xb0] sm:$0xff]
        %v246 = vld [vmem:[%s222 + $0xb8] sm:$0xff]
        %v247 = vld [vmem:[%s222 + $0xc0] sm:$0xff]
        %v248 = vld [vmem:[%s222 + $0xc8] sm:$0xff]
        %v249 = vld [vmem:[%s222 + $0xd0] sm:$0xff]
        %v250 = vld [vmem:[%s222 + $0xd8] sm:$0xff]
        %v251 = vld [vmem:[%s222 + $0xe0] sm:$0xff]
        %v252 = vld [vmem:[%s222 + $0xe8] sm:$0xff]
        %v253 = vld [vmem:[%s222 + $0xf0] sm:$0xff]
        %v254 = vld [vmem:[%s222 + $0xf8] sm:$0xff]
        %v255 = vld [vmem:[%s222 + $0x100] sm:$0xff]
        %v256 = vld [vmem:[%s2] sm:$0x1]
        %v258 = vlaneseq
        %v259 = vshrl.u32 %v258, 7
        %v260 = vsub.s32 0, %v259
        %v261 = vrot.slane %v256, %v260
        %v263 = vld [vmem:[%s1] sm:$0xf]
        %vm264 = vcmask 31744
        %v266 = vsel %vm264, %v223, 0
        %v269 = vsel %vm264, %v224, 0
        %v272 = vsel %vm264, %v225, 0
        %v275 = vsel %vm264, %v226, 0
        %v278 = vsel %vm264, %v227, 0
        %v281 = vsel %vm264, %v228, 0
        %v284 = vsel %vm264, %v229, 0
        %v287 = vsel %vm264, %v230, 0
        %v290 = vsel %vm264, %v231, 0
        %v293 = vsel %vm264, %v232, 0
        %v296 = vsel %vm264, %v233, 0
        %v299 = vsel %vm264, %v234, 0
        %v302 = vsel %vm264, %v235, 0
        %v305 = vsel %vm264, %v236, 0
        %v308 = vsel %vm264, %v237, 0
        %v311 = vsel %vm264, %v238, 0
        %v314 = vsel %vm264, %v239, 0
        %v317 = vsel %vm264, %v240, 0
        %v320 = vsel %vm264, %v241, 0
        %v323 = vsel %vm264, %v242, 0
        %v326 = vsel %vm264, %v243, 0
        %v329 = vsel %vm264, %v244, 0
        %v332 = vsel %vm264, %v245, 0
        %v335 = vsel %vm264, %v246, 0
        %v338 = vsel %vm264, %v247, 0
        %v341 = vsel %vm264, %v248, 0
        %v344 = vsel %vm264, %v249, 0
        %v347 = vsel %vm264, %v250, 0
        %v350 = vsel %vm264, %v251, 0
        %vm352 = vcmask 1043456
        %v354 = vsel %vm352, %v263, 0
        %356 = vmatprep.subr.mxu0 0.0
        %357 = vmatpush1.msra.mxu0 %v354
        %358 = vmatprep.subr.mxu0 0.0
        %359 = vmatpush1.msra.mxu0 0.0
        %360 = vmatprep.subr.mxu0 0.0
        %361 = vmatpush1.msra.mxu0 0.0
        %362 = vmatprep.subr.mxu0 0.0
        %363 = vmatpush1.msra.mxu0 0.0
        %364 = vmatprep.subr.mxu0 0.0
        %365 = vmatpush1.msra.mxu0 0.0
        %366 = vmatprep.subr.mxu0 0.0
        %367 = vmatpush1.msra.mxu0 0.0
        %368 = vmatprep.subr.mxu0 0.0
        %369 = vmatpush1.msra.mxu0 0.0
        %370 = vmatprep.subr.mxu0 0.0
        %371 = vmatpush1.msra.mxu0 0.0
        %372 = vmatprep.subr.mxu0 0.0
        %373 = vmatpush1.msra.mxu0 0.0
        %374 = vmatprep.subr.mxu0 0.0
        %375 = vmatpush1.msra.mxu0 0.0
        %376 = vmatprep.subr.mxu0 0.0
        %377 = vmatpush1.msra.mxu0 0.0
        %378 = vmatprep.subr.mxu0 0.0
        %379 = vmatpush1.msra.mxu0 0.0
        %380 = vmatprep.subr.mxu0 0.0
        %381 = vmatpush1.msra.mxu0 0.0
        %382 = vmatprep.subr.mxu0 0.0
        %383 = vmatpush1.msra.mxu0 0.0
        %384 = vmatprep.subr.mxu0 0.0
        %385 = vmatpush1.msra.mxu0 0.0
        %386 = vmatprep.subr.mxu0 0.0
        %387 = vmatpush1.msra.mxu0 0.0
        %388 = vmatprep.subr.mxu0 0.0
        %389 = vmatpush1.msra.mxu0 0.0
        %390 = vmatprep.subr.mxu0 0.0
        %391 = vmatpush1.msra.mxu0 0.0
        %392 = vmatprep.subr.mxu0 0.0
        %393 = vmatpush1.msra.mxu0 0.0
        %394 = vmatprep.subr.mxu0 0.0
        %395 = vmatpush1.msra.mxu0 0.0
        %396 = vmatprep.subr.mxu0 0.0
        %397 = vmatpush1.msra.mxu0 0.0
        %398 = vmatprep.subr.mxu0 0.0
        %399 = vmatpush1.msra.mxu0 0.0
        %400 = vmatprep.subr.mxu0 0.0
        %401 = vmatpush1.msra.mxu0 0.0
        %402 = vmatprep.subr.mxu0 0.0
        %403 = vmatpush1.msra.mxu0 0.0
        %404 = vmatprep.subr.mxu0 0.0
        %405 = vmatpush1.msra.mxu0 0.0
        %406 = vmatprep.subr.mxu0 0.0
        %407 = vmatpush1.msra.mxu0 0.0
        %408 = vmatprep.subr.mxu0 0.0
        %409 = vmatpush1.msra.mxu0 0.0
        %410 = vmatprep.subr.mxu0 0.0
        %411 = vmatpush1.msra.mxu0 0.0
        %412 = vmatprep.subr.mxu0 0.0
        %413 = vmatpush1.msra.mxu0 0.0
        %414 = vmatprep.subr.mxu0 0.0
        %415 = vmatpush1.msra.mxu0 0.0
        %416 = vmatprep.subr.mxu0 0.0
        %417 = vmatpush1.msra.mxu0 0.0
        %418 = vmatprep.subr.mxu0 0.0
        %419 = vmatpush1.msra.mxu0 0.0
        %420 = vmatprep.mubr.f32.mxu0 0.0
        %421 = vmatmul.mubr.f32.gmra.mrb[0].mxu0 %v266
        %v422 = vpop.f32.mrb[0].mxu0
        %v423 = vadd.f32 0.0, %v422
        %v424 = vpop.f32.mrb[0].mxu0
        %425 = vmatprep.mubr.f32.mxu0 0.0
        %426 = vmatmul.mubr.f32.gmra.mrb[0].mxu0 %v269
        %v427 = vpop.f32.mrb[0].mxu0
        %v428 = vadd.f32 0.0, %v427
        %v429 = vpop.f32.mrb[0].mxu0
        %430 = vmatprep.mubr.f32.mxu0 0.0
        %431 = vmatmul.mubr.f32.gmra.mrb[0].mxu0 %v272
        %v432 = vpop.f32.mrb[0].mxu0
        %v433 = vadd.f32 0.0, %v432
        %v434 = vpop.f32.mrb[0].mxu0
        %435 = vmatprep.mubr.f32.mxu0 0.0
        %436 = vmatmul.mubr.f32.gmra.mrb[0].mxu0 %v275
        %v437 = vpop.f32.mrb[0].mxu0
        %v438 = vadd.f32 0.0, %v437
        %v439 = vpop.f32.mrb[0].mxu0
        %440 = vmatprep.mubr.f32.mxu0 0.0
        %441 = vmatmul.mubr.f32.gmra.mrb[0].mxu0 %v278
        %v442 = vpop.f32.mrb[0].mxu0
        %v443 = vadd.f32 0.0, %v442
        %v444 = vpop.f32.mrb[0].mxu0
        %445 = vmatprep.mubr.f32.mxu0 0.0
        %446 = vmatmul.mubr.f32.gmra.mrb[0].mxu0 %v281
        %v447 = vpop.f32.mrb[0].mxu0
        %v448 = vadd.f32 0.0, %v447
        %v449 = vpop.f32.mrb[0].mxu0
        %450 = vmatprep.mubr.f32.mxu0 0.0
        %451 = vmatmul.mubr.f32.gmra.mrb[0].mxu0 %v284
        %v452 = vpop.f32.mrb[0].mxu0
        %v453 = vadd.f32 0.0, %v452
        %v454 = vpop.f32.mrb[0].mxu0
        %455 = vmatprep.mubr.f32.mxu0 0.0
        %456 = vmatmul.mubr.f32.gmra.mrb[0].mxu0 %v287
        %v457 = vpop.f32.mrb[0].mxu0
        %v458 = vadd.f32 0.0, %v457
        %v459 = vpop.f32.mrb[0].mxu0
        %460 = vmatprep.mubr.f32.mxu0 0.0
        %461 = vmatmul.mubr.f32.gmra.mrb[0].mxu0 %v290
        %v462 = vpop.f32.mrb[0].mxu0
        %v463 = vadd.f32 0.0, %v462
        %v464 = vpop.f32.mrb[0].mxu0
        %465 = vmatprep.mubr.f32.mxu0 0.0
        %466 = vmatmul.mubr.f32.gmra.mrb[0].mxu0 %v293
        %v467 = vpop.f32.mrb[0].mxu0
        %v468 = vadd.f32 0.0, %v467
        %v469 = vpop.f32.mrb[0].mxu0
        %470 = vmatprep.mubr.f32.mxu0 0.0
        %471 = vmatmul.mubr.f32.gmra.mrb[0].mxu0 %v296
        %v472 = vpop.f32.mrb[0].mxu0
        %v473 = vadd.f32 0.0, %v472
        %v474 = vpop.f32.mrb[0].mxu0
        %475 = vmatprep.mubr.f32.mxu0 0.0
        %476 = vmatmul.mubr.f32.gmra.mrb[0].mxu0 %v299
        %v477 = vpop.f32.mrb[0].mxu0
        %v478 = vadd.f32 0.0, %v477
        %v479 = vpop.f32.mrb[0].mxu0
        %480 = vmatprep.mubr.f32.mxu0 0.0
        %481 = vmatmul.mubr.f32.gmra.mrb[0].mxu0 %v302
        %v482 = vpop.f32.mrb[0].mxu0
        %v483 = vadd.f32 0.0, %v482
        %v484 = vpop.f32.mrb[0].mxu0
        %485 = vmatprep.mubr.f32.mxu0 0.0
        %486 = vmatmul.mubr.f32.gmra.mrb[0].mxu0 %v305
        %v487 = vpop.f32.mrb[0].mxu0
        %v488 = vadd.f32 0.0, %v487
        %v489 = vpop.f32.mrb[0].mxu0
        %490 = vmatprep.mubr.f32.mxu0 0.0
        %491 = vmatmul.mubr.f32.gmra.mrb[0].mxu0 %v308
        %v492 = vpop.f32.mrb[0].mxu0
        %v493 = vadd.f32 0.0, %v492
        %v494 = vpop.f32.mrb[0].mxu0
        %495 = vmatprep.mubr.f32.mxu0 0.0
        %496 = vmatmul.mubr.f32.gmra.mrb[0].mxu0 %v311
        %v497 = vpop.f32.mrb[0].mxu0
        %v498 = vadd.f32 0.0, %v497
        %v499 = vpop.f32.mrb[0].mxu0
        %500 = vmatprep.mubr.f32.mxu0 0.0
        %501 = vmatmul.mubr.f32.gmra.mrb[0].mxu0 %v314
        %v502 = vpop.f32.mrb[0].mxu0
        %v503 = vadd.f32 0.0, %v502
        %v504 = vpop.f32.mrb[0].mxu0
        %505 = vmatprep.mubr.f32.mxu0 0.0
        %506 = vmatmul.mubr.f32.gmra.mrb[0].mxu0 %v317
        %v507 = vpop.f32.mrb[0].mxu0
        %v508 = vadd.f32 0.0, %v507
        %v509 = vpop.f32.mrb[0].mxu0
        %510 = vmatprep.mubr.f32.mxu0 0.0
        %511 = vmatmul.mubr.f32.gmra.mrb[0].mxu0 %v320
        %v512 = vpop.f32.mrb[0].mxu0
        %v513 = vadd.f32 0.0, %v512
        %v514 = vpop.f32.mrb[0].mxu0
        %515 = vmatprep.mubr.f32.mxu0 0.0
        %516 = vmatmul.mubr.f32.gmra.mrb[0].mxu0 %v323
        %v517 = vpop.f32.mrb[0].mxu0
        %v518 = vadd.f32 0.0, %v517
        %v519 = vpop.f32.mrb[0].mxu0
        %520 = vmatprep.mubr.f32.mxu0 0.0
        %521 = vmatmul.mubr.f32.gmra.mrb[0].mxu0 %v326
        %v522 = vpop.f32.mrb[0].mxu0
        %v523 = vadd.f32 0.0, %v522
        %v524 = vpop.f32.mrb[0].mxu0
        %525 = vmatprep.mubr.f32.mxu0 0.0
        %526 = vmatmul.mubr.f32.gmra.mrb[0].mxu0 %v329
        %v527 = vpop.f32.mrb[0].mxu0
        %v528 = vadd.f32 0.0, %v527
        %v529 = vpop.f32.mrb[0].mxu0
        %530 = vmatprep.mubr.f32.mxu0 0.0
        %531 = vmatmul.mubr.f32.gmra.mrb[0].mxu0 %v332
        %v532 = vpop.f32.mrb[0].mxu0
        %v533 = vadd.f32 0.0, %v532
        %v534 = vpop.f32.mrb[0].mxu0
        %535 = vmatprep.mubr.f32.mxu0 0.0
        %536 = vmatmul.mubr.f32.gmra.mrb[0].mxu0 %v335
        %v537 = vpop.f32.mrb[0].mxu0
        %v538 = vadd.f32 0.0, %v537
        %v539 = vpop.f32.mrb[0].mxu0
        %540 = vmatprep.mubr.f32.mxu0 0.0
        %541 = vmatmul.mubr.f32.gmra.mrb[0].mxu0 %v338
        %v542 = vpop.f32.mrb[0].mxu0
        %v543 = vadd.f32 0.0, %v542
        %v544 = vpop.f32.mrb[0].mxu0
        %545 = vmatprep.mubr.f32.mxu0 0.0
        %546 = vmatmul.mubr.f32.gmra.mrb[0].mxu0 %v341
        %v547 = vpop.f32.mrb[0].mxu0
        %v548 = vadd.f32 0.0, %v547
        %v549 = vpop.f32.mrb[0].mxu0
        %550 = vmatprep.mubr.f32.mxu0 0.0
        %551 = vmatmul.mubr.f32.gmra.mrb[0].mxu0 %v344
        %v552 = vpop.f32.mrb[0].mxu0
        %v553 = vadd.f32 0.0, %v552
        %v554 = vpop.f32.mrb[0].mxu0
        %555 = vmatprep.mubr.f32.mxu0 0.0
        %556 = vmatmul.mubr.f32.gmra.mrb[0].mxu0 %v347
        %v557 = vpop.f32.mrb[0].mxu0
        %v558 = vadd.f32 0.0, %v557
        %v559 = vpop.f32.mrb[0].mxu0
        %560 = vmatprep.mubr.f32.mxu0 0.0
        %561 = vmatmul.mubr.f32.gmra.mrb[0].mxu0 %v350
        %v562 = vpop.f32.mrb[0].mxu0
        %v563 = vadd.f32 0.0, %v562
        %v564 = vpop.f32.mrb[0].mxu0
        %565 = vdwg.mxu0
        %v566 = vadd.f32 %v261, %v423
        %v567 = vadd.f32 %v261, %v428
        %v568 = vadd.f32 %v261, %v433
        %v569 = vadd.f32 %v261, %v438
        %v570 = vadd.f32 %v261, %v443
        %v571 = vadd.f32 %v261, %v448
        %v572 = vadd.f32 %v261, %v453
        %v573 = vadd.f32 %v261, %v458
        %v574 = vadd.f32 %v261, %v463
        %v575 = vadd.f32 %v261, %v468
        %v576 = vadd.f32 %v261, %v473
        %v577 = vadd.f32 %v261, %v478
        %v578 = vadd.f32 %v261, %v483
        %v579 = vadd.f32 %v261, %v488
        %v580 = vadd.f32 %v261, %v493
        %v581 = vadd.f32 %v261, %v498
        %v582 = vadd.f32 %v261, %v503
        %v583 = vadd.f32 %v261, %v508
        %v584 = vadd.f32 %v261, %v513
        %v585 = vadd.f32 %v261, %v518
        %v586 = vadd.f32 %v261, %v523
        %v587 = vadd.f32 %v261, %v528
        %v588 = vadd.f32 %v261, %v533
        %v589 = vadd.f32 %v261, %v538
        %v590 = vadd.f32 %v261, %v543
        %v591 = vadd.f32 %v261, %v548
        %v592 = vadd.f32 %v261, %v553
        %v593 = vadd.f32 %v261, %v558
        %v594 = vadd.f32 %v261, %v563
        %s595 = scalar_lea.vmem %s1, 4
        %v596 = vld [vmem:[%s595] sm:$0xf]
        %vm597 = vcmask 1046528
        %v598 = vrot.slane %v223, 1
        %v599 = vrot.slane %v224, 1
        %v600 = vsel %vm597, %v598, %v599
        %v601 = vrot.slane %v225, 1
        %v602 = vsel %vm597, %v599, %v601
        %v603 = vrot.slane %v226, 1
        %v604 = vsel %vm597, %v601, %v603
        %v605 = vrot.slane %v227, 1
        %v606 = vsel %vm597, %v603, %v605
        %v607 = vrot.slane %v228, 1
        %v608 = vsel %vm597, %v605, %v607
        %v609 = vrot.slane %v229, 1
        %v610 = vsel %vm597, %v607, %v609
        %v611 = vrot.slane %v230, 1
        %v612 = vsel %vm597, %v609, %v611
        %v613 = vrot.slane %v231, 1
        %v614 = vsel %vm597, %v611, %v613
        %v615 = vrot.slane %v232, 1
        %v616 = vsel %vm597, %v613, %v615
        %v617 = vrot.slane %v233, 1
        %v618 = vsel %vm597, %v615, %v617
        %v619 = vrot.slane %v234, 1
        %v620 = vsel %vm597, %v617, %v619
        %v621 = vrot.slane %v235, 1
        %v622 = vsel %vm597, %v619, %v621
        %v623 = vrot.slane %v236, 1
        %v624 = vsel %vm597, %v621, %v623
        %v625 = vrot.slane %v237, 1
        %v626 = vsel %vm597, %v623, %v625
        %v627 = vrot.slane %v238, 1
        %v628 = vsel %vm597, %v625, %v627
        %v629 = vrot.slane %v239, 1
        %v630 = vsel %vm597, %v627, %v629
        %v631 = vrot.slane %v240, 1
        %v632 = vsel %vm597, %v629, %v631
        %v633 = vrot.slane %v241, 1
        %v634 = vsel %vm597, %v631, %v633
        %v635 = vrot.slane %v242, 1
        %v636 = vsel %vm597, %v633, %v635
        %v637 = vrot.slane %v243, 1
        %v638 = vsel %vm597, %v635, %v637
        %v639 = vrot.slane %v244, 1
        %v640 = vsel %vm597, %v637, %v639
        %v641 = vrot.slane %v245, 1
        %v642 = vsel %vm597, %v639, %v641
        %v643 = vrot.slane %v246, 1
        %v644 = vsel %vm597, %v641, %v643
        %v645 = vrot.slane %v247, 1
        %v646 = vsel %vm597, %v643, %v645
        %v647 = vrot.slane %v248, 1
        %v648 = vsel %vm597, %v645, %v647
        %v649 = vrot.slane %v249, 1
        %v650 = vsel %vm597, %v647, %v649
        %v651 = vrot.slane %v250, 1
        %v652 = vsel %vm597, %v649, %v651
        %v653 = vrot.slane %v251, 1
        %v654 = vsel %vm597, %v651, %v653
        %v655 = vsel %vm264, %v600, 0
        %v657 = vsel %vm264, %v602, 0
        %v659 = vsel %vm264, %v604, 0
        %v661 = vsel %vm264, %v606, 0
        %v663 = vsel %vm264, %v608, 0
        %v665 = vsel %vm264, %v610, 0
        %v667 = vsel %vm264, %v612, 0
        %v669 = vsel %vm264, %v614, 0
        %v671 = vsel %vm264, %v616, 0
        %v673 = vsel %vm264, %v618, 0
        %v675 = vsel %vm264, %v620, 0
        %v677 = vsel %vm264, %v622, 0
        %v679 = vsel %vm264, %v624, 0
        %v681 = vsel %vm264, %v626, 0
        %v683 = vsel %vm264, %v628, 0
        %v685 = vsel %vm264, %v630, 0
        %v687 = vsel %vm264, %v632, 0
        %v689 = vsel %vm264, %v634, 0
        %v691 = vsel %vm264, %v636, 0
        %v693 = vsel %vm264, %v638, 0
        %v695 = vsel %vm264, %v640, 0
        %v697 = vsel %vm264, %v642, 0
        %v699 = vsel %vm264, %v644, 0
        %v701 = vsel %vm264, %v646, 0
        %v703 = vsel %vm264, %v648, 0
        %v705 = vsel %vm264, %v650, 0
        %v707 = vsel %vm264, %v652, 0
        %v709 = vsel %vm264, %v654, 0
        %v711 = vsel %vm264, %v653, 0
        %v714 = vsel %vm352, %v596, 0
        %716 = vmatprep.subr.mxu0 0.0
        %717 = vmatpush1.msra.mxu0 %v714
        %718 = vmatprep.subr.mxu0 0.0
        %719 = vmatpush1.msra.mxu0 0.0
        %720 = vmatprep.subr.mxu0 0.0
        %721 = vmatpush1.msra.mxu0 0.0
        %722 = vmatprep.subr.mxu0 0.0
        %723 = vmatpush1.msra.mxu0 0.0
        %724 = vmatprep.subr.mxu0 0.0
        %725 = vmatpush1.msra.mxu0 0.0
        %726 = vmatprep.subr.mxu0 0.0
        %727 = vmatpush1.msra.mxu0 0.0
        %728 = vmatprep.subr.mxu0 0.0
        %729 = vmatpush1.msra.mxu0 0.0
        %730 = vmatprep.subr.mxu0 0.0
        %731 = vmatpush1.msra.mxu0 0.0
        %732 = vmatprep.subr.mxu0 0.0
        %733 = vmatpush1.msra.mxu0 0.0
        %734 = vmatprep.subr.mxu0 0.0
        %735 = vmatpush1.msra.mxu0 0.0
        %736 = vmatprep.subr.mxu0 0.0
        %737 = vmatpush1.msra.mxu0 0.0
        %738 = vmatprep.subr.mxu0 0.0
        %739 = vmatpush1.msra.mxu0 0.0
        %740 = vmatprep.subr.mxu0 0.0
        %741 = vmatpush1.msra.mxu0 0.0
        %742 = vmatprep.subr.mxu0 0.0
        %743 = vmatpush1.msra.mxu0 0.0
        %744 = vmatprep.subr.mxu0 0.0
        %745 = vmatpush1.msra.mxu0 0.0
        %746 = vmatprep.subr.mxu0 0.0
        %747 = vmatpush1.msra.mxu0 0.0
        %748 = vmatprep.subr.mxu0 0.0
        %749 = vmatpush1.msra.mxu0 0.0
        %750 = vmatprep.subr.mxu0 0.0
        %751 = vmatpush1.msra.mxu0 0.0
        %752 = vmatprep.subr.mxu0 0.0
        %753 = vmatpush1.msra.mxu0 0.0
        %754 = vmatprep.subr.mxu0 0.0
        %755 = vmatpush1.msra.mxu0 0.0
        %756 = vmatprep.subr.mxu0 0.0
        %757 = vmatpush1.msra.mxu0 0.0
        %758 = vmatprep.subr.mxu0 0.0
        %759 = vmatpush1.msra.mxu0 0.0
        %760 = vmatprep.subr.mxu0 0.0
        %761 = vmatpush1.msra.mxu0 0.0
        %762 = vmatprep.subr.mxu0 0.0
        %763 = vmatpush1.msra.mxu0 0.0
        %764 = vmatprep.subr.mxu0 0.0
        %765 = vmatpush1.msra.mxu0 0.0
        %766 = vmatprep.subr.mxu0 0.0
        %767 = vmatpush1.msra.mxu0 0.0
        %768 = vmatprep.subr.mxu0 0.0
        %769 = vmatpush1.msra.mxu0 0.0
        %770 = vmatprep.subr.mxu0 0.0
        %771 = vmatpush1.msra.mxu0 0.0
        %772 = vmatprep.subr.mxu0 0.0
        %773 = vmatpush1.msra.mxu0 0.0
        %774 = vmatprep.subr.mxu0 0.0
        %775 = vmatpush1.msra.mxu0 0.0
        %776 = vmatprep.subr.mxu0 0.0
        %777 = vmatpush1.msra.mxu0 0.0
        %778 = vmatprep.subr.mxu0 0.0
        %779 = vmatpush1.msra.mxu0 0.0
        %780 = vmatprep.mubr.f32.mxu0 0.0
        %781 = vmatmul.mubr.f32.gmra.mrb[0].mxu0 %v655
        %v782 = vpop.f32.mrb[0].mxu0
        %v783 = vadd.f32 0.0, %v782
        %v784 = vpop.f32.mrb[0].mxu0
        %785 = vmatprep.mubr.f32.mxu0 0.0
        %786 = vmatmul.mubr.f32.gmra.mrb[0].mxu0 %v657
        %v787 = vpop.f32.mrb[0].mxu0
        %v788 = vadd.f32 0.0, %v787
        %v789 = vpop.f32.mrb[0].mxu0
        %790 = vmatprep.mubr.f32.mxu0 0.0
        %791 = vmatmul.mubr.f32.gmra.mrb[0].mxu0 %v659
        %v792 = vpop.f32.mrb[0].mxu0
        %v793 = vadd.f32 0.0, %v792
        %v794 = vpop.f32.mrb[0].mxu0
        %795 = vmatprep.mubr.f32.mxu0 0.0
        %796 = vmatmul.mubr.f32.gmra.mrb[0].mxu0 %v661
        %v797 = vpop.f32.mrb[0].mxu0
        %v798 = vadd.f32 0.0, %v797
        %v799 = vpop.f32.mrb[0].mxu0
        %800 = vmatprep.mubr.f32.mxu0 0.0
        %801 = vmatmul.mubr.f32.gmra.mrb[0].mxu0 %v663
        %v802 = vpop.f32.mrb[0].mxu0
        %v803 = vadd.f32 0.0, %v802
        %v804 = vpop.f32.mrb[0].mxu0
        %805 = vmatprep.mubr.f32.mxu0 0.0
        %806 = vmatmul.mubr.f32.gmra.mrb[0].mxu0 %v665
        %v807 = vpop.f32.mrb[0].mxu0
        %v808 = vadd.f32 0.0, %v807
        %v809 = vpop.f32.mrb[0].mxu0
        %810 = vmatprep.mubr.f32.mxu0 0.0
        %811 = vmatmul.mubr.f32.gmra.mrb[0].mxu0 %v667
        %v812 = vpop.f32.mrb[0].mxu0
        %v813 = vadd.f32 0.0, %v812
        %v814 = vpop.f32.mrb[0].mxu0
        %815 = vmatprep.mubr.f32.mxu0 0.0
        %816 = vmatmul.mubr.f32.gmra.mrb[0].mxu0 %v669
        %v817 = vpop.f32.mrb[0].mxu0
        %v818 = vadd.f32 0.0, %v817
        %v819 = vpop.f32.mrb[0].mxu0
        %820 = vmatprep.mubr.f32.mxu0 0.0
        %821 = vmatmul.mubr.f32.gmra.mrb[0].mxu0 %v671
        %v822 = vpop.f32.mrb[0].mxu0
        %v823 = vadd.f32 0.0, %v822
        %v824 = vpop.f32.mrb[0].mxu0
        %825 = vmatprep.mubr.f32.mxu0 0.0
        %826 = vmatmul.mubr.f32.gmra.mrb[0].mxu0 %v673
        %v827 = vpop.f32.mrb[0].mxu0
        %v828 = vadd.f32 0.0, %v827
        %v829 = vpop.f32.mrb[0].mxu0
        %830 = vmatprep.mubr.f32.mxu0 0.0
        %831 = vmatmul.mubr.f32.gmra.mrb[0].mxu0 %v675
        %v832 = vpop.f32.mrb[0].mxu0
        %v833 = vadd.f32 0.0, %v832
        %v834 = vpop.f32.mrb[0].mxu0
        %835 = vmatprep.mubr.f32.mxu0 0.0
        %836 = vmatmul.mubr.f32.gmra.mrb[0].mxu0 %v677
        %v837 = vpop.f32.mrb[0].mxu0
        %v838 = vadd.f32 0.0, %v837
        %v839 = vpop.f32.mrb[0].mxu0
        %840 = vmatprep.mubr.f32.mxu0 0.0
        %841 = vmatmul.mubr.f32.gmra.mrb[0].mxu0 %v679
        %v842 = vpop.f32.mrb[0].mxu0
        %v843 = vadd.f32 0.0, %v842
        %v844 = vpop.f32.mrb[0].mxu0
        %845 = vmatprep.mubr.f32.mxu0 0.0
        %846 = vmatmul.mubr.f32.gmra.mrb[0].mxu0 %v681
        %v847 = vpop.f32.mrb[0].mxu0
        %v848 = vadd.f32 0.0, %v847
        %v849 = vpop.f32.mrb[0].mxu0
        %850 = vmatprep.mubr.f32.mxu0 0.0
        %851 = vmatmul.mubr.f32.gmra.mrb[0].mxu0 %v683
        %v852 = vpop.f32.mrb[0].mxu0
        %v853 = vadd.f32 0.0, %v852
        %v854 = vpop.f32.mrb[0].mxu0
        %855 = vmatprep.mubr.f32.mxu0 0.0
        %856 = vmatmul.mubr.f32.gmra.mrb[0].mxu0 %v685
        %v857 = vpop.f32.mrb[0].mxu0
        %v858 = vadd.f32 0.0, %v857
        %v859 = vpop.f32.mrb[0].mxu0
        %860 = vmatprep.mubr.f32.mxu0 0.0
        %861 = vmatmul.mubr.f32.gmra.mrb[0].mxu0 %v687
        %v862 = vpop.f32.mrb[0].mxu0
        %v863 = vadd.f32 0.0, %v862
        %v864 = vpop.f32.mrb[0].mxu0
        %865 = vmatprep.mubr.f32.mxu0 0.0
        %866 = vmatmul.mubr.f32.gmra.mrb[0].mxu0 %v689
        %v867 = vpop.f32.mrb[0].mxu0
        %v868 = vadd.f32 0.0, %v867
        %v869 = vpop.f32.mrb[0].mxu0
        %870 = vmatprep.mubr.f32.mxu0 0.0
        %871 = vmatmul.mubr.f32.gmra.mrb[0].mxu0 %v691
        %v872 = vpop.f32.mrb[0].mxu0
        %v873 = vadd.f32 0.0, %v872
        %v874 = vpop.f32.mrb[0].mxu0
        %875 = vmatprep.mubr.f32.mxu0 0.0
        %876 = vmatmul.mubr.f32.gmra.mrb[0].mxu0 %v693
        %v877 = vpop.f32.mrb[0].mxu0
        %v878 = vadd.f32 0.0, %v877
        %v879 = vpop.f32.mrb[0].mxu0
        %880 = vmatprep.mubr.f32.mxu0 0.0
        %881 = vmatmul.mubr.f32.gmra.mrb[0].mxu0 %v695
        %v882 = vpop.f32.mrb[0].mxu0
        %v883 = vadd.f32 0.0, %v882
        %v884 = vpop.f32.mrb[0].mxu0
        %885 = vmatprep.mubr.f32.mxu0 0.0
        %886 = vmatmul.mubr.f32.gmra.mrb[0].mxu0 %v697
        %v887 = vpop.f32.mrb[0].mxu0
        %v888 = vadd.f32 0.0, %v887
        %v889 = vpop.f32.mrb[0].mxu0
        %890 = vmatprep.mubr.f32.mxu0 0.0
        %891 = vmatmul.mubr.f32.gmra.mrb[0].mxu0 %v699
        %v892 = vpop.f32.mrb[0].mxu0
        %v893 = vadd.f32 0.0, %v892
        %v894 = vpop.f32.mrb[0].mxu0
        %895 = vmatprep.mubr.f32.mxu0 0.0
        %896 = vmatmul.mubr.f32.gmra.mrb[0].mxu0 %v701
        %v897 = vpop.f32.mrb[0].mxu0
        %v898 = vadd.f32 0.0, %v897
        %v899 = vpop.f32.mrb[0].mxu0
        %900 = vmatprep.mubr.f32.mxu0 0.0
        %901 = vmatmul.mubr.f32.gmra.mrb[0].mxu0 %v703
        %v902 = vpop.f32.mrb[0].mxu0
        %v903 = vadd.f32 0.0, %v902
        %v904 = vpop.f32.mrb[0].mxu0
        %905 = vmatprep.mubr.f32.mxu0 0.0
        %906 = vmatmul.mubr.f32.gmra.mrb[0].mxu0 %v705
        %v907 = vpop.f32.mrb[0].mxu0
        %v908 = vadd.f32 0.0, %v907
        %v909 = vpop.f32.mrb[0].mxu0
        %910 = vmatprep.mubr.f32.mxu0 0.0
        %911 = vmatmul.mubr.f32.gmra.mrb[0].mxu0 %v707
        %v912 = vpop.f32.mrb[0].mxu0
        %v913 = vadd.f32 0.0, %v912
        %v914 = vpop.f32.mrb[0].mxu0
        %915 = vmatprep.mubr.f32.mxu0 0.0
        %916 = vmatmul.mubr.f32.gmra.mrb[0].mxu0 %v709
        %v917 = vpop.f32.mrb[0].mxu0
        %v918 = vadd.f32 0.0, %v917
        %v919 = vpop.f32.mrb[0].mxu0
        %920 = vmatprep.mubr.f32.mxu0 0.0
        %921 = vmatmul.mubr.f32.gmra.mrb[0].mxu0 %v711
        %v922 = vpop.f32.mrb[0].mxu0
        %v923 = vadd.f32 0.0, %v922
        %v924 = vpop.f32.mrb[0].mxu0
        %925 = vdwg.mxu0
        %v926 = vadd.f32 %v566, %v783
        %v927 = vadd.f32 %v567, %v788
        %v928 = vadd.f32 %v568, %v793
        %v929 = vadd.f32 %v569, %v798
        %v930 = vadd.f32 %v570, %v803
        %v931 = vadd.f32 %v571, %v808
        %v932 = vadd.f32 %v572, %v813
        %v933 = vadd.f32 %v573, %v818
        %v934 = vadd.f32 %v574, %v823
        %v935 = vadd.f32 %v575, %v828
        %v936 = vadd.f32 %v576, %v833
        %v937 = vadd.f32 %v577, %v838
        %v938 = vadd.f32 %v578, %v843
        %v939 = vadd.f32 %v579, %v848
        %v940 = vadd.f32 %v580, %v853
        %v941 = vadd.f32 %v581, %v858
        %v942 = vadd.f32 %v582, %v863
        %v943 = vadd.f32 %v583, %v868
        %v944 = vadd.f32 %v584, %v873
        %v945 = vadd.f32 %v585, %v878
        %v946 = vadd.f32 %v586, %v883
        %v947 = vadd.f32 %v587, %v888
        %v948 = vadd.f32 %v588, %v893
        %v949 = vadd.f32 %v589, %v898
        %v950 = vadd.f32 %v590, %v903
        %v951 = vadd.f32 %v591, %v908
        %v952 = vadd.f32 %v592, %v913
        %v953 = vadd.f32 %v593, %v918
        %v954 = vadd.f32 %v594, %v923
        %s955 = scalar_lea.vmem %s1, 8
        %v956 = vld [vmem:[%s955] sm:$0xf]
        %vm957 = vcmask 1045504
        %v958 = vrot.slane %v223, 2
        %v959 = vrot.slane %v224, 2
        %v960 = vsel %vm957, %v958, %v959
        %v961 = vrot.slane %v225, 2
        %v962 = vsel %vm957, %v959, %v961
        %v963 = vrot.slane %v226, 2
        %v964 = vsel %vm957, %v961, %v963
        %v965 = vrot.slane %v227, 2
        %v966 = vsel %vm957, %v963, %v965
        %v967 = vrot.slane %v228, 2
        %v968 = vsel %vm957, %v965, %v967
        %v969 = vrot.slane %v229, 2
        %v970 = vsel %vm957, %v967, %v969
        %v971 = vrot.slane %v230, 2
        %v972 = vsel %vm957, %v969, %v971
        %v973 = vrot.slane %v231, 2
        %v974 = vsel %vm957, %v971, %v973
        %v975 = vrot.slane %v232, 2
        %v976 = vsel %vm957, %v973, %v975
        %v977 = vrot.slane %v233, 2
        %v978 = vsel %vm957, %v975, %v977
        %v979 = vrot.slane %v234, 2
        %v980 = vsel %vm957, %v977, %v979
        %v981 = vrot.slane %v235, 2
        %v982 = vsel %vm957, %v979, %v981
        %v983 = vrot.slane %v236, 2
        %v984 = vsel %vm957, %v981, %v983
        %v985 = vrot.slane %v237, 2
        %v986 = vsel %vm957, %v983, %v985
        %v987 = vrot.slane %v238, 2
        %v988 = vsel %vm957, %v985, %v987
        %v989 = vrot.slane %v239, 2
        %v990 = vsel %vm957, %v987, %v989
        %v991 = vrot.slane %v240, 2
        %v992 = vsel %vm957, %v989, %v991
        %v993 = vrot.slane %v241, 2
        %v994 = vsel %vm957, %v991, %v993
        %v995 = vrot.slane %v242, 2
        %v996 = vsel %vm957, %v993, %v995
        %v997 = vrot.slane %v243, 2
        %v998 = vsel %vm957, %v995, %v997
        %v999 = vrot.slane %v244, 2
        %v1000 = vsel %vm957, %v997, %v999
        %v1001 = vrot.slane %v245, 2
        %v1002 = vsel %vm957, %v999, %v1001
        %v1003 = vrot.slane %v246, 2
        %v1004 = vsel %vm957, %v1001, %v1003
        %v1005 = vrot.slane %v247, 2
        %v1006 = vsel %vm957, %v1003, %v1005
        %v1007 = vrot.slane %v248, 2
        %v1008 = vsel %vm957, %v1005, %v1007
        %v1009 = vrot.slane %v249, 2
        %v1010 = vsel %vm957, %v1007, %v1009
        %v1011 = vrot.slane %v250, 2
        %v1012 = vsel %vm957, %v1009, %v1011
        %v1013 = vrot.slane %v251, 2
        %v1014 = vsel %vm957, %v1011, %v1013
        %v1015 = vsel %vm264, %v960, 0
        %v1017 = vsel %vm264, %v962, 0
        %v1019 = vsel %vm264, %v964, 0
        %v1021 = vsel %vm264, %v966, 0
        %v1023 = vsel %vm264, %v968, 0
        %v1025 = vsel %vm264, %v970, 0
        %v1027 = vsel %vm264, %v972, 0
        %v1029 = vsel %vm264, %v974, 0
        %v1031 = vsel %vm264, %v976, 0
        %v1033 = vsel %vm264, %v978, 0
        %v1035 = vsel %vm264, %v980, 0
        %v1037 = vsel %vm264, %v982, 0
        %v1039 = vsel %vm264, %v984, 0
        %v1041 = vsel %vm264, %v986, 0
        %v1043 = vsel %vm264, %v988, 0
        %v1045 = vsel %vm264, %v990, 0
        %v1047 = vsel %vm264, %v992, 0
        %v1049 = vsel %vm264, %v994, 0
        %v1051 = vsel %vm264, %v996, 0
        %v1053 = vsel %vm264, %v998, 0
        %v1055 = vsel %vm264, %v1000, 0
        %v1057 = vsel %vm264, %v1002, 0
        %v1059 = vsel %vm264, %v1004, 0
        %v1061 = vsel %vm264, %v1006, 0
        %v1063 = vsel %vm264, %v1008, 0
        %v1065 = vsel %vm264, %v1010, 0
        %v1067 = vsel %vm264, %v1012, 0
        %v1069 = vsel %vm264, %v1014, 0
        %v1071 = vsel %vm264, %v1013, 0
        %v1074 = vsel %vm352, %v956, 0
        %1076 = vmatprep.subr.mxu0 0.0
        %1077 = vmatpush1.msra.mxu0 %v1074
        %1078 = vmatprep.subr.mxu0 0.0
        %1079 = vmatpush1.msra.mxu0 0.0
        %1080 = vmatprep.subr.mxu0 0.0
        %1081 = vmatpush1.msra.mxu0 0.0
        %1082 = vmatprep.subr.mxu0 0.0
        %1083 = vmatpush1.msra.mxu0 0.0
        %1084 = vmatprep.subr.mxu0 0.0
        %1085 = vmatpush1.msra.mxu0 0.0
        %1086 = vmatprep.subr.mxu0 0.0
        %1087 = vmatpush1.msra.mxu0 0.0
        %1088 = vmatprep.subr.mxu0 0.0
        %1089 = vmatpush1.msra.mxu0 0.0
        %1090 = vmatprep.subr.mxu0 0.0
        %1091 = vmatpush1.msra.mxu0 0.0
        %1092 = vmatprep.subr.mxu0 0.0
        %1093 = vmatpush1.msra.mxu0 0.0
        %1094 = vmatprep.subr.mxu0 0.0
        %1095 = vmatpush1.msra.mxu0 0.0
        %1096 = vmatprep.subr.mxu0 0.0
        %1097 = vmatpush1.msra.mxu0 0.0
        %1098 = vmatprep.subr.mxu0 0.0
        %1099 = vmatpush1.msra.mxu0 0.0
        %1100 = vmatprep.subr.mxu0 0.0
        %1101 = vmatpush1.msra.mxu0 0.0
        %1102 = vmatprep.subr.mxu0 0.0
        %1103 = vmatpush1.msra.mxu0 0.0
        %1104 = vmatprep.subr.mxu0 0.0
        %1105 = vmatpush1.msra.mxu0 0.0
        %1106 = vmatprep.subr.mxu0 0.0
        %1107 = vmatpush1.msra.mxu0 0.0
        %1108 = vmatprep.subr.mxu0 0.0
        %1109 = vmatpush1.msra.mxu0 0.0
        %1110 = vmatprep.subr.mxu0 0.0
        %1111 = vmatpush1.msra.mxu0 0.0
        %1112 = vmatprep.subr.mxu0 0.0
        %1113 = vmatpush1.msra.mxu0 0.0
        %1114 = vmatprep.subr.mxu0 0.0
        %1115 = vmatpush1.msra.mxu0 0.0
        %1116 = vmatprep.subr.mxu0 0.0
        %1117 = vmatpush1.msra.mxu0 0.0
        %1118 = vmatprep.subr.mxu0 0.0
        %1119 = vmatpush1.msra.mxu0 0.0
        %1120 = vmatprep.subr.mxu0 0.0
        %1121 = vmatpush1.msra.mxu0 0.0
        %1122 = vmatprep.subr.mxu0 0.0
        %1123 = vmatpush1.msra.mxu0 0.0
        %1124 = vmatprep.subr.mxu0 0.0
        %1125 = vmatpush1.msra.mxu0 0.0
        %1126 = vmatprep.subr.mxu0 0.0
        %1127 = vmatpush1.msra.mxu0 0.0
        %1128 = vmatprep.subr.mxu0 0.0
        %1129 = vmatpush1.msra.mxu0 0.0
        %1130 = vmatprep.subr.mxu0 0.0
        %1131 = vmatpush1.msra.mxu0 0.0
        %1132 = vmatprep.subr.mxu0 0.0
        %1133 = vmatpush1.msra.mxu0 0.0
        %1134 = vmatprep.subr.mxu0 0.0
        %1135 = vmatpush1.msra.mxu0 0.0
        %1136 = vmatprep.subr.mxu0 0.0
        %1137 = vmatpush1.msra.mxu0 0.0
        %1138 = vmatprep.subr.mxu0 0.0
        %1139 = vmatpush1.msra.mxu0 0.0
        %1140 = vmatprep.mubr.f32.mxu0 0.0
        %1141 = vmatmul.mubr.f32.gmra.mrb[0].mxu0 %v1015
        %v1142 = vpop.f32.mrb[0].mxu0
        %v1143 = vadd.f32 0.0, %v1142
        %v1144 = vpop.f32.mrb[0].mxu0
        %1145 = vmatprep.mubr.f32.mxu0 0.0
        %1146 = vmatmul.mubr.f32.gmra.mrb[0].mxu0 %v1017
        %v1147 = vpop.f32.mrb[0].mxu0
        %v1148 = vadd.f32 0.0, %v1147
        %v1149 = vpop.f32.mrb[0].mxu0
        %1150 = vmatprep.mubr.f32.mxu0 0.0
        %1151 = vmatmul.mubr.f32.gmra.mrb[0].mxu0 %v1019
        %v1152 = vpop.f32.mrb[0].mxu0
        %v1153 = vadd.f32 0.0, %v1152
        %v1154 = vpop.f32.mrb[0].mxu0
        %1155 = vmatprep.mubr.f32.mxu0 0.0
        %1156 = vmatmul.mubr.f32.gmra.mrb[0].mxu0 %v1021
        %v1157 = vpop.f32.mrb[0].mxu0
        %v1158 = vadd.f32 0.0, %v1157
        %v1159 = vpop.f32.mrb[0].mxu0
        %1160 = vmatprep.mubr.f32.mxu0 0.0
        %1161 = vmatmul.mubr.f32.gmra.mrb[0].mxu0 %v1023
        %v1162 = vpop.f32.mrb[0].mxu0
        %v1163 = vadd.f32 0.0, %v1162
        %v1164 = vpop.f32.mrb[0].mxu0
        %1165 = vmatprep.mubr.f32.mxu0 0.0
        %1166 = vmatmul.mubr.f32.gmra.mrb[0].mxu0 %v1025
        %v1167 = vpop.f32.mrb[0].mxu0
        %v1168 = vadd.f32 0.0, %v1167
        %v1169 = vpop.f32.mrb[0].mxu0
        %1170 = vmatprep.mubr.f32.mxu0 0.0
        %1171 = vmatmul.mubr.f32.gmra.mrb[0].mxu0 %v1027
        %v1172 = vpop.f32.mrb[0].mxu0
        %v1173 = vadd.f32 0.0, %v1172
        %v1174 = vpop.f32.mrb[0].mxu0
        %1175 = vmatprep.mubr.f32.mxu0 0.0
        %1176 = vmatmul.mubr.f32.gmra.mrb[0].mxu0 %v1029
        %v1177 = vpop.f32.mrb[0].mxu0
        %v1178 = vadd.f32 0.0, %v1177
        %v1179 = vpop.f32.mrb[0].mxu0
        %1180 = vmatprep.mubr.f32.mxu0 0.0
        %1181 = vmatmul.mubr.f32.gmra.mrb[0].mxu0 %v1031
        %v1182 = vpop.f32.mrb[0].mxu0
        %v1183 = vadd.f32 0.0, %v1182
        %v1184 = vpop.f32.mrb[0].mxu0
        %1185 = vmatprep.mubr.f32.mxu0 0.0
        %1186 = vmatmul.mubr.f32.gmra.mrb[0].mxu0 %v1033
        %v1187 = vpop.f32.mrb[0].mxu0
        %v1188 = vadd.f32 0.0, %v1187
        %v1189 = vpop.f32.mrb[0].mxu0
        %1190 = vmatprep.mubr.f32.mxu0 0.0
        %1191 = vmatmul.mubr.f32.gmra.mrb[0].mxu0 %v1035
        %v1192 = vpop.f32.mrb[0].mxu0
        %v1193 = vadd.f32 0.0, %v1192
        %v1194 = vpop.f32.mrb[0].mxu0
        %1195 = vmatprep.mubr.f32.mxu0 0.0
        %1196 = vmatmul.mubr.f32.gmra.mrb[0].mxu0 %v1037
        %v1197 = vpop.f32.mrb[0].mxu0
        %v1198 = vadd.f32 0.0, %v1197
        %v1199 = vpop.f32.mrb[0].mxu0
        %1200 = vmatprep.mubr.f32.mxu0 0.0
        %1201 = vmatmul.mubr.f32.gmra.mrb[0].mxu0 %v1039
        %v1202 = vpop.f32.mrb[0].mxu0
        %v1203 = vadd.f32 0.0, %v1202
        %v1204 = vpop.f32.mrb[0].mxu0
        %1205 = vmatprep.mubr.f32.mxu0 0.0
        %1206 = vmatmul.mubr.f32.gmra.mrb[0].mxu0 %v1041
        %v1207 = vpop.f32.mrb[0].mxu0
        %v1208 = vadd.f32 0.0, %v1207
        %v1209 = vpop.f32.mrb[0].mxu0
        %1210 = vmatprep.mubr.f32.mxu0 0.0
        %1211 = vmatmul.mubr.f32.gmra.mrb[0].mxu0 %v1043
        %v1212 = vpop.f32.mrb[0].mxu0
        %v1213 = vadd.f32 0.0, %v1212
        %v1214 = vpop.f32.mrb[0].mxu0
        %1215 = vmatprep.mubr.f32.mxu0 0.0
        %1216 = vmatmul.mubr.f32.gmra.mrb[0].mxu0 %v1045
        %v1217 = vpop.f32.mrb[0].mxu0
        %v1218 = vadd.f32 0.0, %v1217
        %v1219 = vpop.f32.mrb[0].mxu0
        %1220 = vmatprep.mubr.f32.mxu0 0.0
        %1221 = vmatmul.mubr.f32.gmra.mrb[0].mxu0 %v1047
        %v1222 = vpop.f32.mrb[0].mxu0
        %v1223 = vadd.f32 0.0, %v1222
        %v1224 = vpop.f32.mrb[0].mxu0
        %1225 = vmatprep.mubr.f32.mxu0 0.0
        %1226 = vmatmul.mubr.f32.gmra.mrb[0].mxu0 %v1049
        %v1227 = vpop.f32.mrb[0].mxu0
        %v1228 = vadd.f32 0.0, %v1227
        %v1229 = vpop.f32.mrb[0].mxu0
        %1230 = vmatprep.mubr.f32.mxu0 0.0
        %1231 = vmatmul.mubr.f32.gmra.mrb[0].mxu0 %v1051
        %v1232 = vpop.f32.mrb[0].mxu0
        %v1233 = vadd.f32 0.0, %v1232
        %v1234 = vpop.f32.mrb[0].mxu0
        %1235 = vmatprep.mubr.f32.mxu0 0.0
        %1236 = vmatmul.mubr.f32.gmra.mrb[0].mxu0 %v1053
        %v1237 = vpop.f32.mrb[0].mxu0
        %v1238 = vadd.f32 0.0, %v1237
        %v1239 = vpop.f32.mrb[0].mxu0
        %1240 = vmatprep.mubr.f32.mxu0 0.0
        %1241 = vmatmul.mubr.f32.gmra.mrb[0].mxu0 %v1055
        %v1242 = vpop.f32.mrb[0].mxu0
        %v1243 = vadd.f32 0.0, %v1242
        %v1244 = vpop.f32.mrb[0].mxu0
        %1245 = vmatprep.mubr.f32.mxu0 0.0
        %1246 = vmatmul.mubr.f32.gmra.mrb[0].mxu0 %v1057
        %v1247 = vpop.f32.mrb[0].mxu0
        %v1248 = vadd.f32 0.0, %v1247
        %v1249 = vpop.f32.mrb[0].mxu0
        %1250 = vmatprep.mubr.f32.mxu0 0.0
        %1251 = vmatmul.mubr.f32.gmra.mrb[0].mxu0 %v1059
        %v1252 = vpop.f32.mrb[0].mxu0
        %v1253 = vadd.f32 0.0, %v1252
        %v1254 = vpop.f32.mrb[0].mxu0
        %1255 = vmatprep.mubr.f32.mxu0 0.0
        %1256 = vmatmul.mubr.f32.gmra.mrb[0].mxu0 %v1061
        %v1257 = vpop.f32.mrb[0].mxu0
        %v1258 = vadd.f32 0.0, %v1257
        %v1259 = vpop.f32.mrb[0].mxu0
        %1260 = vmatprep.mubr.f32.mxu0 0.0
        %1261 = vmatmul.mubr.f32.gmra.mrb[0].mxu0 %v1063
        %v1262 = vpop.f32.mrb[0].mxu0
        %v1263 = vadd.f32 0.0, %v1262
        %v1264 = vpop.f32.mrb[0].mxu0
        %1265 = vmatprep.mubr.f32.mxu0 0.0
        %1266 = vmatmul.mubr.f32.gmra.mrb[0].mxu0 %v1065
        %v1267 = vpop.f32.mrb[0].mxu0
        %v1268 = vadd.f32 0.0, %v1267
        %v1269 = vpop.f32.mrb[0].mxu0
        %1270 = vmatprep.mubr.f32.mxu0 0.0
        %1271 = vmatmul.mubr.f32.gmra.mrb[0].mxu0 %v1067
        %v1272 = vpop.f32.mrb[0].mxu0
        %v1273 = vadd.f32 0.0, %v1272
        %v1274 = vpop.f32.mrb[0].mxu0
        %1275 = vmatprep.mubr.f32.mxu0 0.0
        %1276 = vmatmul.mubr.f32.gmra.mrb[0].mxu0 %v1069
        %v1277 = vpop.f32.mrb[0].mxu0
        %v1278 = vadd.f32 0.0, %v1277
        %v1279 = vpop.f32.mrb[0].mxu0
        %1280 = vmatprep.mubr.f32.mxu0 0.0
        %1281 = vmatmul.mubr.f32.gmra.mrb[0].mxu0 %v1071
        %v1282 = vpop.f32.mrb[0].mxu0
        %v1283 = vadd.f32 0.0, %v1282
        %v1284 = vpop.f32.mrb[0].mxu0
        %1285 = vdwg.mxu0
        %v1286 = vadd.f32 %v926, %v1143
        %v1287 = vadd.f32 %v927, %v1148
        %v1288 = vadd.f32 %v928, %v1153
        %v1289 = vadd.f32 %v929, %v1158
        %v1290 = vadd.f32 %v930, %v1163
        %v1291 = vadd.f32 %v931, %v1168
        %v1292 = vadd.f32 %v932, %v1173
        %v1293 = vadd.f32 %v933, %v1178
        %v1294 = vadd.f32 %v934, %v1183
        %v1295 = vadd.f32 %v935, %v1188
        %v1296 = vadd.f32 %v936, %v1193
        %v1297 = vadd.f32 %v937, %v1198
        %v1298 = vadd.f32 %v938, %v1203
        %v1299 = vadd.f32 %v939, %v1208
        %v1300 = vadd.f32 %v940, %v1213
        %v1301 = vadd.f32 %v941, %v1218
        %v1302 = vadd.f32 %v942, %v1223
        %v1303 = vadd.f32 %v943, %v1228
        %v1304 = vadd.f32 %v944, %v1233
        %v1305 = vadd.f32 %v945, %v1238
        %v1306 = vadd.f32 %v946, %v1243
        %v1307 = vadd.f32 %v947, %v1248
        %v1308 = vadd.f32 %v948, %v1253
        %v1309 = vadd.f32 %v949, %v1258
        %v1310 = vadd.f32 %v950, %v1263
        %v1311 = vadd.f32 %v951, %v1268
        %v1312 = vadd.f32 %v952, %v1273
        %v1313 = vadd.f32 %v953, %v1278
        %v1314 = vadd.f32 %v954, %v1283
        %s1315 = scalar_lea.vmem %s1, 12
        %v1316 = vld [vmem:[%s1315] sm:$0xf]
        %v1318 = vsel %vm264, %v252, 0
        %v1321 = vsel %vm264, %v253, 0
        %v1324 = vsel %vm352, %v1316, 0
        %1326 = vmatprep.subr.mxu0 0.0
        %1327 = vmatpush1.msra.mxu0 %v1324
        %1328 = vmatprep.subr.mxu0 0.0
        %1329 = vmatpush1.msra.mxu0 0.0
        %1330 = vmatprep.subr.mxu0 0.0
        %1331 = vmatpush1.msra.mxu0 0.0
        %1332 = vmatprep.subr.mxu0 0.0
        %1333 = vmatpush1.msra.mxu0 0.0
        %1334 = vmatprep.subr.mxu0 0.0
        %1335 = vmatpush1.msra.mxu0 0.0
        %1336 = vmatprep.subr.mxu0 0.0
        %1337 = vmatpush1.msra.mxu0 0.0
        %1338 = vmatprep.subr.mxu0 0.0
        %1339 = vmatpush1.msra.mxu0 0.0
        %1340 = vmatprep.subr.mxu0 0.0
        %1341 = vmatpush1.msra.mxu0 0.0
        %1342 = vmatprep.subr.mxu0 0.0
        %1343 = vmatpush1.msra.mxu0 0.0
        %1344 = vmatprep.subr.mxu0 0.0
        %1345 = vmatpush1.msra.mxu0 0.0
        %1346 = vmatprep.subr.mxu0 0.0
        %1347 = vmatpush1.msra.mxu0 0.0
        %1348 = vmatprep.subr.mxu0 0.0
        %1349 = vmatpush1.msra.mxu0 0.0
        %1350 = vmatprep.subr.mxu0 0.0
        %1351 = vmatpush1.msra.mxu0 0.0
        %1352 = vmatprep.subr.mxu0 0.0
        %1353 = vmatpush1.msra.mxu0 0.0
        %1354 = vmatprep.subr.mxu0 0.0
        %1355 = vmatpush1.msra.mxu0 0.0
        %1356 = vmatprep.subr.mxu0 0.0
        %1357 = vmatpush1.msra.mxu0 0.0
        %1358 = vmatprep.subr.mxu0 0.0
        %1359 = vmatpush1.msra.mxu0 0.0
        %1360 = vmatprep.subr.mxu0 0.0
        %1361 = vmatpush1.msra.mxu0 0.0
        %1362 = vmatprep.subr.mxu0 0.0
        %1363 = vmatpush1.msra.mxu0 0.0
        %1364 = vmatprep.subr.mxu0 0.0
        %1365 = vmatpush1.msra.mxu0 0.0
        %1366 = vmatprep.subr.mxu0 0.0
        %1367 = vmatpush1.msra.mxu0 0.0
        %1368 = vmatprep.subr.mxu0 0.0
        %1369 = vmatpush1.msra.mxu0 0.0
        %1370 = vmatprep.subr.mxu0 0.0
        %1371 = vmatpush1.msra.mxu0 0.0
        %1372 = vmatprep.subr.mxu0 0.0
        %1373 = vmatpush1.msra.mxu0 0.0
        %1374 = vmatprep.subr.mxu0 0.0
        %1375 = vmatpush1.msra.mxu0 0.0
        %1376 = vmatprep.subr.mxu0 0.0
        %1377 = vmatpush1.msra.mxu0 0.0
        %1378 = vmatprep.subr.mxu0 0.0
        %1379 = vmatpush1.msra.mxu0 0.0
        %1380 = vmatprep.subr.mxu0 0.0
        %1381 = vmatpush1.msra.mxu0 0.0
        %1382 = vmatprep.subr.mxu0 0.0
        %1383 = vmatpush1.msra.mxu0 0.0
        %1384 = vmatprep.subr.mxu0 0.0
        %1385 = vmatpush1.msra.mxu0 0.0
        %1386 = vmatprep.subr.mxu0 0.0
        %1387 = vmatpush1.msra.mxu0 0.0
        %1388 = vmatprep.subr.mxu0 0.0
        %1389 = vmatpush1.msra.mxu0 0.0
        %1390 = vmatprep.mubr.f32.mxu0 0.0
        %1391 = vmatmul.mubr.f32.gmra.mrb[0].mxu0 %v272
        %v1392 = vpop.f32.mrb[0].mxu0
        %v1393 = vadd.f32 0.0, %v1392
        %v1394 = vpop.f32.mrb[0].mxu0
        %1395 = vmatprep.mubr.f32.mxu0 0.0
        %1396 = vmatmul.mubr.f32.gmra.mrb[0].mxu0 %v275
        %v1397 = vpop.f32.mrb[0].mxu0
        %v1398 = vadd.f32 0.0, %v1397
        %v1399 = vpop.f32.mrb[0].mxu0
        %1400 = vmatprep.mubr.f32.mxu0 0.0
        %1401 = vmatmul.mubr.f32.gmra.mrb[0].mxu0 %v278
        %v1402 = vpop.f32.mrb[0].mxu0
        %v1403 = vadd.f32 0.0, %v1402
        %v1404 = vpop.f32.mrb[0].mxu0
        %1405 = vmatprep.mubr.f32.mxu0 0.0
        %1406 = vmatmul.mubr.f32.gmra.mrb[0].mxu0 %v281
        %v1407 = vpop.f32.mrb[0].mxu0
        %v1408 = vadd.f32 0.0, %v1407
        %v1409 = vpop.f32.mrb[0].mxu0
        %1410 = vmatprep.mubr.f32.mxu0 0.0
        %1411 = vmatmul.mubr.f32.gmra.mrb[0].mxu0 %v284
        %v1412 = vpop.f32.mrb[0].mxu0
        %v1413 = vadd.f32 0.0, %v1412
        %v1414 = vpop.f32.mrb[0].mxu0
        %1415 = vmatprep.mubr.f32.mxu0 0.0
        %1416 = vmatmul.mubr.f32.gmra.mrb[0].mxu0 %v287
        %v1417 = vpop.f32.mrb[0].mxu0
        %v1418 = vadd.f32 0.0, %v1417
        %v1419 = vpop.f32.mrb[0].mxu0
        %1420 = vmatprep.mubr.f32.mxu0 0.0
        %1421 = vmatmul.mubr.f32.gmra.mrb[0].mxu0 %v290
        %v1422 = vpop.f32.mrb[0].mxu0
        %v1423 = vadd.f32 0.0, %v1422
        %v1424 = vpop.f32.mrb[0].mxu0
        %1425 = vmatprep.mubr.f32.mxu0 0.0
        %1426 = vmatmul.mubr.f32.gmra.mrb[0].mxu0 %v293
        %v1427 = vpop.f32.mrb[0].mxu0
        %v1428 = vadd.f32 0.0, %v1427
        %v1429 = vpop.f32.mrb[0].mxu0
        %1430 = vmatprep.mubr.f32.mxu0 0.0
        %1431 = vmatmul.mubr.f32.gmra.mrb[0].mxu0 %v296
        %v1432 = vpop.f32.mrb[0].mxu0
        %v1433 = vadd.f32 0.0, %v1432
        %v1434 = vpop.f32.mrb[0].mxu0
        %1435 = vmatprep.mubr.f32.mxu0 0.0
        %1436 = vmatmul.mubr.f32.gmra.mrb[0].mxu0 %v299
        %v1437 = vpop.f32.mrb[0].mxu0
        %v1438 = vadd.f32 0.0, %v1437
        %v1439 = vpop.f32.mrb[0].mxu0
        %1440 = vmatprep.mubr.f32.mxu0 0.0
        %1441 = vmatmul.mubr.f32.gmra.mrb[0].mxu0 %v302
        %v1442 = vpop.f32.mrb[0].mxu0
        %v1443 = vadd.f32 0.0, %v1442
        %v1444 = vpop.f32.mrb[0].mxu0
        %1445 = vmatprep.mubr.f32.mxu0 0.0
        %1446 = vmatmul.mubr.f32.gmra.mrb[0].mxu0 %v305
        %v1447 = vpop.f32.mrb[0].mxu0
        %v1448 = vadd.f32 0.0, %v1447
        %v1449 = vpop.f32.mrb[0].mxu0
        %1450 = vmatprep.mubr.f32.mxu0 0.0
        %1451 = vmatmul.mubr.f32.gmra.mrb[0].mxu0 %v308
        %v1452 = vpop.f32.mrb[0].mxu0
        %v1453 = vadd.f32 0.0, %v1452
        %v1454 = vpop.f32.mrb[0].mxu0
        %1455 = vmatprep.mubr.f32.mxu0 0.0
        %1456 = vmatmul.mubr.f32.gmra.mrb[0].mxu0 %v311
        %v1457 = vpop.f32.mrb[0].mxu0
        %v1458 = vadd.f32 0.0, %v1457
        %v1459 = vpop.f32.mrb[0].mxu0
        %1460 = vmatprep.mubr.f32.mxu0 0.0
        %1461 = vmatmul.mubr.f32.gmra.mrb[0].mxu0 %v314
        %v1462 = vpop.f32.mrb[0].mxu0
        %v1463 = vadd.f32 0.0, %v1462
        %v1464 = vpop.f32.mrb[0].mxu0
        %1465 = vmatprep.mubr.f32.mxu0 0.0
        %1466 = vmatmul.mubr.f32.gmra.mrb[0].mxu0 %v317
        %v1467 = vpop.f32.mrb[0].mxu0
        %v1468 = vadd.f32 0.0, %v1467
        %v1469 = vpop.f32.mrb[0].mxu0
        %1470 = vmatprep.mubr.f32.mxu0 0.0
        %1471 = vmatmul.mubr.f32.gmra.mrb[0].mxu0 %v320
        %v1472 = vpop.f32.mrb[0].mxu0
        %v1473 = vadd.f32 0.0, %v1472
        %v1474 = vpop.f32.mrb[0].mxu0
        %1475 = vmatprep.mubr.f32.mxu0 0.0
        %1476 = vmatmul.mubr.f32.gmra.mrb[0].mxu0 %v323
        %v1477 = vpop.f32.mrb[0].mxu0
        %v1478 = vadd.f32 0.0, %v1477
        %v1479 = vpop.f32.mrb[0].mxu0
        %1480 = vmatprep.mubr.f32.mxu0 0.0
        %1481 = vmatmul.mubr.f32.gmra.mrb[0].mxu0 %v326
        %v1482 = vpop.f32.mrb[0].mxu0
        %v1483 = vadd.f32 0.0, %v1482
        %v1484 = vpop.f32.mrb[0].mxu0
        %1485 = vmatprep.mubr.f32.mxu0 0.0
        %1486 = vmatmul.mubr.f32.gmra.mrb[0].mxu0 %v329
        %v1487 = vpop.f32.mrb[0].mxu0
        %v1488 = vadd.f32 0.0, %v1487
        %v1489 = vpop.f32.mrb[0].mxu0
        %1490 = vmatprep.mubr.f32.mxu0 0.0
        %1491 = vmatmul.mubr.f32.gmra.mrb[0].mxu0 %v332
        %v1492 = vpop.f32.mrb[0].mxu0
        %v1493 = vadd.f32 0.0, %v1492
        %v1494 = vpop.f32.mrb[0].mxu0
        %1495 = vmatprep.mubr.f32.mxu0 0.0
        %1496 = vmatmul.mubr.f32.gmra.mrb[0].mxu0 %v335
        %v1497 = vpop.f32.mrb[0].mxu0
        %v1498 = vadd.f32 0.0, %v1497
        %v1499 = vpop.f32.mrb[0].mxu0
        %1500 = vmatprep.mubr.f32.mxu0 0.0
        %1501 = vmatmul.mubr.f32.gmra.mrb[0].mxu0 %v338
        %v1502 = vpop.f32.mrb[0].mxu0
        %v1503 = vadd.f32 0.0, %v1502
        %v1504 = vpop.f32.mrb[0].mxu0
        %1505 = vmatprep.mubr.f32.mxu0 0.0
        %1506 = vmatmul.mubr.f32.gmra.mrb[0].mxu0 %v341
        %v1507 = vpop.f32.mrb[0].mxu0
        %v1508 = vadd.f32 0.0, %v1507
        %v1509 = vpop.f32.mrb[0].mxu0
        %1510 = vmatprep.mubr.f32.mxu0 0.0
        %1511 = vmatmul.mubr.f32.gmra.mrb[0].mxu0 %v344
        %v1512 = vpop.f32.mrb[0].mxu0
        %v1513 = vadd.f32 0.0, %v1512
        %v1514 = vpop.f32.mrb[0].mxu0
        %1515 = vmatprep.mubr.f32.mxu0 0.0
        %1516 = vmatmul.mubr.f32.gmra.mrb[0].mxu0 %v347
        %v1517 = vpop.f32.mrb[0].mxu0
        %v1518 = vadd.f32 0.0, %v1517
        %v1519 = vpop.f32.mrb[0].mxu0
        %1520 = vmatprep.mubr.f32.mxu0 0.0
        %1521 = vmatmul.mubr.f32.gmra.mrb[0].mxu0 %v350
        %v1522 = vpop.f32.mrb[0].mxu0
        %v1523 = vadd.f32 0.0, %v1522
        %v1524 = vpop.f32.mrb[0].mxu0
        %1525 = vmatprep.mubr.f32.mxu0 0.0
        %1526 = vmatmul.mubr.f32.gmra.mrb[0].mxu0 %v1318
        %v1527 = vpop.f32.mrb[0].mxu0
        %v1528 = vadd.f32 0.0, %v1527
        %v1529 = vpop.f32.mrb[0].mxu0
        %1530 = vmatprep.mubr.f32.mxu0 0.0
        %1531 = vmatmul.mubr.f32.gmra.mrb[0].mxu0 %v1321
        %v1532 = vpop.f32.mrb[0].mxu0
        %v1533 = vadd.f32 0.0, %v1532
        %v1534 = vpop.f32.mrb[0].mxu0
        %1535 = vdwg.mxu0
        %v1536 = vadd.f32 %v1286, %v1393
        %v1537 = vadd.f32 %v1287, %v1398
        %v1538 = vadd.f32 %v1288, %v1403
        %v1539 = vadd.f32 %v1289, %v1408
        %v1540 = vadd.f32 %v1290, %v1413
        %v1541 = vadd.f32 %v1291, %v1418
        %v1542 = vadd.f32 %v1292, %v1423
        %v1543 = vadd.f32 %v1293, %v1428
        %v1544 = vadd.f32 %v1294, %v1433
        %v1545 = vadd.f32 %v1295, %v1438
        %v1546 = vadd.f32 %v1296, %v1443
        %v1547 = vadd.f32 %v1297, %v1448
        %v1548 = vadd.f32 %v1298, %v1453
        %v1549 = vadd.f32 %v1299, %v1458
        %v1550 = vadd.f32 %v1300, %v1463
        %v1551 = vadd.f32 %v1301, %v1468
        %v1552 = vadd.f32 %v1302, %v1473
        %v1553 = vadd.f32 %v1303, %v1478
        %v1554 = vadd.f32 %v1304, %v1483
        %v1555 = vadd.f32 %v1305, %v1488
        %v1556 = vadd.f32 %v1306, %v1493
        %v1557 = vadd.f32 %v1307, %v1498
        %v1558 = vadd.f32 %v1308, %v1503
        %v1559 = vadd.f32 %v1309, %v1508
        %v1560 = vadd.f32 %v1310, %v1513
        %v1561 = vadd.f32 %v1311, %v1518
        %v1562 = vadd.f32 %v1312, %v1523
        %v1563 = vadd.f32 %v1313, %v1528
        %v1564 = vadd.f32 %v1314, %v1533
        %s1565 = scalar_lea.vmem %s1, 16
        %v1566 = vld [vmem:[%s1565] sm:$0xf]
        %v1567 = vrot.slane %v252, 1
        %v1568 = vsel %vm597, %v653, %v1567
        %v1569 = vrot.slane %v253, 1
        %v1570 = vsel %vm597, %v1567, %v1569
        %v1571 = vsel %vm264, %v1568, 0
        %v1573 = vsel %vm264, %v1570, 0
        %v1575 = vsel %vm264, %v1569, 0
        %v1578 = vsel %vm352, %v1566, 0
        %1580 = vmatprep.subr.mxu0 0.0
        %1581 = vmatpush1.msra.mxu0 %v1578
        %1582 = vmatprep.subr.mxu0 0.0
        %1583 = vmatpush1.msra.mxu0 0.0
        %1584 = vmatprep.subr.mxu0 0.0
        %1585 = vmatpush1.msra.mxu0 0.0
        %1586 = vmatprep.subr.mxu0 0.0
        %1587 = vmatpush1.msra.mxu0 0.0
        %1588 = vmatprep.subr.mxu0 0.0
        %1589 = vmatpush1.msra.mxu0 0.0
        %1590 = vmatprep.subr.mxu0 0.0
        %1591 = vmatpush1.msra.mxu0 0.0
        %1592 = vmatprep.subr.mxu0 0.0
        %1593 = vmatpush1.msra.mxu0 0.0
        %1594 = vmatprep.subr.mxu0 0.0
        %1595 = vmatpush1.msra.mxu0 0.0
        %1596 = vmatprep.subr.mxu0 0.0
        %1597 = vmatpush1.msra.mxu0 0.0
        %1598 = vmatprep.subr.mxu0 0.0
        %1599 = vmatpush1.msra.mxu0 0.0
        %1600 = vmatprep.subr.mxu0 0.0
        %1601 = vmatpush1.msra.mxu0 0.0
        %1602 = vmatprep.subr.mxu0 0.0
        %1603 = vmatpush1.msra.mxu0 0.0
        %1604 = vmatprep.subr.mxu0 0.0
        %1605 = vmatpush1.msra.mxu0 0.0
        %1606 = vmatprep.subr.mxu0 0.0
        %1607 = vmatpush1.msra.mxu0 0.0
        %1608 = vmatprep.subr.mxu0 0.0
        %1609 = vmatpush1.msra.mxu0 0.0
        %1610 = vmatprep.subr.mxu0 0.0
        %1611 = vmatpush1.msra.mxu0 0.0
        %1612 = vmatprep.subr.mxu0 0.0
        %1613 = vmatpush1.msra.mxu0 0.0
        %1614 = vmatprep.subr.mxu0 0.0
        %1615 = vmatpush1.msra.mxu0 0.0
        %1616 = vmatprep.subr.mxu0 0.0
        %1617 = vmatpush1.msra.mxu0 0.0
        %1618 = vmatprep.subr.mxu0 0.0
        %1619 = vmatpush1.msra.mxu0 0.0
        %1620 = vmatprep.subr.mxu0 0.0
        %1621 = vmatpush1.msra.mxu0 0.0
        %1622 = vmatprep.subr.mxu0 0.0
        %1623 = vmatpush1.msra.mxu0 0.0
        %1624 = vmatprep.subr.mxu0 0.0
        %1625 = vmatpush1.msra.mxu0 0.0
        %1626 = vmatprep.subr.mxu0 0.0
        %1627 = vmatpush1.msra.mxu0 0.0
        %1628 = vmatprep.subr.mxu0 0.0
        %1629 = vmatpush1.msra.mxu0 0.0
        %1630 = vmatprep.subr.mxu0 0.0
        %1631 = vmatpush1.msra.mxu0 0.0
        %1632 = vmatprep.subr.mxu0 0.0
        %1633 = vmatpush1.msra.mxu0 0.0
        %1634 = vmatprep.subr.mxu0 0.0
        %1635 = vmatpush1.msra.mxu0 0.0
        %1636 = vmatprep.subr.mxu0 0.0
        %1637 = vmatpush1.msra.mxu0 0.0
        %1638 = vmatprep.subr.mxu0 0.0
        %1639 = vmatpush1.msra.mxu0 0.0
        %1640 = vmatprep.subr.mxu0 0.0
        %1641 = vmatpush1.msra.mxu0 0.0
        %1642 = vmatprep.subr.mxu0 0.0
        %1643 = vmatpush1.msra.mxu0 0.0
        %1644 = vmatprep.mubr.f32.mxu0 0.0
        %1645 = vmatmul.mubr.f32.gmra.mrb[0].mxu0 %v659
        %v1646 = vpop.f32.mrb[0].mxu0
        %v1647 = vadd.f32 0.0, %v1646
        %v1648 = vpop.f32.mrb[0].mxu0
        %1649 = vmatprep.mubr.f32.mxu0 0.0
        %1650 = vmatmul.mubr.f32.gmra.mrb[0].mxu0 %v661
        %v1651 = vpop.f32.mrb[0].mxu0
        %v1652 = vadd.f32 0.0, %v1651
        %v1653 = vpop.f32.mrb[0].mxu0
        %1654 = vmatprep.mubr.f32.mxu0 0.0
        %1655 = vmatmul.mubr.f32.gmra.mrb[0].mxu0 %v663
        %v1656 = vpop.f32.mrb[0].mxu0
        %v1657 = vadd.f32 0.0, %v1656
        %v1658 = vpop.f32.mrb[0].mxu0
        %1659 = vmatprep.mubr.f32.mxu0 0.0
        %1660 = vmatmul.mubr.f32.gmra.mrb[0].mxu0 %v665
        %v1661 = vpop.f32.mrb[0].mxu0
        %v1662 = vadd.f32 0.0, %v1661
        %v1663 = vpop.f32.mrb[0].mxu0
        %1664 = vmatprep.mubr.f32.mxu0 0.0
        %1665 = vmatmul.mubr.f32.gmra.mrb[0].mxu0 %v667
        %v1666 = vpop.f32.mrb[0].mxu0
        %v1667 = vadd.f32 0.0, %v1666
        %v1668 = vpop.f32.mrb[0].mxu0
        %1669 = vmatprep.mubr.f32.mxu0 0.0
        %1670 = vmatmul.mubr.f32.gmra.mrb[0].mxu0 %v669
        %v1671 = vpop.f32.mrb[0].mxu0
        %v1672 = vadd.f32 0.0, %v1671
        %v1673 = vpop.f32.mrb[0].mxu0
        %1674 = vmatprep.mubr.f32.mxu0 0.0
        %1675 = vmatmul.mubr.f32.gmra.mrb[0].mxu0 %v671
        %v1676 = vpop.f32.mrb[0].mxu0
        %v1677 = vadd.f32 0.0, %v1676
        %v1678 = vpop.f32.mrb[0].mxu0
        %1679 = vmatprep.mubr.f32.mxu0 0.0
        %1680 = vmatmul.mubr.f32.gmra.mrb[0].mxu0 %v673
        %v1681 = vpop.f32.mrb[0].mxu0
        %v1682 = vadd.f32 0.0, %v1681
        %v1683 = vpop.f32.mrb[0].mxu0
        %1684 = vmatprep.mubr.f32.mxu0 0.0
        %1685 = vmatmul.mubr.f32.gmra.mrb[0].mxu0 %v675
        %v1686 = vpop.f32.mrb[0].mxu0
        %v1687 = vadd.f32 0.0, %v1686
        %v1688 = vpop.f32.mrb[0].mxu0
        %1689 = vmatprep.mubr.f32.mxu0 0.0
        %1690 = vmatmul.mubr.f32.gmra.mrb[0].mxu0 %v677
        %v1691 = vpop.f32.mrb[0].mxu0
        %v1692 = vadd.f32 0.0, %v1691
        %v1693 = vpop.f32.mrb[0].mxu0
        %1694 = vmatprep.mubr.f32.mxu0 0.0
        %1695 = vmatmul.mubr.f32.gmra.mrb[0].mxu0 %v679
        %v1696 = vpop.f32.mrb[0].mxu0
        %v1697 = vadd.f32 0.0, %v1696
        %v1698 = vpop.f32.mrb[0].mxu0
        %1699 = vmatprep.mubr.f32.mxu0 0.0
        %1700 = vmatmul.mubr.f32.gmra.mrb[0].mxu0 %v681
        %v1701 = vpop.f32.mrb[0].mxu0
        %v1702 = vadd.f32 0.0, %v1701
        %v1703 = vpop.f32.mrb[0].mxu0
        %1704 = vmatprep.mubr.f32.mxu0 0.0
        %1705 = vmatmul.mubr.f32.gmra.mrb[0].mxu0 %v683
        %v1706 = vpop.f32.mrb[0].mxu0
        %v1707 = vadd.f32 0.0, %v1706
        %v1708 = vpop.f32.mrb[0].mxu0
        %1709 = vmatprep.mubr.f32.mxu0 0.0
        %1710 = vmatmul.mubr.f32.gmra.mrb[0].mxu0 %v685
        %v1711 = vpop.f32.mrb[0].mxu0
        %v1712 = vadd.f32 0.0, %v1711
        %v1713 = vpop.f32.mrb[0].mxu0
        %1714 = vmatprep.mubr.f32.mxu0 0.0
        %1715 = vmatmul.mubr.f32.gmra.mrb[0].mxu0 %v687
        %v1716 = vpop.f32.mrb[0].mxu0
        %v1717 = vadd.f32 0.0, %v1716
        %v1718 = vpop.f32.mrb[0].mxu0
        %1719 = vmatprep.mubr.f32.mxu0 0.0
        %1720 = vmatmul.mubr.f32.gmra.mrb[0].mxu0 %v689
        %v1721 = vpop.f32.mrb[0].mxu0
        %v1722 = vadd.f32 0.0, %v1721
        %v1723 = vpop.f32.mrb[0].mxu0
        %1724 = vmatprep.mubr.f32.mxu0 0.0
        %1725 = vmatmul.mubr.f32.gmra.mrb[0].mxu0 %v691
        %v1726 = vpop.f32.mrb[0].mxu0
        %v1727 = vadd.f32 0.0, %v1726
        %v1728 = vpop.f32.mrb[0].mxu0
        %1729 = vmatprep.mubr.f32.mxu0 0.0
        %1730 = vmatmul.mubr.f32.gmra.mrb[0].mxu0 %v693
        %v1731 = vpop.f32.mrb[0].mxu0
        %v1732 = vadd.f32 0.0, %v1731
        %v1733 = vpop.f32.mrb[0].mxu0
        %1734 = vmatprep.mubr.f32.mxu0 0.0
        %1735 = vmatmul.mubr.f32.gmra.mrb[0].mxu0 %v695
        %v1736 = vpop.f32.mrb[0].mxu0
        %v1737 = vadd.f32 0.0, %v1736
        %v1738 = vpop.f32.mrb[0].mxu0
        %1739 = vmatprep.mubr.f32.mxu0 0.0
        %1740 = vmatmul.mubr.f32.gmra.mrb[0].mxu0 %v697
        %v1741 = vpop.f32.mrb[0].mxu0
        %v1742 = vadd.f32 0.0, %v1741
        %v1743 = vpop.f32.mrb[0].mxu0
        %1744 = vmatprep.mubr.f32.mxu0 0.0
        %1745 = vmatmul.mubr.f32.gmra.mrb[0].mxu0 %v699
        %v1746 = vpop.f32.mrb[0].mxu0
        %v1747 = vadd.f32 0.0, %v1746
        %v1748 = vpop.f32.mrb[0].mxu0
        %1749 = vmatprep.mubr.f32.mxu0 0.0
        %1750 = vmatmul.mubr.f32.gmra.mrb[0].mxu0 %v701
        %v1751 = vpop.f32.mrb[0].mxu0
        %v1752 = vadd.f32 0.0, %v1751
        %v1753 = vpop.f32.mrb[0].mxu0
        %1754 = vmatprep.mubr.f32.mxu0 0.0
        %1755 = vmatmul.mubr.f32.gmra.mrb[0].mxu0 %v703
        %v1756 = vpop.f32.mrb[0].mxu0
        %v1757 = vadd.f32 0.0, %v1756
        %v1758 = vpop.f32.mrb[0].mxu0
        %1759 = vmatprep.mubr.f32.mxu0 0.0
        %1760 = vmatmul.mubr.f32.gmra.mrb[0].mxu0 %v705
        %v1761 = vpop.f32.mrb[0].mxu0
        %v1762 = vadd.f32 0.0, %v1761
        %v1763 = vpop.f32.mrb[0].mxu0
        %1764 = vmatprep.mubr.f32.mxu0 0.0
        %1765 = vmatmul.mubr.f32.gmra.mrb[0].mxu0 %v707
        %v1766 = vpop.f32.mrb[0].mxu0
        %v1767 = vadd.f32 0.0, %v1766
        %v1768 = vpop.f32.mrb[0].mxu0
        %1769 = vmatprep.mubr.f32.mxu0 0.0
        %1770 = vmatmul.mubr.f32.gmra.mrb[0].mxu0 %v709
        %v1771 = vpop.f32.mrb[0].mxu0
        %v1772 = vadd.f32 0.0, %v1771
        %v1773 = vpop.f32.mrb[0].mxu0
        %1774 = vmatprep.mubr.f32.mxu0 0.0
        %1775 = vmatmul.mubr.f32.gmra.mrb[0].mxu0 %v1571
        %v1776 = vpop.f32.mrb[0].mxu0
        %v1777 = vadd.f32 0.0, %v1776
        %v1778 = vpop.f32.mrb[0].mxu0
        %1779 = vmatprep.mubr.f32.mxu0 0.0
        %1780 = vmatmul.mubr.f32.gmra.mrb[0].mxu0 %v1573
        %v1781 = vpop.f32.mrb[0].mxu0
        %v1782 = vadd.f32 0.0, %v1781
        %v1783 = vpop.f32.mrb[0].mxu0
        %1784 = vmatprep.mubr.f32.mxu0 0.0
        %1785 = vmatmul.mubr.f32.gmra.mrb[0].mxu0 %v1575
        %v1786 = vpop.f32.mrb[0].mxu0
        %v1787 = vadd.f32 0.0, %v1786
        %v1788 = vpop.f32.mrb[0].mxu0
        %1789 = vdwg.mxu0
        %v1790 = vadd.f32 %v1536, %v1647
        %v1791 = vadd.f32 %v1537, %v1652
        %v1792 = vadd.f32 %v1538, %v1657
        %v1793 = vadd.f32 %v1539, %v1662
        %v1794 = vadd.f32 %v1540, %v1667
        %v1795 = vadd.f32 %v1541, %v1672
        %v1796 = vadd.f32 %v1542, %v1677
        %v1797 = vadd.f32 %v1543, %v1682
        %v1798 = vadd.f32 %v1544, %v1687
        %v1799 = vadd.f32 %v1545, %v1692
        %v1800 = vadd.f32 %v1546, %v1697
        %v1801 = vadd.f32 %v1547, %v1702
        %v1802 = vadd.f32 %v1548, %v1707
        %v1803 = vadd.f32 %v1549, %v1712
        %v1804 = vadd.f32 %v1550, %v1717
        %v1805 = vadd.f32 %v1551, %v1722
        %v1806 = vadd.f32 %v1552, %v1727
        %v1807 = vadd.f32 %v1553, %v1732
        %v1808 = vadd.f32 %v1554, %v1737
        %v1809 = vadd.f32 %v1555, %v1742
        %v1810 = vadd.f32 %v1556, %v1747
        %v1811 = vadd.f32 %v1557, %v1752
        %v1812 = vadd.f32 %v1558, %v1757
        %v1813 = vadd.f32 %v1559, %v1762
        %v1814 = vadd.f32 %v1560, %v1767
        %v1815 = vadd.f32 %v1561, %v1772
        %v1816 = vadd.f32 %v1562, %v1777
        %v1817 = vadd.f32 %v1563, %v1782
        %v1818 = vadd.f32 %v1564, %v1787
        %s1819 = scalar_lea.vmem %s1, 20
        %v1820 = vld [vmem:[%s1819] sm:$0xf]
        %v1821 = vrot.slane %v252, 2
        %v1822 = vsel %vm957, %v1013, %v1821
        %v1823 = vrot.slane %v253, 2
        %v1824 = vsel %vm957, %v1821, %v1823
        %v1825 = vsel %vm264, %v1822, 0
        %v1827 = vsel %vm264, %v1824, 0
        %v1829 = vsel %vm264, %v1823, 0
        %v1832 = vsel %vm352, %v1820, 0
        %1834 = vmatprep.subr.mxu0 0.0
        %1835 = vmatpush1.msra.mxu0 %v1832
        %1836 = vmatprep.subr.mxu0 0.0
        %1837 = vmatpush1.msra.mxu0 0.0
        %1838 = vmatprep.subr.mxu0 0.0
        %1839 = vmatpush1.msra.mxu0 0.0
        %1840 = vmatprep.subr.mxu0 0.0
        %1841 = vmatpush1.msra.mxu0 0.0
        %1842 = vmatprep.subr.mxu0 0.0
        %1843 = vmatpush1.msra.mxu0 0.0
        %1844 = vmatprep.subr.mxu0 0.0
        %1845 = vmatpush1.msra.mxu0 0.0
        %1846 = vmatprep.subr.mxu0 0.0
        %1847 = vmatpush1.msra.mxu0 0.0
        %1848 = vmatprep.subr.mxu0 0.0
        %1849 = vmatpush1.msra.mxu0 0.0
        %1850 = vmatprep.subr.mxu0 0.0
        %1851 = vmatpush1.msra.mxu0 0.0
        %1852 = vmatprep.subr.mxu0 0.0
        %1853 = vmatpush1.msra.mxu0 0.0
        %1854 = vmatprep.subr.mxu0 0.0
        %1855 = vmatpush1.msra.mxu0 0.0
        %1856 = vmatprep.subr.mxu0 0.0
        %1857 = vmatpush1.msra.mxu0 0.0
        %1858 = vmatprep.subr.mxu0 0.0
        %1859 = vmatpush1.msra.mxu0 0.0
        %1860 = vmatprep.subr.mxu0 0.0
        %1861 = vmatpush1.msra.mxu0 0.0
        %1862 = vmatprep.subr.mxu0 0.0
        %1863 = vmatpush1.msra.mxu0 0.0
        %1864 = vmatprep.subr.mxu0 0.0
        %1865 = vmatpush1.msra.mxu0 0.0
        %1866 = vmatprep.subr.mxu0 0.0
        %1867 = vmatpush1.msra.mxu0 0.0
        %1868 = vmatprep.subr.mxu0 0.0
        %1869 = vmatpush1.msra.mxu0 0.0
        %1870 = vmatprep.subr.mxu0 0.0
        %1871 = vmatpush1.msra.mxu0 0.0
        %1872 = vmatprep.subr.mxu0 0.0
        %1873 = vmatpush1.msra.mxu0 0.0
        %1874 = vmatprep.subr.mxu0 0.0
        %1875 = vmatpush1.msra.mxu0 0.0
        %1876 = vmatprep.subr.mxu0 0.0
        %1877 = vmatpush1.msra.mxu0 0.0
        %1878 = vmatprep.subr.mxu0 0.0
        %1879 = vmatpush1.msra.mxu0 0.0
        %1880 = vmatprep.subr.mxu0 0.0
        %1881 = vmatpush1.msra.mxu0 0.0
        %1882 = vmatprep.subr.mxu0 0.0
        %1883 = vmatpush1.msra.mxu0 0.0
        %1884 = vmatprep.subr.mxu0 0.0
        %1885 = vmatpush1.msra.mxu0 0.0
        %1886 = vmatprep.subr.mxu0 0.0
        %1887 = vmatpush1.msra.mxu0 0.0
        %1888 = vmatprep.subr.mxu0 0.0
        %1889 = vmatpush1.msra.mxu0 0.0
        %1890 = vmatprep.subr.mxu0 0.0
        %1891 = vmatpush1.msra.mxu0 0.0
        %1892 = vmatprep.subr.mxu0 0.0
        %1893 = vmatpush1.msra.mxu0 0.0
        %1894 = vmatprep.subr.mxu0 0.0
        %1895 = vmatpush1.msra.mxu0 0.0
        %1896 = vmatprep.subr.mxu0 0.0
        %1897 = vmatpush1.msra.mxu0 0.0
        %1898 = vmatprep.mubr.f32.mxu0 0.0
        %1899 = vmatmul.mubr.f32.gmra.mrb[0].mxu0 %v1019
        %v1900 = vpop.f32.mrb[0].mxu0
        %v1901 = vadd.f32 0.0, %v1900
        %v1902 = vpop.f32.mrb[0].mxu0
        %1903 = vmatprep.mubr.f32.mxu0 0.0
        %1904 = vmatmul.mubr.f32.gmra.mrb[0].mxu0 %v1021
        %v1905 = vpop.f32.mrb[0].mxu0
        %v1906 = vadd.f32 0.0, %v1905
        %v1907 = vpop.f32.mrb[0].mxu0
        %1908 = vmatprep.mubr.f32.mxu0 0.0
        %1909 = vmatmul.mubr.f32.gmra.mrb[0].mxu0 %v1023
        %v1910 = vpop.f32.mrb[0].mxu0
        %v1911 = vadd.f32 0.0, %v1910
        %v1912 = vpop.f32.mrb[0].mxu0
        %1913 = vmatprep.mubr.f32.mxu0 0.0
        %1914 = vmatmul.mubr.f32.gmra.mrb[0].mxu0 %v1025
        %v1915 = vpop.f32.mrb[0].mxu0
        %v1916 = vadd.f32 0.0, %v1915
        %v1917 = vpop.f32.mrb[0].mxu0
        %1918 = vmatprep.mubr.f32.mxu0 0.0
        %1919 = vmatmul.mubr.f32.gmra.mrb[0].mxu0 %v1027
        %v1920 = vpop.f32.mrb[0].mxu0
        %v1921 = vadd.f32 0.0, %v1920
        %v1922 = vpop.f32.mrb[0].mxu0
        %1923 = vmatprep.mubr.f32.mxu0 0.0
        %1924 = vmatmul.mubr.f32.gmra.mrb[0].mxu0 %v1029
        %v1925 = vpop.f32.mrb[0].mxu0
        %v1926 = vadd.f32 0.0, %v1925
        %v1927 = vpop.f32.mrb[0].mxu0
        %1928 = vmatprep.mubr.f32.mxu0 0.0
        %1929 = vmatmul.mubr.f32.gmra.mrb[0].mxu0 %v1031
        %v1930 = vpop.f32.mrb[0].mxu0
        %v1931 = vadd.f32 0.0, %v1930
        %v1932 = vpop.f32.mrb[0].mxu0
        %1933 = vmatprep.mubr.f32.mxu0 0.0
        %1934 = vmatmul.mubr.f32.gmra.mrb[0].mxu0 %v1033
        %v1935 = vpop.f32.mrb[0].mxu0
        %v1936 = vadd.f32 0.0, %v1935
        %v1937 = vpop.f32.mrb[0].mxu0
        %1938 = vmatprep.mubr.f32.mxu0 0.0
        %1939 = vmatmul.mubr.f32.gmra.mrb[0].mxu0 %v1035
        %v1940 = vpop.f32.mrb[0].mxu0
        %v1941 = vadd.f32 0.0, %v1940
        %v1942 = vpop.f32.mrb[0].mxu0
        %1943 = vmatprep.mubr.f32.mxu0 0.0
        %1944 = vmatmul.mubr.f32.gmra.mrb[0].mxu0 %v1037
        %v1945 = vpop.f32.mrb[0].mxu0
        %v1946 = vadd.f32 0.0, %v1945
        %v1947 = vpop.f32.mrb[0].mxu0
        %1948 = vmatprep.mubr.f32.mxu0 0.0
        %1949 = vmatmul.mubr.f32.gmra.mrb[0].mxu0 %v1039
        %v1950 = vpop.f32.mrb[0].mxu0
        %v1951 = vadd.f32 0.0, %v1950
        %v1952 = vpop.f32.mrb[0].mxu0
        %1953 = vmatprep.mubr.f32.mxu0 0.0
        %1954 = vmatmul.mubr.f32.gmra.mrb[0].mxu0 %v1041
        %v1955 = vpop.f32.mrb[0].mxu0
        %v1956 = vadd.f32 0.0, %v1955
        %v1957 = vpop.f32.mrb[0].mxu0
        %1958 = vmatprep.mubr.f32.mxu0 0.0
        %1959 = vmatmul.mubr.f32.gmra.mrb[0].mxu0 %v1043
        %v1960 = vpop.f32.mrb[0].mxu0
        %v1961 = vadd.f32 0.0, %v1960
        %v1962 = vpop.f32.mrb[0].mxu0
        %1963 = vmatprep.mubr.f32.mxu0 0.0
        %1964 = vmatmul.mubr.f32.gmra.mrb[0].mxu0 %v1045
        %v1965 = vpop.f32.mrb[0].mxu0
        %v1966 = vadd.f32 0.0, %v1965
        %v1967 = vpop.f32.mrb[0].mxu0
        %1968 = vmatprep.mubr.f32.mxu0 0.0
        %1969 = vmatmul.mubr.f32.gmra.mrb[0].mxu0 %v1047
        %v1970 = vpop.f32.mrb[0].mxu0
        %v1971 = vadd.f32 0.0, %v1970
        %v1972 = vpop.f32.mrb[0].mxu0
        %1973 = vmatprep.mubr.f32.mxu0 0.0
        %1974 = vmatmul.mubr.f32.gmra.mrb[0].mxu0 %v1049
        %v1975 = vpop.f32.mrb[0].mxu0
        %v1976 = vadd.f32 0.0, %v1975
        %v1977 = vpop.f32.mrb[0].mxu0
        %1978 = vmatprep.mubr.f32.mxu0 0.0
        %1979 = vmatmul.mubr.f32.gmra.mrb[0].mxu0 %v1051
        %v1980 = vpop.f32.mrb[0].mxu0
        %v1981 = vadd.f32 0.0, %v1980
        %v1982 = vpop.f32.mrb[0].mxu0
        %1983 = vmatprep.mubr.f32.mxu0 0.0
        %1984 = vmatmul.mubr.f32.gmra.mrb[0].mxu0 %v1053
        %v1985 = vpop.f32.mrb[0].mxu0
        %v1986 = vadd.f32 0.0, %v1985
        %v1987 = vpop.f32.mrb[0].mxu0
        %1988 = vmatprep.mubr.f32.mxu0 0.0
        %1989 = vmatmul.mubr.f32.gmra.mrb[0].mxu0 %v1055
        %v1990 = vpop.f32.mrb[0].mxu0
        %v1991 = vadd.f32 0.0, %v1990
        %v1992 = vpop.f32.mrb[0].mxu0
        %1993 = vmatprep.mubr.f32.mxu0 0.0
        %1994 = vmatmul.mubr.f32.gmra.mrb[0].mxu0 %v1057
        %v1995 = vpop.f32.mrb[0].mxu0
        %v1996 = vadd.f32 0.0, %v1995
        %v1997 = vpop.f32.mrb[0].mxu0
        %1998 = vmatprep.mubr.f32.mxu0 0.0
        %1999 = vmatmul.mubr.f32.gmra.mrb[0].mxu0 %v1059
        %v2000 = vpop.f32.mrb[0].mxu0
        %v2001 = vadd.f32 0.0, %v2000
        %v2002 = vpop.f32.mrb[0].mxu0
        %2003 = vmatprep.mubr.f32.mxu0 0.0
        %2004 = vmatmul.mubr.f32.gmra.mrb[0].mxu0 %v1061
        %v2005 = vpop.f32.mrb[0].mxu0
        %v2006 = vadd.f32 0.0, %v2005
        %v2007 = vpop.f32.mrb[0].mxu0
        %2008 = vmatprep.mubr.f32.mxu0 0.0
        %2009 = vmatmul.mubr.f32.gmra.mrb[0].mxu0 %v1063
        %v2010 = vpop.f32.mrb[0].mxu0
        %v2011 = vadd.f32 0.0, %v2010
        %v2012 = vpop.f32.mrb[0].mxu0
        %2013 = vmatprep.mubr.f32.mxu0 0.0
        %2014 = vmatmul.mubr.f32.gmra.mrb[0].mxu0 %v1065
        %v2015 = vpop.f32.mrb[0].mxu0
        %v2016 = vadd.f32 0.0, %v2015
        %v2017 = vpop.f32.mrb[0].mxu0
        %2018 = vmatprep.mubr.f32.mxu0 0.0
        %2019 = vmatmul.mubr.f32.gmra.mrb[0].mxu0 %v1067
        %v2020 = vpop.f32.mrb[0].mxu0
        %v2021 = vadd.f32 0.0, %v2020
        %v2022 = vpop.f32.mrb[0].mxu0
        %2023 = vmatprep.mubr.f32.mxu0 0.0
        %2024 = vmatmul.mubr.f32.gmra.mrb[0].mxu0 %v1069
        %v2025 = vpop.f32.mrb[0].mxu0
        %v2026 = vadd.f32 0.0, %v2025
        %v2027 = vpop.f32.mrb[0].mxu0
        %2028 = vmatprep.mubr.f32.mxu0 0.0
        %2029 = vmatmul.mubr.f32.gmra.mrb[0].mxu0 %v1825
        %v2030 = vpop.f32.mrb[0].mxu0
        %v2031 = vadd.f32 0.0, %v2030
        %v2032 = vpop.f32.mrb[0].mxu0
        %2033 = vmatprep.mubr.f32.mxu0 0.0
        %2034 = vmatmul.mubr.f32.gmra.mrb[0].mxu0 %v1827
        %v2035 = vpop.f32.mrb[0].mxu0
        %v2036 = vadd.f32 0.0, %v2035
        %v2037 = vpop.f32.mrb[0].mxu0
        %2038 = vmatprep.mubr.f32.mxu0 0.0
        %2039 = vmatmul.mubr.f32.gmra.mrb[0].mxu0 %v1829
        %v2040 = vpop.f32.mrb[0].mxu0
        %v2041 = vadd.f32 0.0, %v2040
        %v2042 = vpop.f32.mrb[0].mxu0
        %2043 = vdwg.mxu0
        %v2044 = vadd.f32 %v1790, %v1901
        %v2045 = vadd.f32 %v1791, %v1906
        %v2046 = vadd.f32 %v1792, %v1911
        %v2047 = vadd.f32 %v1793, %v1916
        %v2048 = vadd.f32 %v1794, %v1921
        %v2049 = vadd.f32 %v1795, %v1926
        %v2050 = vadd.f32 %v1796, %v1931
        %v2051 = vadd.f32 %v1797, %v1936
        %v2052 = vadd.f32 %v1798, %v1941
        %v2053 = vadd.f32 %v1799, %v1946
        %v2054 = vadd.f32 %v1800, %v1951
        %v2055 = vadd.f32 %v1801, %v1956
        %v2056 = vadd.f32 %v1802, %v1961
        %v2057 = vadd.f32 %v1803, %v1966
        %v2058 = vadd.f32 %v1804, %v1971
        %v2059 = vadd.f32 %v1805, %v1976
        %v2060 = vadd.f32 %v1806, %v1981
        %v2061 = vadd.f32 %v1807, %v1986
        %v2062 = vadd.f32 %v1808, %v1991
        %v2063 = vadd.f32 %v1809, %v1996
        %v2064 = vadd.f32 %v1810, %v2001
        %v2065 = vadd.f32 %v1811, %v2006
        %v2066 = vadd.f32 %v1812, %v2011
        %v2067 = vadd.f32 %v1813, %v2016
        %v2068 = vadd.f32 %v1814, %v2021
        %v2069 = vadd.f32 %v1815, %v2026
        %v2070 = vadd.f32 %v1816, %v2031
        %v2071 = vadd.f32 %v1817, %v2036
        %v2072 = vadd.f32 %v1818, %v2041
        %s2073 = scalar_lea.vmem %s1, 24
        %v2074 = vld [vmem:[%s2073] sm:$0xf]
        %v2076 = vsel %vm264, %v254, 0
        %v2079 = vsel %vm264, %v255, 0
        %v2082 = vsel %vm352, %v2074, 0
        %2084 = vmatprep.subr.mxu0 0.0
        %2085 = vmatpush1.msra.mxu0 %v2082
        %2086 = vmatprep.subr.mxu0 0.0
        %2087 = vmatpush1.msra.mxu0 0.0
        %2088 = vmatprep.subr.mxu0 0.0
        %2089 = vmatpush1.msra.mxu0 0.0
        %2090 = vmatprep.subr.mxu0 0.0
        %2091 = vmatpush1.msra.mxu0 0.0
        %2092 = vmatprep.subr.mxu0 0.0
        %2093 = vmatpush1.msra.mxu0 0.0
        %2094 = vmatprep.subr.mxu0 0.0
        %2095 = vmatpush1.msra.mxu0 0.0
        %2096 = vmatprep.subr.mxu0 0.0
        %2097 = vmatpush1.msra.mxu0 0.0
        %2098 = vmatprep.subr.mxu0 0.0
        %2099 = vmatpush1.msra.mxu0 0.0
        %2100 = vmatprep.subr.mxu0 0.0
        %2101 = vmatpush1.msra.mxu0 0.0
        %2102 = vmatprep.subr.mxu0 0.0
        %2103 = vmatpush1.msra.mxu0 0.0
        %2104 = vmatprep.subr.mxu0 0.0
        %2105 = vmatpush1.msra.mxu0 0.0
        %2106 = vmatprep.subr.mxu0 0.0
        %2107 = vmatpush1.msra.mxu0 0.0
        %2108 = vmatprep.subr.mxu0 0.0
        %2109 = vmatpush1.msra.mxu0 0.0
        %2110 = vmatprep.subr.mxu0 0.0
        %2111 = vmatpush1.msra.mxu0 0.0
        %2112 = vmatprep.subr.mxu0 0.0
        %2113 = vmatpush1.msra.mxu0 0.0
        %2114 = vmatprep.subr.mxu0 0.0
        %2115 = vmatpush1.msra.mxu0 0.0
        %2116 = vmatprep.subr.mxu0 0.0
        %2117 = vmatpush1.msra.mxu0 0.0
        %2118 = vmatprep.subr.mxu0 0.0
        %2119 = vmatpush1.msra.mxu0 0.0
        %2120 = vmatprep.subr.mxu0 0.0
        %2121 = vmatpush1.msra.mxu0 0.0
        %2122 = vmatprep.subr.mxu0 0.0
        %2123 = vmatpush1.msra.mxu0 0.0
        %2124 = vmatprep.subr.mxu0 0.0
        %2125 = vmatpush1.msra.mxu0 0.0
        %2126 = vmatprep.subr.mxu0 0.0
        %2127 = vmatpush1.msra.mxu0 0.0
        %2128 = vmatprep.subr.mxu0 0.0
        %2129 = vmatpush1.msra.mxu0 0.0
        %2130 = vmatprep.subr.mxu0 0.0
        %2131 = vmatpush1.msra.mxu0 0.0
        %2132 = vmatprep.subr.mxu0 0.0
        %2133 = vmatpush1.msra.mxu0 0.0
        %2134 = vmatprep.subr.mxu0 0.0
        %2135 = vmatpush1.msra.mxu0 0.0
        %2136 = vmatprep.subr.mxu0 0.0
        %2137 = vmatpush1.msra.mxu0 0.0
        %2138 = vmatprep.subr.mxu0 0.0
        %2139 = vmatpush1.msra.mxu0 0.0
        %2140 = vmatprep.subr.mxu0 0.0
        %2141 = vmatpush1.msra.mxu0 0.0
        %2142 = vmatprep.subr.mxu0 0.0
        %2143 = vmatpush1.msra.mxu0 0.0
        %2144 = vmatprep.subr.mxu0 0.0
        %2145 = vmatpush1.msra.mxu0 0.0
        %2146 = vmatprep.subr.mxu0 0.0
        %2147 = vmatpush1.msra.mxu0 0.0
        %2148 = vmatprep.mubr.f32.mxu0 0.0
        %2149 = vmatmul.mubr.f32.gmra.mrb[0].mxu0 %v278
        %v2150 = vpop.f32.mrb[0].mxu0
        %v2151 = vadd.f32 0.0, %v2150
        %v2152 = vpop.f32.mrb[0].mxu0
        %2153 = vmatprep.mubr.f32.mxu0 0.0
        %2154 = vmatmul.mubr.f32.gmra.mrb[0].mxu0 %v281
        %v2155 = vpop.f32.mrb[0].mxu0
        %v2156 = vadd.f32 0.0, %v2155
        %v2157 = vpop.f32.mrb[0].mxu0
        %2158 = vmatprep.mubr.f32.mxu0 0.0
        %2159 = vmatmul.mubr.f32.gmra.mrb[0].mxu0 %v284
        %v2160 = vpop.f32.mrb[0].mxu0
        %v2161 = vadd.f32 0.0, %v2160
        %v2162 = vpop.f32.mrb[0].mxu0
        %2163 = vmatprep.mubr.f32.mxu0 0.0
        %2164 = vmatmul.mubr.f32.gmra.mrb[0].mxu0 %v287
        %v2165 = vpop.f32.mrb[0].mxu0
        %v2166 = vadd.f32 0.0, %v2165
        %v2167 = vpop.f32.mrb[0].mxu0
        %2168 = vmatprep.mubr.f32.mxu0 0.0
        %2169 = vmatmul.mubr.f32.gmra.mrb[0].mxu0 %v290
        %v2170 = vpop.f32.mrb[0].mxu0
        %v2171 = vadd.f32 0.0, %v2170
        %v2172 = vpop.f32.mrb[0].mxu0
        %2173 = vmatprep.mubr.f32.mxu0 0.0
        %2174 = vmatmul.mubr.f32.gmra.mrb[0].mxu0 %v293
        %v2175 = vpop.f32.mrb[0].mxu0
        %v2176 = vadd.f32 0.0, %v2175
        %v2177 = vpop.f32.mrb[0].mxu0
        %2178 = vmatprep.mubr.f32.mxu0 0.0
        %2179 = vmatmul.mubr.f32.gmra.mrb[0].mxu0 %v296
        %v2180 = vpop.f32.mrb[0].mxu0
        %v2181 = vadd.f32 0.0, %v2180
        %v2182 = vpop.f32.mrb[0].mxu0
        %2183 = vmatprep.mubr.f32.mxu0 0.0
        %2184 = vmatmul.mubr.f32.gmra.mrb[0].mxu0 %v299
        %v2185 = vpop.f32.mrb[0].mxu0
        %v2186 = vadd.f32 0.0, %v2185
        %v2187 = vpop.f32.mrb[0].mxu0
        %2188 = vmatprep.mubr.f32.mxu0 0.0
        %2189 = vmatmul.mubr.f32.gmra.mrb[0].mxu0 %v302
        %v2190 = vpop.f32.mrb[0].mxu0
        %v2191 = vadd.f32 0.0, %v2190
        %v2192 = vpop.f32.mrb[0].mxu0
        %2193 = vmatprep.mubr.f32.mxu0 0.0
        %2194 = vmatmul.mubr.f32.gmra.mrb[0].mxu0 %v305
        %v2195 = vpop.f32.mrb[0].mxu0
        %v2196 = vadd.f32 0.0, %v2195
        %v2197 = vpop.f32.mrb[0].mxu0
        %2198 = vmatprep.mubr.f32.mxu0 0.0
        %2199 = vmatmul.mubr.f32.gmra.mrb[0].mxu0 %v308
        %v2200 = vpop.f32.mrb[0].mxu0
        %v2201 = vadd.f32 0.0, %v2200
        %v2202 = vpop.f32.mrb[0].mxu0
        %2203 = vmatprep.mubr.f32.mxu0 0.0
        %2204 = vmatmul.mubr.f32.gmra.mrb[0].mxu0 %v311
        %v2205 = vpop.f32.mrb[0].mxu0
        %v2206 = vadd.f32 0.0, %v2205
        %v2207 = vpop.f32.mrb[0].mxu0
        %2208 = vmatprep.mubr.f32.mxu0 0.0
        %2209 = vmatmul.mubr.f32.gmra.mrb[0].mxu0 %v314
        %v2210 = vpop.f32.mrb[0].mxu0
        %v2211 = vadd.f32 0.0, %v2210
        %v2212 = vpop.f32.mrb[0].mxu0
        %2213 = vmatprep.mubr.f32.mxu0 0.0
        %2214 = vmatmul.mubr.f32.gmra.mrb[0].mxu0 %v317
        %v2215 = vpop.f32.mrb[0].mxu0
        %v2216 = vadd.f32 0.0, %v2215
        %v2217 = vpop.f32.mrb[0].mxu0
        %2218 = vmatprep.mubr.f32.mxu0 0.0
        %2219 = vmatmul.mubr.f32.gmra.mrb[0].mxu0 %v320
        %v2220 = vpop.f32.mrb[0].mxu0
        %v2221 = vadd.f32 0.0, %v2220
        %v2222 = vpop.f32.mrb[0].mxu0
        %2223 = vmatprep.mubr.f32.mxu0 0.0
        %2224 = vmatmul.mubr.f32.gmra.mrb[0].mxu0 %v323
        %v2225 = vpop.f32.mrb[0].mxu0
        %v2226 = vadd.f32 0.0, %v2225
        %v2227 = vpop.f32.mrb[0].mxu0
        %2228 = vmatprep.mubr.f32.mxu0 0.0
        %2229 = vmatmul.mubr.f32.gmra.mrb[0].mxu0 %v326
        %v2230 = vpop.f32.mrb[0].mxu0
        %v2231 = vadd.f32 0.0, %v2230
        %v2232 = vpop.f32.mrb[0].mxu0
        %2233 = vmatprep.mubr.f32.mxu0 0.0
        %2234 = vmatmul.mubr.f32.gmra.mrb[0].mxu0 %v329
        %v2235 = vpop.f32.mrb[0].mxu0
        %v2236 = vadd.f32 0.0, %v2235
        %v2237 = vpop.f32.mrb[0].mxu0
        %2238 = vmatprep.mubr.f32.mxu0 0.0
        %2239 = vmatmul.mubr.f32.gmra.mrb[0].mxu0 %v332
        %v2240 = vpop.f32.mrb[0].mxu0
        %v2241 = vadd.f32 0.0, %v2240
        %v2242 = vpop.f32.mrb[0].mxu0
        %2243 = vmatprep.mubr.f32.mxu0 0.0
        %2244 = vmatmul.mubr.f32.gmra.mrb[0].mxu0 %v335
        %v2245 = vpop.f32.mrb[0].mxu0
        %v2246 = vadd.f32 0.0, %v2245
        %v2247 = vpop.f32.mrb[0].mxu0
        %2248 = vmatprep.mubr.f32.mxu0 0.0
        %2249 = vmatmul.mubr.f32.gmra.mrb[0].mxu0 %v338
        %v2250 = vpop.f32.mrb[0].mxu0
        %v2251 = vadd.f32 0.0, %v2250
        %v2252 = vpop.f32.mrb[0].mxu0
        %2253 = vmatprep.mubr.f32.mxu0 0.0
        %2254 = vmatmul.mubr.f32.gmra.mrb[0].mxu0 %v341
        %v2255 = vpop.f32.mrb[0].mxu0
        %v2256 = vadd.f32 0.0, %v2255
        %v2257 = vpop.f32.mrb[0].mxu0
        %2258 = vmatprep.mubr.f32.mxu0 0.0
        %2259 = vmatmul.mubr.f32.gmra.mrb[0].mxu0 %v344
        %v2260 = vpop.f32.mrb[0].mxu0
        %v2261 = vadd.f32 0.0, %v2260
        %v2262 = vpop.f32.mrb[0].mxu0
        %2263 = vmatprep.mubr.f32.mxu0 0.0
        %2264 = vmatmul.mubr.f32.gmra.mrb[0].mxu0 %v347
        %v2265 = vpop.f32.mrb[0].mxu0
        %v2266 = vadd.f32 0.0, %v2265
        %v2267 = vpop.f32.mrb[0].mxu0
        %2268 = vmatprep.mubr.f32.mxu0 0.0
        %2269 = vmatmul.mubr.f32.gmra.mrb[0].mxu0 %v350
        %v2270 = vpop.f32.mrb[0].mxu0
        %v2271 = vadd.f32 0.0, %v2270
        %v2272 = vpop.f32.mrb[0].mxu0
        %2273 = vmatprep.mubr.f32.mxu0 0.0
        %2274 = vmatmul.mubr.f32.gmra.mrb[0].mxu0 %v1318
        %v2275 = vpop.f32.mrb[0].mxu0
        %v2276 = vadd.f32 0.0, %v2275
        %v2277 = vpop.f32.mrb[0].mxu0
        %2278 = vmatprep.mubr.f32.mxu0 0.0
        %2279 = vmatmul.mubr.f32.gmra.mrb[0].mxu0 %v1321
        %v2280 = vpop.f32.mrb[0].mxu0
        %v2281 = vadd.f32 0.0, %v2280
        %v2282 = vpop.f32.mrb[0].mxu0
        %2283 = vmatprep.mubr.f32.mxu0 0.0
        %2284 = vmatmul.mubr.f32.gmra.mrb[0].mxu0 %v2076
        %v2285 = vpop.f32.mrb[0].mxu0
        %v2286 = vadd.f32 0.0, %v2285
        %v2287 = vpop.f32.mrb[0].mxu0
        %2288 = vmatprep.mubr.f32.mxu0 0.0
        %2289 = vmatmul.mubr.f32.gmra.mrb[0].mxu0 %v2079
        %v2290 = vpop.f32.mrb[0].mxu0
        %v2291 = vadd.f32 0.0, %v2290
        %v2292 = vpop.f32.mrb[0].mxu0
        %2293 = vdwg.mxu0
        %v2294 = vadd.f32 %v2044, %v2151
        %v2295 = vadd.f32 %v2045, %v2156
        %v2296 = vadd.f32 %v2046, %v2161
        %v2297 = vadd.f32 %v2047, %v2166
        %v2298 = vadd.f32 %v2048, %v2171
        %v2299 = vadd.f32 %v2049, %v2176
        %v2300 = vadd.f32 %v2050, %v2181
        %v2301 = vadd.f32 %v2051, %v2186
        %v2302 = vadd.f32 %v2052, %v2191
        %v2303 = vadd.f32 %v2053, %v2196
        %v2304 = vadd.f32 %v2054, %v2201
        %v2305 = vadd.f32 %v2055, %v2206
        %v2306 = vadd.f32 %v2056, %v2211
        %v2307 = vadd.f32 %v2057, %v2216
        %v2308 = vadd.f32 %v2058, %v2221
        %v2309 = vadd.f32 %v2059, %v2226
        %v2310 = vadd.f32 %v2060, %v2231
        %v2311 = vadd.f32 %v2061, %v2236
        %v2312 = vadd.f32 %v2062, %v2241
        %v2313 = vadd.f32 %v2063, %v2246
        %v2314 = vadd.f32 %v2064, %v2251
        %v2315 = vadd.f32 %v2065, %v2256
        %v2316 = vadd.f32 %v2066, %v2261
        %v2317 = vadd.f32 %v2067, %v2266
        %v2318 = vadd.f32 %v2068, %v2271
        %v2319 = vadd.f32 %v2069, %v2276
        %v2320 = vadd.f32 %v2070, %v2281
        %v2321 = vadd.f32 %v2071, %v2286
        %v2322 = vadd.f32 %v2072, %v2291
        %s2323 = scalar_lea.vmem %s1, 28
        %v2324 = vld [vmem:[%s2323] sm:$0xf]
        %v2325 = vrot.slane %v254, 1
        %v2326 = vsel %vm597, %v1569, %v2325
        %v2327 = vrot.slane %v255, 1
        %v2328 = vsel %vm597, %v2325, %v2327
        %v2329 = vsel %vm264, %v2326, 0
        %v2331 = vsel %vm264, %v2328, 0
        %v2333 = vsel %vm264, %v2327, 0
        %v2336 = vsel %vm352, %v2324, 0
        %2338 = vmatprep.subr.mxu0 0.0
        %2339 = vmatpush1.msra.mxu0 %v2336
        %2340 = vmatprep.subr.mxu0 0.0
        %2341 = vmatpush1.msra.mxu0 0.0
        %2342 = vmatprep.subr.mxu0 0.0
        %2343 = vmatpush1.msra.mxu0 0.0
        %2344 = vmatprep.subr.mxu0 0.0
        %2345 = vmatpush1.msra.mxu0 0.0
        %2346 = vmatprep.subr.mxu0 0.0
        %2347 = vmatpush1.msra.mxu0 0.0
        %2348 = vmatprep.subr.mxu0 0.0
        %2349 = vmatpush1.msra.mxu0 0.0
        %2350 = vmatprep.subr.mxu0 0.0
        %2351 = vmatpush1.msra.mxu0 0.0
        %2352 = vmatprep.subr.mxu0 0.0
        %2353 = vmatpush1.msra.mxu0 0.0
        %2354 = vmatprep.subr.mxu0 0.0
        %2355 = vmatpush1.msra.mxu0 0.0
        %2356 = vmatprep.subr.mxu0 0.0
        %2357 = vmatpush1.msra.mxu0 0.0
        %2358 = vmatprep.subr.mxu0 0.0
        %2359 = vmatpush1.msra.mxu0 0.0
        %2360 = vmatprep.subr.mxu0 0.0
        %2361 = vmatpush1.msra.mxu0 0.0
        %2362 = vmatprep.subr.mxu0 0.0
        %2363 = vmatpush1.msra.mxu0 0.0
        %2364 = vmatprep.subr.mxu0 0.0
        %2365 = vmatpush1.msra.mxu0 0.0
        %2366 = vmatprep.subr.mxu0 0.0
        %2367 = vmatpush1.msra.mxu0 0.0
        %2368 = vmatprep.subr.mxu0 0.0
        %2369 = vmatpush1.msra.mxu0 0.0
        %2370 = vmatprep.subr.mxu0 0.0
        %2371 = vmatpush1.msra.mxu0 0.0
        %2372 = vmatprep.subr.mxu0 0.0
        %2373 = vmatpush1.msra.mxu0 0.0
        %2374 = vmatprep.subr.mxu0 0.0
        %2375 = vmatpush1.msra.mxu0 0.0
        %2376 = vmatprep.subr.mxu0 0.0
        %2377 = vmatpush1.msra.mxu0 0.0
        %2378 = vmatprep.subr.mxu0 0.0
        %2379 = vmatpush1.msra.mxu0 0.0
        %2380 = vmatprep.subr.mxu0 0.0
        %2381 = vmatpush1.msra.mxu0 0.0
        %2382 = vmatprep.subr.mxu0 0.0
        %2383 = vmatpush1.msra.mxu0 0.0
        %2384 = vmatprep.subr.mxu0 0.0
        %2385 = vmatpush1.msra.mxu0 0.0
        %2386 = vmatprep.subr.mxu0 0.0
        %2387 = vmatpush1.msra.mxu0 0.0
        %2388 = vmatprep.subr.mxu0 0.0
        %2389 = vmatpush1.msra.mxu0 0.0
        %2390 = vmatprep.subr.mxu0 0.0
        %2391 = vmatpush1.msra.mxu0 0.0
        %2392 = vmatprep.subr.mxu0 0.0
        %2393 = vmatpush1.msra.mxu0 0.0
        %2394 = vmatprep.subr.mxu0 0.0
        %2395 = vmatpush1.msra.mxu0 0.0
        %2396 = vmatprep.subr.mxu0 0.0
        %2397 = vmatpush1.msra.mxu0 0.0
        %2398 = vmatprep.subr.mxu0 0.0
        %2399 = vmatpush1.msra.mxu0 0.0
        %2400 = vmatprep.subr.mxu0 0.0
        %2401 = vmatpush1.msra.mxu0 0.0
        %2402 = vmatprep.mubr.f32.mxu0 0.0
        %2403 = vmatmul.mubr.f32.gmra.mrb[0].mxu0 %v663
        %v2404 = vpop.f32.mrb[0].mxu0
        %v2405 = vadd.f32 0.0, %v2404
        %v2406 = vpop.f32.mrb[0].mxu0
        %2407 = vmatprep.mubr.f32.mxu0 0.0
        %2408 = vmatmul.mubr.f32.gmra.mrb[0].mxu0 %v665
        %v2409 = vpop.f32.mrb[0].mxu0
        %v2410 = vadd.f32 0.0, %v2409
        %v2411 = vpop.f32.mrb[0].mxu0
        %2412 = vmatprep.mubr.f32.mxu0 0.0
        %2413 = vmatmul.mubr.f32.gmra.mrb[0].mxu0 %v667
        %v2414 = vpop.f32.mrb[0].mxu0
        %v2415 = vadd.f32 0.0, %v2414
        %v2416 = vpop.f32.mrb[0].mxu0
        %2417 = vmatprep.mubr.f32.mxu0 0.0
        %2418 = vmatmul.mubr.f32.gmra.mrb[0].mxu0 %v669
        %v2419 = vpop.f32.mrb[0].mxu0
        %v2420 = vadd.f32 0.0, %v2419
        %v2421 = vpop.f32.mrb[0].mxu0
        %2422 = vmatprep.mubr.f32.mxu0 0.0
        %2423 = vmatmul.mubr.f32.gmra.mrb[0].mxu0 %v671
        %v2424 = vpop.f32.mrb[0].mxu0
        %v2425 = vadd.f32 0.0, %v2424
        %v2426 = vpop.f32.mrb[0].mxu0
        %2427 = vmatprep.mubr.f32.mxu0 0.0
        %2428 = vmatmul.mubr.f32.gmra.mrb[0].mxu0 %v673
        %v2429 = vpop.f32.mrb[0].mxu0
        %v2430 = vadd.f32 0.0, %v2429
        %v2431 = vpop.f32.mrb[0].mxu0
        %2432 = vmatprep.mubr.f32.mxu0 0.0
        %2433 = vmatmul.mubr.f32.gmra.mrb[0].mxu0 %v675
        %v2434 = vpop.f32.mrb[0].mxu0
        %v2435 = vadd.f32 0.0, %v2434
        %v2436 = vpop.f32.mrb[0].mxu0
        %2437 = vmatprep.mubr.f32.mxu0 0.0
        %2438 = vmatmul.mubr.f32.gmra.mrb[0].mxu0 %v677
        %v2439 = vpop.f32.mrb[0].mxu0
        %v2440 = vadd.f32 0.0, %v2439
        %v2441 = vpop.f32.mrb[0].mxu0
        %2442 = vmatprep.mubr.f32.mxu0 0.0
        %2443 = vmatmul.mubr.f32.gmra.mrb[0].mxu0 %v679
        %v2444 = vpop.f32.mrb[0].mxu0
        %v2445 = vadd.f32 0.0, %v2444
        %v2446 = vpop.f32.mrb[0].mxu0
        %2447 = vmatprep.mubr.f32.mxu0 0.0
        %2448 = vmatmul.mubr.f32.gmra.mrb[0].mxu0 %v681
        %v2449 = vpop.f32.mrb[0].mxu0
        %v2450 = vadd.f32 0.0, %v2449
        %v2451 = vpop.f32.mrb[0].mxu0
        %2452 = vmatprep.mubr.f32.mxu0 0.0
        %2453 = vmatmul.mubr.f32.gmra.mrb[0].mxu0 %v683
        %v2454 = vpop.f32.mrb[0].mxu0
        %v2455 = vadd.f32 0.0, %v2454
        %v2456 = vpop.f32.mrb[0].mxu0
        %2457 = vmatprep.mubr.f32.mxu0 0.0
        %2458 = vmatmul.mubr.f32.gmra.mrb[0].mxu0 %v685
        %v2459 = vpop.f32.mrb[0].mxu0
        %v2460 = vadd.f32 0.0, %v2459
        %v2461 = vpop.f32.mrb[0].mxu0
        %2462 = vmatprep.mubr.f32.mxu0 0.0
        %2463 = vmatmul.mubr.f32.gmra.mrb[0].mxu0 %v687
        %v2464 = vpop.f32.mrb[0].mxu0
        %v2465 = vadd.f32 0.0, %v2464
        %v2466 = vpop.f32.mrb[0].mxu0
        %2467 = vmatprep.mubr.f32.mxu0 0.0
        %2468 = vmatmul.mubr.f32.gmra.mrb[0].mxu0 %v689
        %v2469 = vpop.f32.mrb[0].mxu0
        %v2470 = vadd.f32 0.0, %v2469
        %v2471 = vpop.f32.mrb[0].mxu0
        %2472 = vmatprep.mubr.f32.mxu0 0.0
        %2473 = vmatmul.mubr.f32.gmra.mrb[0].mxu0 %v691
        %v2474 = vpop.f32.mrb[0].mxu0
        %v2475 = vadd.f32 0.0, %v2474
        %v2476 = vpop.f32.mrb[0].mxu0
        %2477 = vmatprep.mubr.f32.mxu0 0.0
        %2478 = vmatmul.mubr.f32.gmra.mrb[0].mxu0 %v693
        %v2479 = vpop.f32.mrb[0].mxu0
        %v2480 = vadd.f32 0.0, %v2479
        %v2481 = vpop.f32.mrb[0].mxu0
        %2482 = vmatprep.mubr.f32.mxu0 0.0
        %2483 = vmatmul.mubr.f32.gmra.mrb[0].mxu0 %v695
        %v2484 = vpop.f32.mrb[0].mxu0
        %v2485 = vadd.f32 0.0, %v2484
        %v2486 = vpop.f32.mrb[0].mxu0
        %2487 = vmatprep.mubr.f32.mxu0 0.0
        %2488 = vmatmul.mubr.f32.gmra.mrb[0].mxu0 %v697
        %v2489 = vpop.f32.mrb[0].mxu0
        %v2490 = vadd.f32 0.0, %v2489
        %v2491 = vpop.f32.mrb[0].mxu0
        %2492 = vmatprep.mubr.f32.mxu0 0.0
        %2493 = vmatmul.mubr.f32.gmra.mrb[0].mxu0 %v699
        %v2494 = vpop.f32.mrb[0].mxu0
        %v2495 = vadd.f32 0.0, %v2494
        %v2496 = vpop.f32.mrb[0].mxu0
        %2497 = vmatprep.mubr.f32.mxu0 0.0
        %2498 = vmatmul.mubr.f32.gmra.mrb[0].mxu0 %v701
        %v2499 = vpop.f32.mrb[0].mxu0
        %v2500 = vadd.f32 0.0, %v2499
        %v2501 = vpop.f32.mrb[0].mxu0
        %2502 = vmatprep.mubr.f32.mxu0 0.0
        %2503 = vmatmul.mubr.f32.gmra.mrb[0].mxu0 %v703
        %v2504 = vpop.f32.mrb[0].mxu0
        %v2505 = vadd.f32 0.0, %v2504
        %v2506 = vpop.f32.mrb[0].mxu0
        %2507 = vmatprep.mubr.f32.mxu0 0.0
        %2508 = vmatmul.mubr.f32.gmra.mrb[0].mxu0 %v705
        %v2509 = vpop.f32.mrb[0].mxu0
        %v2510 = vadd.f32 0.0, %v2509
        %v2511 = vpop.f32.mrb[0].mxu0
        %2512 = vmatprep.mubr.f32.mxu0 0.0
        %2513 = vmatmul.mubr.f32.gmra.mrb[0].mxu0 %v707
        %v2514 = vpop.f32.mrb[0].mxu0
        %v2515 = vadd.f32 0.0, %v2514
        %v2516 = vpop.f32.mrb[0].mxu0
        %2517 = vmatprep.mubr.f32.mxu0 0.0
        %2518 = vmatmul.mubr.f32.gmra.mrb[0].mxu0 %v709
        %v2519 = vpop.f32.mrb[0].mxu0
        %v2520 = vadd.f32 0.0, %v2519
        %v2521 = vpop.f32.mrb[0].mxu0
        %2522 = vmatprep.mubr.f32.mxu0 0.0
        %2523 = vmatmul.mubr.f32.gmra.mrb[0].mxu0 %v1571
        %v2524 = vpop.f32.mrb[0].mxu0
        %v2525 = vadd.f32 0.0, %v2524
        %v2526 = vpop.f32.mrb[0].mxu0
        %2527 = vmatprep.mubr.f32.mxu0 0.0
        %2528 = vmatmul.mubr.f32.gmra.mrb[0].mxu0 %v1573
        %v2529 = vpop.f32.mrb[0].mxu0
        %v2530 = vadd.f32 0.0, %v2529
        %v2531 = vpop.f32.mrb[0].mxu0
        %2532 = vmatprep.mubr.f32.mxu0 0.0
        %2533 = vmatmul.mubr.f32.gmra.mrb[0].mxu0 %v2329
        %v2534 = vpop.f32.mrb[0].mxu0
        %v2535 = vadd.f32 0.0, %v2534
        %v2536 = vpop.f32.mrb[0].mxu0
        %2537 = vmatprep.mubr.f32.mxu0 0.0
        %2538 = vmatmul.mubr.f32.gmra.mrb[0].mxu0 %v2331
        %v2539 = vpop.f32.mrb[0].mxu0
        %v2540 = vadd.f32 0.0, %v2539
        %v2541 = vpop.f32.mrb[0].mxu0
        %2542 = vmatprep.mubr.f32.mxu0 0.0
        %2543 = vmatmul.mubr.f32.gmra.mrb[0].mxu0 %v2333
        %v2544 = vpop.f32.mrb[0].mxu0
        %v2545 = vadd.f32 0.0, %v2544
        %v2546 = vpop.f32.mrb[0].mxu0
        %2547 = vdwg.mxu0
        %v2548 = vadd.f32 %v2294, %v2405
        %v2549 = vadd.f32 %v2295, %v2410
        %v2550 = vadd.f32 %v2296, %v2415
        %v2551 = vadd.f32 %v2297, %v2420
        %v2552 = vadd.f32 %v2298, %v2425
        %v2553 = vadd.f32 %v2299, %v2430
        %v2554 = vadd.f32 %v2300, %v2435
        %v2555 = vadd.f32 %v2301, %v2440
        %v2556 = vadd.f32 %v2302, %v2445
        %v2557 = vadd.f32 %v2303, %v2450
        %v2558 = vadd.f32 %v2304, %v2455
        %v2559 = vadd.f32 %v2305, %v2460
        %v2560 = vadd.f32 %v2306, %v2465
        %v2561 = vadd.f32 %v2307, %v2470
        %v2562 = vadd.f32 %v2308, %v2475
        %v2563 = vadd.f32 %v2309, %v2480
        %v2564 = vadd.f32 %v2310, %v2485
        %v2565 = vadd.f32 %v2311, %v2490
        %v2566 = vadd.f32 %v2312, %v2495
        %v2567 = vadd.f32 %v2313, %v2500
        %v2568 = vadd.f32 %v2314, %v2505
        %v2569 = vadd.f32 %v2315, %v2510
        %v2570 = vadd.f32 %v2316, %v2515
        %v2571 = vadd.f32 %v2317, %v2520
        %v2572 = vadd.f32 %v2318, %v2525
        %v2573 = vadd.f32 %v2319, %v2530
        %v2574 = vadd.f32 %v2320, %v2535
        %v2575 = vadd.f32 %v2321, %v2540
        %v2576 = vadd.f32 %v2322, %v2545
        %s2577 = scalar_lea.vmem %s1, 32
        %v2578 = vld [vmem:[%s2577] sm:$0xf]
        %v2579 = vrot.slane %v254, 2
        %v2580 = vsel %vm957, %v1823, %v2579
        %v2581 = vrot.slane %v255, 2
        %v2582 = vsel %vm957, %v2579, %v2581
        %v2583 = vsel %vm264, %v2580, 0
        %v2585 = vsel %vm264, %v2582, 0
        %v2587 = vsel %vm264, %v2581, 0
        %v2590 = vsel %vm352, %v2578, 0
        %2592 = vmatprep.subr.mxu0 0.0
        %2593 = vmatpush1.msra.mxu0 %v2590
        %2594 = vmatprep.subr.mxu0 0.0
        %2595 = vmatpush1.msra.mxu0 0.0
        %2596 = vmatprep.subr.mxu0 0.0
        %2597 = vmatpush1.msra.mxu0 0.0
        %2598 = vmatprep.subr.mxu0 0.0
        %2599 = vmatpush1.msra.mxu0 0.0
        %2600 = vmatprep.subr.mxu0 0.0
        %2601 = vmatpush1.msra.mxu0 0.0
        %2602 = vmatprep.subr.mxu0 0.0
        %2603 = vmatpush1.msra.mxu0 0.0
        %2604 = vmatprep.subr.mxu0 0.0
        %2605 = vmatpush1.msra.mxu0 0.0
        %2606 = vmatprep.subr.mxu0 0.0
        %2607 = vmatpush1.msra.mxu0 0.0
        %2608 = vmatprep.subr.mxu0 0.0
        %2609 = vmatpush1.msra.mxu0 0.0
        %2610 = vmatprep.subr.mxu0 0.0
        %2611 = vmatpush1.msra.mxu0 0.0
        %2612 = vmatprep.subr.mxu0 0.0
        %2613 = vmatpush1.msra.mxu0 0.0
        %2614 = vmatprep.subr.mxu0 0.0
        %2615 = vmatpush1.msra.mxu0 0.0
        %2616 = vmatprep.subr.mxu0 0.0
        %2617 = vmatpush1.msra.mxu0 0.0
        %2618 = vmatprep.subr.mxu0 0.0
        %2619 = vmatpush1.msra.mxu0 0.0
        %2620 = vmatprep.subr.mxu0 0.0
        %2621 = vmatpush1.msra.mxu0 0.0
        %2622 = vmatprep.subr.mxu0 0.0
        %2623 = vmatpush1.msra.mxu0 0.0
        %2624 = vmatprep.subr.mxu0 0.0
        %2625 = vmatpush1.msra.mxu0 0.0
        %2626 = vmatprep.subr.mxu0 0.0
        %2627 = vmatpush1.msra.mxu0 0.0
        %2628 = vmatprep.subr.mxu0 0.0
        %2629 = vmatpush1.msra.mxu0 0.0
        %2630 = vmatprep.subr.mxu0 0.0
        %2631 = vmatpush1.msra.mxu0 0.0
        %2632 = vmatprep.subr.mxu0 0.0
        %2633 = vmatpush1.msra.mxu0 0.0
        %2634 = vmatprep.subr.mxu0 0.0
        %2635 = vmatpush1.msra.mxu0 0.0
        %2636 = vmatprep.subr.mxu0 0.0
        %2637 = vmatpush1.msra.mxu0 0.0
        %2638 = vmatprep.subr.mxu0 0.0
        %2639 = vmatpush1.msra.mxu0 0.0
        %2640 = vmatprep.subr.mxu0 0.0
        %2641 = vmatpush1.msra.mxu0 0.0
        %2642 = vmatprep.subr.mxu0 0.0
        %2643 = vmatpush1.msra.mxu0 0.0
        %2644 = vmatprep.subr.mxu0 0.0
        %2645 = vmatpush1.msra.mxu0 0.0
        %2646 = vmatprep.subr.mxu0 0.0
        %2647 = vmatpush1.msra.mxu0 0.0
        %2648 = vmatprep.subr.mxu0 0.0
        %2649 = vmatpush1.msra.mxu0 0.0
        %2650 = vmatprep.subr.mxu0 0.0
        %2651 = vmatpush1.msra.mxu0 0.0
        %2652 = vmatprep.subr.mxu0 0.0
        %2653 = vmatpush1.msra.mxu0 0.0
        %2654 = vmatprep.subr.mxu0 0.0
        %2655 = vmatpush1.msra.mxu0 0.0
        %2656 = vmatprep.mubr.f32.mxu0 0.0
        %2657 = vmatmul.mubr.f32.gmra.mrb[0].mxu0 %v1023
        %v2658 = vpop.f32.mrb[0].mxu0
        %v2659 = vadd.f32 0.0, %v2658
        %v2660 = vpop.f32.mrb[0].mxu0
        %2661 = vmatprep.mubr.f32.mxu0 0.0
        %2662 = vmatmul.mubr.f32.gmra.mrb[0].mxu0 %v1025
        %v2663 = vpop.f32.mrb[0].mxu0
        %v2664 = vadd.f32 0.0, %v2663
        %v2665 = vpop.f32.mrb[0].mxu0
        %2666 = vmatprep.mubr.f32.mxu0 0.0
        %2667 = vmatmul.mubr.f32.gmra.mrb[0].mxu0 %v1027
        %v2668 = vpop.f32.mrb[0].mxu0
        %v2669 = vadd.f32 0.0, %v2668
        %v2670 = vpop.f32.mrb[0].mxu0
        %2671 = vmatprep.mubr.f32.mxu0 0.0
        %2672 = vmatmul.mubr.f32.gmra.mrb[0].mxu0 %v1029
        %v2673 = vpop.f32.mrb[0].mxu0
        %v2674 = vadd.f32 0.0, %v2673
        %v2675 = vpop.f32.mrb[0].mxu0
        %2676 = vmatprep.mubr.f32.mxu0 0.0
        %2677 = vmatmul.mubr.f32.gmra.mrb[0].mxu0 %v1031
        %v2678 = vpop.f32.mrb[0].mxu0
        %v2679 = vadd.f32 0.0, %v2678
        %v2680 = vpop.f32.mrb[0].mxu0
        %2681 = vmatprep.mubr.f32.mxu0 0.0
        %2682 = vmatmul.mubr.f32.gmra.mrb[0].mxu0 %v1033
        %v2683 = vpop.f32.mrb[0].mxu0
        %v2684 = vadd.f32 0.0, %v2683
        %v2685 = vpop.f32.mrb[0].mxu0
        %2686 = vmatprep.mubr.f32.mxu0 0.0
        %2687 = vmatmul.mubr.f32.gmra.mrb[0].mxu0 %v1035
        %v2688 = vpop.f32.mrb[0].mxu0
        %v2689 = vadd.f32 0.0, %v2688
        %v2690 = vpop.f32.mrb[0].mxu0
        %2691 = vmatprep.mubr.f32.mxu0 0.0
        %2692 = vmatmul.mubr.f32.gmra.mrb[0].mxu0 %v1037
        %v2693 = vpop.f32.mrb[0].mxu0
        %v2694 = vadd.f32 0.0, %v2693
        %v2695 = vpop.f32.mrb[0].mxu0
        %2696 = vmatprep.mubr.f32.mxu0 0.0
        %2697 = vmatmul.mubr.f32.gmra.mrb[0].mxu0 %v1039
        %v2698 = vpop.f32.mrb[0].mxu0
        %v2699 = vadd.f32 0.0, %v2698
        %v2700 = vpop.f32.mrb[0].mxu0
        %2701 = vmatprep.mubr.f32.mxu0 0.0
        %2702 = vmatmul.mubr.f32.gmra.mrb[0].mxu0 %v1041
        %v2703 = vpop.f32.mrb[0].mxu0
        %v2704 = vadd.f32 0.0, %v2703
        %v2705 = vpop.f32.mrb[0].mxu0
        %2706 = vmatprep.mubr.f32.mxu0 0.0
        %2707 = vmatmul.mubr.f32.gmra.mrb[0].mxu0 %v1043
        %v2708 = vpop.f32.mrb[0].mxu0
        %v2709 = vadd.f32 0.0, %v2708
        %v2710 = vpop.f32.mrb[0].mxu0
        %2711 = vmatprep.mubr.f32.mxu0 0.0
        %2712 = vmatmul.mubr.f32.gmra.mrb[0].mxu0 %v1045
        %v2713 = vpop.f32.mrb[0].mxu0
        %v2714 = vadd.f32 0.0, %v2713
        %v2715 = vpop.f32.mrb[0].mxu0
        %2716 = vmatprep.mubr.f32.mxu0 0.0
        %2717 = vmatmul.mubr.f32.gmra.mrb[0].mxu0 %v1047
        %v2718 = vpop.f32.mrb[0].mxu0
        %v2719 = vadd.f32 0.0, %v2718
        %v2720 = vpop.f32.mrb[0].mxu0
        %2721 = vmatprep.mubr.f32.mxu0 0.0
        %2722 = vmatmul.mubr.f32.gmra.mrb[0].mxu0 %v1049
        %v2723 = vpop.f32.mrb[0].mxu0
        %v2724 = vadd.f32 0.0, %v2723
        %v2725 = vpop.f32.mrb[0].mxu0
        %2726 = vmatprep.mubr.f32.mxu0 0.0
        %2727 = vmatmul.mubr.f32.gmra.mrb[0].mxu0 %v1051
        %v2728 = vpop.f32.mrb[0].mxu0
        %v2729 = vadd.f32 0.0, %v2728
        %v2730 = vpop.f32.mrb[0].mxu0
        %2731 = vmatprep.mubr.f32.mxu0 0.0
        %2732 = vmatmul.mubr.f32.gmra.mrb[0].mxu0 %v1053
        %v2733 = vpop.f32.mrb[0].mxu0
        %v2734 = vadd.f32 0.0, %v2733
        %v2735 = vpop.f32.mrb[0].mxu0
        %2736 = vmatprep.mubr.f32.mxu0 0.0
        %2737 = vmatmul.mubr.f32.gmra.mrb[0].mxu0 %v1055
        %v2738 = vpop.f32.mrb[0].mxu0
        %v2739 = vadd.f32 0.0, %v2738
        %v2740 = vpop.f32.mrb[0].mxu0
        %2741 = vmatprep.mubr.f32.mxu0 0.0
        %2742 = vmatmul.mubr.f32.gmra.mrb[0].mxu0 %v1057
        %v2743 = vpop.f32.mrb[0].mxu0
        %v2744 = vadd.f32 0.0, %v2743
        %v2745 = vpop.f32.mrb[0].mxu0
        %2746 = vmatprep.mubr.f32.mxu0 0.0
        %2747 = vmatmul.mubr.f32.gmra.mrb[0].mxu0 %v1059
        %v2748 = vpop.f32.mrb[0].mxu0
        %v2749 = vadd.f32 0.0, %v2748
        %v2750 = vpop.f32.mrb[0].mxu0
        %2751 = vmatprep.mubr.f32.mxu0 0.0
        %2752 = vmatmul.mubr.f32.gmra.mrb[0].mxu0 %v1061
        %v2753 = vpop.f32.mrb[0].mxu0
        %v2754 = vadd.f32 0.0, %v2753
        %v2755 = vpop.f32.mrb[0].mxu0
        %2756 = vmatprep.mubr.f32.mxu0 0.0
        %2757 = vmatmul.mubr.f32.gmra.mrb[0].mxu0 %v1063
        %v2758 = vpop.f32.mrb[0].mxu0
        %v2759 = vadd.f32 0.0, %v2758
        %v2760 = vpop.f32.mrb[0].mxu0
        %2761 = vmatprep.mubr.f32.mxu0 0.0
        %2762 = vmatmul.mubr.f32.gmra.mrb[0].mxu0 %v1065
        %v2763 = vpop.f32.mrb[0].mxu0
        %v2764 = vadd.f32 0.0, %v2763
        %v2765 = vpop.f32.mrb[0].mxu0
        %2766 = vmatprep.mubr.f32.mxu0 0.0
        %2767 = vmatmul.mubr.f32.gmra.mrb[0].mxu0 %v1067
        %v2768 = vpop.f32.mrb[0].mxu0
        %v2769 = vadd.f32 0.0, %v2768
        %v2770 = vpop.f32.mrb[0].mxu0
        %2771 = vmatprep.mubr.f32.mxu0 0.0
        %2772 = vmatmul.mubr.f32.gmra.mrb[0].mxu0 %v1069
        %v2773 = vpop.f32.mrb[0].mxu0
        %v2774 = vadd.f32 0.0, %v2773
        %v2775 = vpop.f32.mrb[0].mxu0
        %2776 = vmatprep.mubr.f32.mxu0 0.0
        %2777 = vmatmul.mubr.f32.gmra.mrb[0].mxu0 %v1825
        %v2778 = vpop.f32.mrb[0].mxu0
        %v2779 = vadd.f32 0.0, %v2778
        %v2780 = vpop.f32.mrb[0].mxu0
        %2781 = vmatprep.mubr.f32.mxu0 0.0
        %2782 = vmatmul.mubr.f32.gmra.mrb[0].mxu0 %v1827
        %v2783 = vpop.f32.mrb[0].mxu0
        %v2784 = vadd.f32 0.0, %v2783
        %v2785 = vpop.f32.mrb[0].mxu0
        %2786 = vmatprep.mubr.f32.mxu0 0.0
        %2787 = vmatmul.mubr.f32.gmra.mrb[0].mxu0 %v2583
        %v2788 = vpop.f32.mrb[0].mxu0
        %v2789 = vadd.f32 0.0, %v2788
        %v2790 = vpop.f32.mrb[0].mxu0
        %2791 = vmatprep.mubr.f32.mxu0 0.0
        %2792 = vmatmul.mubr.f32.gmra.mrb[0].mxu0 %v2585
        %v2793 = vpop.f32.mrb[0].mxu0
        %v2794 = vadd.f32 0.0, %v2793
        %v2795 = vpop.f32.mrb[0].mxu0
        %2796 = vmatprep.mubr.f32.mxu0 0.0
        %2797 = vmatmul.mubr.f32.gmra.mrb[0].mxu0 %v2587
        %v2798 = vpop.f32.mrb[0].mxu0
        %v2799 = vadd.f32 0.0, %v2798
        %v2800 = vpop.f32.mrb[0].mxu0
        %2801 = vdwg.mxu0
        %v2802 = vadd.f32 %v2548, %v2659
        %v2803 = vadd.f32 %v2549, %v2664
        %v2804 = vadd.f32 %v2550, %v2669
        %v2805 = vadd.f32 %v2551, %v2674
        %v2806 = vadd.f32 %v2552, %v2679
        %v2807 = vadd.f32 %v2553, %v2684
        %v2808 = vadd.f32 %v2554, %v2689
        %v2809 = vadd.f32 %v2555, %v2694
        %v2810 = vadd.f32 %v2556, %v2699
        %v2811 = vadd.f32 %v2557, %v2704
        %v2812 = vadd.f32 %v2558, %v2709
        %v2813 = vadd.f32 %v2559, %v2714
        %v2814 = vadd.f32 %v2560, %v2719
        %v2815 = vadd.f32 %v2561, %v2724
        %v2816 = vadd.f32 %v2562, %v2729
        %v2817 = vadd.f32 %v2563, %v2734
        %v2818 = vadd.f32 %v2564, %v2739
        %v2819 = vadd.f32 %v2565, %v2744
        %v2820 = vadd.f32 %v2566, %v2749
        %v2821 = vadd.f32 %v2567, %v2754
        %v2822 = vadd.f32 %v2568, %v2759
        %v2823 = vadd.f32 %v2569, %v2764
        %v2824 = vadd.f32 %v2570, %v2769
        %v2825 = vadd.f32 %v2571, %v2774
        %v2826 = vadd.f32 %v2572, %v2779
        %v2827 = vadd.f32 %v2573, %v2784
        %v2828 = vadd.f32 %v2574, %v2789
        %v2829 = vadd.f32 %v2575, %v2794
        %v2830 = vadd.f32 %v2576, %v2799
        %v2831 = vmax.f32 %v2802, 0.0
        %v2832 = vmax.f32 %v2803, 0.0
        %v2833 = vmax.f32 %v2804, 0.0
        %v2834 = vmax.f32 %v2805, 0.0
        %v2835 = vmax.f32 %v2806, 0.0
        %v2836 = vmax.f32 %v2807, 0.0
        %v2837 = vmax.f32 %v2808, 0.0
        %v2838 = vmax.f32 %v2809, 0.0
        %v2839 = vmax.f32 %v2810, 0.0
        %v2840 = vmax.f32 %v2811, 0.0
        %v2841 = vmax.f32 %v2812, 0.0
        %v2842 = vmax.f32 %v2813, 0.0
        %v2843 = vmax.f32 %v2814, 0.0
        %v2844 = vmax.f32 %v2815, 0.0
        %v2845 = vmax.f32 %v2816, 0.0
        %v2846 = vmax.f32 %v2817, 0.0
        %v2847 = vmax.f32 %v2818, 0.0
        %v2848 = vmax.f32 %v2819, 0.0
        %v2849 = vmax.f32 %v2820, 0.0
        %v2850 = vmax.f32 %v2821, 0.0
        %v2851 = vmax.f32 %v2822, 0.0
        %v2852 = vmax.f32 %v2823, 0.0
        %v2853 = vmax.f32 %v2824, 0.0
        %v2854 = vmax.f32 %v2825, 0.0
        %v2855 = vmax.f32 %v2826, 0.0
        %v2856 = vmax.f32 %v2827, 0.0
        %v2857 = vmax.f32 %v2828, 0.0
        %v2858 = vmax.f32 %v2829, 0.0
        %v2859 = vmax.f32 %v2830, 0.0
        %v2860 = vld [vmem:[%s4] sm:$0x1]
        %v2862 = vlaneseq
        %v2863 = vshrl.u32 %v2862, 7
        %v2864 = vsub.s32 0, %v2863
        %v2865 = vrot.slane %v2860, %v2864
        %v2867 = vld [vmem:[%s3] sm:$0xff]
        %vm2868 = vcmask 64512
        %v2870 = vsel %vm2868, %v2831, 0
        %v2873 = vsel %vm2868, %v2832, 0
        %v2876 = vsel %vm2868, %v2833, 0
        %v2879 = vsel %vm2868, %v2834, 0
        %v2882 = vsel %vm2868, %v2835, 0
        %v2885 = vsel %vm2868, %v2836, 0
        %v2888 = vsel %vm2868, %v2837, 0
        %v2891 = vsel %vm2868, %v2838, 0
        %v2894 = vsel %vm2868, %v2839, 0
        %v2897 = vsel %vm2868, %v2840, 0
        %v2900 = vsel %vm2868, %v2841, 0
        %v2903 = vsel %vm2868, %v2842, 0
        %v2906 = vsel %vm2868, %v2843, 0
        %v2909 = vsel %vm2868, %v2844, 0
        %v2912 = vsel %vm2868, %v2845, 0
        %v2915 = vsel %vm2868, %v2846, 0
        %v2918 = vsel %vm2868, %v2847, 0
        %v2921 = vsel %vm2868, %v2848, 0
        %v2924 = vsel %vm2868, %v2849, 0
        %v2927 = vsel %vm2868, %v2850, 0
        %v2930 = vsel %vm2868, %v2851, 0
        %v2933 = vsel %vm2868, %v2852, 0
        %v2936 = vsel %vm2868, %v2853, 0
        %v2939 = vsel %vm2868, %v2854, 0
        %2941 = vmatprep.subr.mxu0 0.0
        %2942 = vmatpush1.msra.mxu0 %v2867
        %2943 = vmatprep.subr.mxu0 0.0
        %2944 = vmatpush1.msra.mxu0 0.0
        %2945 = vmatprep.subr.mxu0 0.0
        %2946 = vmatpush1.msra.mxu0 0.0
        %2947 = vmatprep.subr.mxu0 0.0
        %2948 = vmatpush1.msra.mxu0 0.0
        %2949 = vmatprep.subr.mxu0 0.0
        %2950 = vmatpush1.msra.mxu0 0.0
        %2951 = vmatprep.subr.mxu0 0.0
        %2952 = vmatpush1.msra.mxu0 0.0
        %2953 = vmatprep.subr.mxu0 0.0
        %2954 = vmatpush1.msra.mxu0 0.0
        %2955 = vmatprep.subr.mxu0 0.0
        %2956 = vmatpush1.msra.mxu0 0.0
        %2957 = vmatprep.subr.mxu0 0.0
        %2958 = vmatpush1.msra.mxu0 0.0
        %2959 = vmatprep.subr.mxu0 0.0
        %2960 = vmatpush1.msra.mxu0 0.0
        %2961 = vmatprep.subr.mxu0 0.0
        %2962 = vmatpush1.msra.mxu0 0.0
        %2963 = vmatprep.subr.mxu0 0.0
        %2964 = vmatpush1.msra.mxu0 0.0
        %2965 = vmatprep.subr.mxu0 0.0
        %2966 = vmatpush1.msra.mxu0 0.0
        %2967 = vmatprep.subr.mxu0 0.0
        %2968 = vmatpush1.msra.mxu0 0.0
        %2969 = vmatprep.subr.mxu0 0.0
        %2970 = vmatpush1.msra.mxu0 0.0
        %2971 = vmatprep.subr.mxu0 0.0
        %2972 = vmatpush1.msra.mxu0 0.0
        %2973 = vmatprep.subr.mxu0 0.0
        %2974 = vmatpush1.msra.mxu0 0.0
        %2975 = vmatprep.subr.mxu0 0.0
        %2976 = vmatpush1.msra.mxu0 0.0
        %2977 = vmatprep.subr.mxu0 0.0
        %2978 = vmatpush1.msra.mxu0 0.0
        %2979 = vmatprep.subr.mxu0 0.0
        %2980 = vmatpush1.msra.mxu0 0.0
        %2981 = vmatprep.subr.mxu0 0.0
        %2982 = vmatpush1.msra.mxu0 0.0
        %2983 = vmatprep.subr.mxu0 0.0
        %2984 = vmatpush1.msra.mxu0 0.0
        %2985 = vmatprep.subr.mxu0 0.0
        %2986 = vmatpush1.msra.mxu0 0.0
        %2987 = vmatprep.subr.mxu0 0.0
        %2988 = vmatpush1.msra.mxu0 0.0
        %2989 = vmatprep.subr.mxu0 0.0
        %2990 = vmatpush1.msra.mxu0 0.0
        %2991 = vmatprep.subr.mxu0 0.0
        %2992 = vmatpush1.msra.mxu0 0.0
        %2993 = vmatprep.subr.mxu0 0.0
        %2994 = vmatpush1.msra.mxu0 0.0
        %2995 = vmatprep.subr.mxu0 0.0
        %2996 = vmatpush1.msra.mxu0 0.0
        %2997 = vmatprep.subr.mxu0 0.0
        %2998 = vmatpush1.msra.mxu0 0.0
        %2999 = vmatprep.subr.mxu0 0.0
        %3000 = vmatpush1.msra.mxu0 0.0
        %3001 = vmatprep.subr.mxu0 0.0
        %3002 = vmatpush1.msra.mxu0 0.0
        %3003 = vmatprep.subr.mxu0 0.0
        %3004 = vmatpush1.msra.mxu0 0.0
        %3005 = vmatprep.mubr.f32.mxu0 0.0
        %3006 = vmatmul.mubr.f32.gmra.mrb[0].mxu0 %v2870
        %v3007 = vpop.f32.mrb[0].mxu0
        %v3008 = vadd.f32 0.0, %v3007
        %v3009 = vpop.f32.mrb[0].mxu0
        %3010 = vmatprep.mubr.f32.mxu0 0.0
        %3011 = vmatmul.mubr.f32.gmra.mrb[0].mxu0 %v2873
        %v3012 = vpop.f32.mrb[0].mxu0
        %v3013 = vadd.f32 0.0, %v3012
        %v3014 = vpop.f32.mrb[0].mxu0
        %3015 = vmatprep.mubr.f32.mxu0 0.0
        %3016 = vmatmul.mubr.f32.gmra.mrb[0].mxu0 %v2876
        %v3017 = vpop.f32.mrb[0].mxu0
        %v3018 = vadd.f32 0.0, %v3017
        %v3019 = vpop.f32.mrb[0].mxu0
        %3020 = vmatprep.mubr.f32.mxu0 0.0
        %3021 = vmatmul.mubr.f32.gmra.mrb[0].mxu0 %v2879
        %v3022 = vpop.f32.mrb[0].mxu0
        %v3023 = vadd.f32 0.0, %v3022
        %v3024 = vpop.f32.mrb[0].mxu0
        %3025 = vmatprep.mubr.f32.mxu0 0.0
        %3026 = vmatmul.mubr.f32.gmra.mrb[0].mxu0 %v2882
        %v3027 = vpop.f32.mrb[0].mxu0
        %v3028 = vadd.f32 0.0, %v3027
        %v3029 = vpop.f32.mrb[0].mxu0
        %3030 = vmatprep.mubr.f32.mxu0 0.0
        %3031 = vmatmul.mubr.f32.gmra.mrb[0].mxu0 %v2885
        %v3032 = vpop.f32.mrb[0].mxu0
        %v3033 = vadd.f32 0.0, %v3032
        %v3034 = vpop.f32.mrb[0].mxu0
        %3035 = vmatprep.mubr.f32.mxu0 0.0
        %3036 = vmatmul.mubr.f32.gmra.mrb[0].mxu0 %v2888
        %v3037 = vpop.f32.mrb[0].mxu0
        %v3038 = vadd.f32 0.0, %v3037
        %v3039 = vpop.f32.mrb[0].mxu0
        %3040 = vmatprep.mubr.f32.mxu0 0.0
        %3041 = vmatmul.mubr.f32.gmra.mrb[0].mxu0 %v2891
        %v3042 = vpop.f32.mrb[0].mxu0
        %v3043 = vadd.f32 0.0, %v3042
        %v3044 = vpop.f32.mrb[0].mxu0
        %3045 = vmatprep.mubr.f32.mxu0 0.0
        %3046 = vmatmul.mubr.f32.gmra.mrb[0].mxu0 %v2894
        %v3047 = vpop.f32.mrb[0].mxu0
        %v3048 = vadd.f32 0.0, %v3047
        %v3049 = vpop.f32.mrb[0].mxu0
        %3050 = vmatprep.mubr.f32.mxu0 0.0
        %3051 = vmatmul.mubr.f32.gmra.mrb[0].mxu0 %v2897
        %v3052 = vpop.f32.mrb[0].mxu0
        %v3053 = vadd.f32 0.0, %v3052
        %v3054 = vpop.f32.mrb[0].mxu0
        %3055 = vmatprep.mubr.f32.mxu0 0.0
        %3056 = vmatmul.mubr.f32.gmra.mrb[0].mxu0 %v2900
        %v3057 = vpop.f32.mrb[0].mxu0
        %v3058 = vadd.f32 0.0, %v3057
        %v3059 = vpop.f32.mrb[0].mxu0
        %3060 = vmatprep.mubr.f32.mxu0 0.0
        %3061 = vmatmul.mubr.f32.gmra.mrb[0].mxu0 %v2903
        %v3062 = vpop.f32.mrb[0].mxu0
        %v3063 = vadd.f32 0.0, %v3062
        %v3064 = vpop.f32.mrb[0].mxu0
        %3065 = vmatprep.mubr.f32.mxu0 0.0
        %3066 = vmatmul.mubr.f32.gmra.mrb[0].mxu0 %v2906
        %v3067 = vpop.f32.mrb[0].mxu0
        %v3068 = vadd.f32 0.0, %v3067
        %v3069 = vpop.f32.mrb[0].mxu0
        %3070 = vmatprep.mubr.f32.mxu0 0.0
        %3071 = vmatmul.mubr.f32.gmra.mrb[0].mxu0 %v2909
        %v3072 = vpop.f32.mrb[0].mxu0
        %v3073 = vadd.f32 0.0, %v3072
        %v3074 = vpop.f32.mrb[0].mxu0
        %3075 = vmatprep.mubr.f32.mxu0 0.0
        %3076 = vmatmul.mubr.f32.gmra.mrb[0].mxu0 %v2912
        %v3077 = vpop.f32.mrb[0].mxu0
        %v3078 = vadd.f32 0.0, %v3077
        %v3079 = vpop.f32.mrb[0].mxu0
        %3080 = vmatprep.mubr.f32.mxu0 0.0
        %3081 = vmatmul.mubr.f32.gmra.mrb[0].mxu0 %v2915
        %v3082 = vpop.f32.mrb[0].mxu0
        %v3083 = vadd.f32 0.0, %v3082
        %v3084 = vpop.f32.mrb[0].mxu0
        %3085 = vmatprep.mubr.f32.mxu0 0.0
        %3086 = vmatmul.mubr.f32.gmra.mrb[0].mxu0 %v2918
        %v3087 = vpop.f32.mrb[0].mxu0
        %v3088 = vadd.f32 0.0, %v3087
        %v3089 = vpop.f32.mrb[0].mxu0
        %3090 = vmatprep.mubr.f32.mxu0 0.0
        %3091 = vmatmul.mubr.f32.gmra.mrb[0].mxu0 %v2921
        %v3092 = vpop.f32.mrb[0].mxu0
        %v3093 = vadd.f32 0.0, %v3092
        %v3094 = vpop.f32.mrb[0].mxu0
        %3095 = vmatprep.mubr.f32.mxu0 0.0
        %3096 = vmatmul.mubr.f32.gmra.mrb[0].mxu0 %v2924
        %v3097 = vpop.f32.mrb[0].mxu0
        %v3098 = vadd.f32 0.0, %v3097
        %v3099 = vpop.f32.mrb[0].mxu0
        %3100 = vmatprep.mubr.f32.mxu0 0.0
        %3101 = vmatmul.mubr.f32.gmra.mrb[0].mxu0 %v2927
        %v3102 = vpop.f32.mrb[0].mxu0
        %v3103 = vadd.f32 0.0, %v3102
        %v3104 = vpop.f32.mrb[0].mxu0
        %3105 = vmatprep.mubr.f32.mxu0 0.0
        %3106 = vmatmul.mubr.f32.gmra.mrb[0].mxu0 %v2930
        %v3107 = vpop.f32.mrb[0].mxu0
        %v3108 = vadd.f32 0.0, %v3107
        %v3109 = vpop.f32.mrb[0].mxu0
        %3110 = vmatprep.mubr.f32.mxu0 0.0
        %3111 = vmatmul.mubr.f32.gmra.mrb[0].mxu0 %v2933
        %v3112 = vpop.f32.mrb[0].mxu0
        %v3113 = vadd.f32 0.0, %v3112
        %v3114 = vpop.f32.mrb[0].mxu0
        %3115 = vmatprep.mubr.f32.mxu0 0.0
        %3116 = vmatmul.mubr.f32.gmra.mrb[0].mxu0 %v2936
        %v3117 = vpop.f32.mrb[0].mxu0
        %v3118 = vadd.f32 0.0, %v3117
        %v3119 = vpop.f32.mrb[0].mxu0
        %3120 = vmatprep.mubr.f32.mxu0 0.0
        %3121 = vmatmul.mubr.f32.gmra.mrb[0].mxu0 %v2939
        %v3122 = vpop.f32.mrb[0].mxu0
        %v3123 = vadd.f32 0.0, %v3122
        %v3124 = vpop.f32.mrb[0].mxu0
        %3125 = vdwg.mxu0
        %v3126 = vadd.f32 %v2865, %v3008
        %v3127 = vadd.f32 %v2865, %v3013
        %v3128 = vadd.f32 %v2865, %v3018
        %v3129 = vadd.f32 %v2865, %v3023
        %v3130 = vadd.f32 %v2865, %v3028
        %v3131 = vadd.f32 %v2865, %v3033
        %v3132 = vadd.f32 %v2865, %v3038
        %v3133 = vadd.f32 %v2865, %v3043
        %v3134 = vadd.f32 %v2865, %v3048
        %v3135 = vadd.f32 %v2865, %v3053
        %v3136 = vadd.f32 %v2865, %v3058
        %v3137 = vadd.f32 %v2865, %v3063
        %v3138 = vadd.f32 %v2865, %v3068
        %v3139 = vadd.f32 %v2865, %v3073
        %v3140 = vadd.f32 %v2865, %v3078
        %v3141 = vadd.f32 %v2865, %v3083
        %v3142 = vadd.f32 %v2865, %v3088
        %v3143 = vadd.f32 %v2865, %v3093
        %v3144 = vadd.f32 %v2865, %v3098
        %v3145 = vadd.f32 %v2865, %v3103
        %v3146 = vadd.f32 %v2865, %v3108
        %v3147 = vadd.f32 %v2865, %v3113
        %v3148 = vadd.f32 %v2865, %v3118
        %v3149 = vadd.f32 %v2865, %v3123
        %s3150 = scalar_lea.vmem %s3, 8
        %v3151 = vld [vmem:[%s3150] sm:$0xff]
        %v3153 = vrot.slane %v2831, 1
        %v3154 = vrot.slane %v2832, 1
        %v3155 = vsel %vm597, %v3153, %v3154
        %v3156 = vrot.slane %v2833, 1
        %v3157 = vsel %vm597, %v3154, %v3156
        %v3158 = vrot.slane %v2834, 1
        %v3159 = vsel %vm597, %v3156, %v3158
        %v3160 = vrot.slane %v2835, 1
        %v3161 = vsel %vm597, %v3158, %v3160
        %v3162 = vrot.slane %v2836, 1
        %v3163 = vsel %vm597, %v3160, %v3162
        %v3164 = vrot.slane %v2837, 1
        %v3165 = vsel %vm597, %v3162, %v3164
        %v3166 = vrot.slane %v2838, 1
        %v3167 = vsel %vm597, %v3164, %v3166
        %v3168 = vrot.slane %v2839, 1
        %v3169 = vsel %vm597, %v3166, %v3168
        %v3170 = vrot.slane %v2840, 1
        %v3171 = vsel %vm597, %v3168, %v3170
        %v3172 = vrot.slane %v2841, 1
        %v3173 = vsel %vm597, %v3170, %v3172
        %v3174 = vrot.slane %v2842, 1
        %v3175 = vsel %vm597, %v3172, %v3174
        %v3176 = vrot.slane %v2843, 1
        %v3177 = vsel %vm597, %v3174, %v3176
        %v3178 = vrot.slane %v2844, 1
        %v3179 = vsel %vm597, %v3176, %v3178
        %v3180 = vrot.slane %v2845, 1
        %v3181 = vsel %vm597, %v3178, %v3180
        %v3182 = vrot.slane %v2846, 1
        %v3183 = vsel %vm597, %v3180, %v3182
        %v3184 = vrot.slane %v2847, 1
        %v3185 = vsel %vm597, %v3182, %v3184
        %v3186 = vrot.slane %v2848, 1
        %v3187 = vsel %vm597, %v3184, %v3186
        %v3188 = vrot.slane %v2849, 1
        %v3189 = vsel %vm597, %v3186, %v3188
        %v3190 = vrot.slane %v2850, 1
        %v3191 = vsel %vm597, %v3188, %v3190
        %v3192 = vrot.slane %v2851, 1
        %v3193 = vsel %vm597, %v3190, %v3192
        %v3194 = vrot.slane %v2852, 1
        %v3195 = vsel %vm597, %v3192, %v3194
        %v3196 = vrot.slane %v2853, 1
        %v3197 = vsel %vm597, %v3194, %v3196
        %v3198 = vrot.slane %v2854, 1
        %v3199 = vsel %vm597, %v3196, %v3198
        %v3200 = vrot.slane %v2855, 1
        %v3201 = vsel %vm597, %v3198, %v3200
        %v3202 = vsel %vm2868, %v3155, 0
        %v3204 = vsel %vm2868, %v3157, 0
        %v3206 = vsel %vm2868, %v3159, 0
        %v3208 = vsel %vm2868, %v3161, 0
        %v3210 = vsel %vm2868, %v3163, 0
        %v3212 = vsel %vm2868, %v3165, 0
        %v3214 = vsel %vm2868, %v3167, 0
        %v3216 = vsel %vm2868, %v3169, 0
        %v3218 = vsel %vm2868, %v3171, 0
        %v3220 = vsel %vm2868, %v3173, 0
        %v3222 = vsel %vm2868, %v3175, 0
        %v3224 = vsel %vm2868, %v3177, 0
        %v3226 = vsel %vm2868, %v3179, 0
        %v3228 = vsel %vm2868, %v3181, 0
        %v3230 = vsel %vm2868, %v3183, 0
        %v3232 = vsel %vm2868, %v3185, 0
        %v3234 = vsel %vm2868, %v3187, 0
        %v3236 = vsel %vm2868, %v3189, 0
        %v3238 = vsel %vm2868, %v3191, 0
        %v3240 = vsel %vm2868, %v3193, 0
        %v3242 = vsel %vm2868, %v3195, 0
        %v3244 = vsel %vm2868, %v3197, 0
        %v3246 = vsel %vm2868, %v3199, 0
        %v3248 = vsel %vm2868, %v3201, 0
        %3250 = vmatprep.subr.mxu0 0.0
        %3251 = vmatpush1.msra.mxu0 %v3151
        %3252 = vmatprep.subr.mxu0 0.0
        %3253 = vmatpush1.msra.mxu0 0.0
        %3254 = vmatprep.subr.mxu0 0.0
        %3255 = vmatpush1.msra.mxu0 0.0
        %3256 = vmatprep.subr.mxu0 0.0
        %3257 = vmatpush1.msra.mxu0 0.0
        %3258 = vmatprep.subr.mxu0 0.0
        %3259 = vmatpush1.msra.mxu0 0.0
        %3260 = vmatprep.subr.mxu0 0.0
        %3261 = vmatpush1.msra.mxu0 0.0
        %3262 = vmatprep.subr.mxu0 0.0
        %3263 = vmatpush1.msra.mxu0 0.0
        %3264 = vmatprep.subr.mxu0 0.0
        %3265 = vmatpush1.msra.mxu0 0.0
        %3266 = vmatprep.subr.mxu0 0.0
        %3267 = vmatpush1.msra.mxu0 0.0
        %3268 = vmatprep.subr.mxu0 0.0
        %3269 = vmatpush1.msra.mxu0 0.0
        %3270 = vmatprep.subr.mxu0 0.0
        %3271 = vmatpush1.msra.mxu0 0.0
        %3272 = vmatprep.subr.mxu0 0.0
        %3273 = vmatpush1.msra.mxu0 0.0
        %3274 = vmatprep.subr.mxu0 0.0
        %3275 = vmatpush1.msra.mxu0 0.0
        %3276 = vmatprep.subr.mxu0 0.0
        %3277 = vmatpush1.msra.mxu0 0.0
        %3278 = vmatprep.subr.mxu0 0.0
        %3279 = vmatpush1.msra.mxu0 0.0
        %3280 = vmatprep.subr.mxu0 0.0
        %3281 = vmatpush1.msra.mxu0 0.0
        %3282 = vmatprep.subr.mxu0 0.0
        %3283 = vmatpush1.msra.mxu0 0.0
        %3284 = vmatprep.subr.mxu0 0.0
        %3285 = vmatpush1.msra.mxu0 0.0
        %3286 = vmatprep.subr.mxu0 0.0
        %3287 = vmatpush1.msra.mxu0 0.0
        %3288 = vmatprep.subr.mxu0 0.0
        %3289 = vmatpush1.msra.mxu0 0.0
        %3290 = vmatprep.subr.mxu0 0.0
        %3291 = vmatpush1.msra.mxu0 0.0
        %3292 = vmatprep.subr.mxu0 0.0
        %3293 = vmatpush1.msra.mxu0 0.0
        %3294 = vmatprep.subr.mxu0 0.0
        %3295 = vmatpush1.msra.mxu0 0.0
        %3296 = vmatprep.subr.mxu0 0.0
        %3297 = vmatpush1.msra.mxu0 0.0
        %3298 = vmatprep.subr.mxu0 0.0
        %3299 = vmatpush1.msra.mxu0 0.0
        %3300 = vmatprep.subr.mxu0 0.0
        %3301 = vmatpush1.msra.mxu0 0.0
        %3302 = vmatprep.subr.mxu0 0.0
        %3303 = vmatpush1.msra.mxu0 0.0
        %3304 = vmatprep.subr.mxu0 0.0
        %3305 = vmatpush1.msra.mxu0 0.0
        %3306 = vmatprep.subr.mxu0 0.0
        %3307 = vmatpush1.msra.mxu0 0.0
        %3308 = vmatprep.subr.mxu0 0.0
        %3309 = vmatpush1.msra.mxu0 0.0
        %3310 = vmatprep.subr.mxu0 0.0
        %3311 = vmatpush1.msra.mxu0 0.0
        %3312 = vmatprep.subr.mxu0 0.0
        %3313 = vmatpush1.msra.mxu0 0.0
        %3314 = vmatprep.mubr.f32.mxu0 0.0
        %3315 = vmatmul.mubr.f32.gmra.mrb[0].mxu0 %v3202
        %v3316 = vpop.f32.mrb[0].mxu0
        %v3317 = vadd.f32 0.0, %v3316
        %v3318 = vpop.f32.mrb[0].mxu0
        %3319 = vmatprep.mubr.f32.mxu0 0.0
        %3320 = vmatmul.mubr.f32.gmra.mrb[0].mxu0 %v3204
        %v3321 = vpop.f32.mrb[0].mxu0
        %v3322 = vadd.f32 0.0, %v3321
        %v3323 = vpop.f32.mrb[0].mxu0
        %3324 = vmatprep.mubr.f32.mxu0 0.0
        %3325 = vmatmul.mubr.f32.gmra.mrb[0].mxu0 %v3206
        %v3326 = vpop.f32.mrb[0].mxu0
        %v3327 = vadd.f32 0.0, %v3326
        %v3328 = vpop.f32.mrb[0].mxu0
        %3329 = vmatprep.mubr.f32.mxu0 0.0
        %3330 = vmatmul.mubr.f32.gmra.mrb[0].mxu0 %v3208
        %v3331 = vpop.f32.mrb[0].mxu0
        %v3332 = vadd.f32 0.0, %v3331
        %v3333 = vpop.f32.mrb[0].mxu0
        %3334 = vmatprep.mubr.f32.mxu0 0.0
        %3335 = vmatmul.mubr.f32.gmra.mrb[0].mxu0 %v3210
        %v3336 = vpop.f32.mrb[0].mxu0
        %v3337 = vadd.f32 0.0, %v3336
        %v3338 = vpop.f32.mrb[0].mxu0
        %3339 = vmatprep.mubr.f32.mxu0 0.0
        %3340 = vmatmul.mubr.f32.gmra.mrb[0].mxu0 %v3212
        %v3341 = vpop.f32.mrb[0].mxu0
        %v3342 = vadd.f32 0.0, %v3341
        %v3343 = vpop.f32.mrb[0].mxu0
        %3344 = vmatprep.mubr.f32.mxu0 0.0
        %3345 = vmatmul.mubr.f32.gmra.mrb[0].mxu0 %v3214
        %v3346 = vpop.f32.mrb[0].mxu0
        %v3347 = vadd.f32 0.0, %v3346
        %v3348 = vpop.f32.mrb[0].mxu0
        %3349 = vmatprep.mubr.f32.mxu0 0.0
        %3350 = vmatmul.mubr.f32.gmra.mrb[0].mxu0 %v3216
        %v3351 = vpop.f32.mrb[0].mxu0
        %v3352 = vadd.f32 0.0, %v3351
        %v3353 = vpop.f32.mrb[0].mxu0
        %3354 = vmatprep.mubr.f32.mxu0 0.0
        %3355 = vmatmul.mubr.f32.gmra.mrb[0].mxu0 %v3218
        %v3356 = vpop.f32.mrb[0].mxu0
        %v3357 = vadd.f32 0.0, %v3356
        %v3358 = vpop.f32.mrb[0].mxu0
        %3359 = vmatprep.mubr.f32.mxu0 0.0
        %3360 = vmatmul.mubr.f32.gmra.mrb[0].mxu0 %v3220
        %v3361 = vpop.f32.mrb[0].mxu0
        %v3362 = vadd.f32 0.0, %v3361
        %v3363 = vpop.f32.mrb[0].mxu0
        %3364 = vmatprep.mubr.f32.mxu0 0.0
        %3365 = vmatmul.mubr.f32.gmra.mrb[0].mxu0 %v3222
        %v3366 = vpop.f32.mrb[0].mxu0
        %v3367 = vadd.f32 0.0, %v3366
        %v3368 = vpop.f32.mrb[0].mxu0
        %3369 = vmatprep.mubr.f32.mxu0 0.0
        %3370 = vmatmul.mubr.f32.gmra.mrb[0].mxu0 %v3224
        %v3371 = vpop.f32.mrb[0].mxu0
        %v3372 = vadd.f32 0.0, %v3371
        %v3373 = vpop.f32.mrb[0].mxu0
        %3374 = vmatprep.mubr.f32.mxu0 0.0
        %3375 = vmatmul.mubr.f32.gmra.mrb[0].mxu0 %v3226
        %v3376 = vpop.f32.mrb[0].mxu0
        %v3377 = vadd.f32 0.0, %v3376
        %v3378 = vpop.f32.mrb[0].mxu0
        %3379 = vmatprep.mubr.f32.mxu0 0.0
        %3380 = vmatmul.mubr.f32.gmra.mrb[0].mxu0 %v3228
        %v3381 = vpop.f32.mrb[0].mxu0
        %v3382 = vadd.f32 0.0, %v3381
        %v3383 = vpop.f32.mrb[0].mxu0
        %3384 = vmatprep.mubr.f32.mxu0 0.0
        %3385 = vmatmul.mubr.f32.gmra.mrb[0].mxu0 %v3230
        %v3386 = vpop.f32.mrb[0].mxu0
        %v3387 = vadd.f32 0.0, %v3386
        %v3388 = vpop.f32.mrb[0].mxu0
        %3389 = vmatprep.mubr.f32.mxu0 0.0
        %3390 = vmatmul.mubr.f32.gmra.mrb[0].mxu0 %v3232
        %v3391 = vpop.f32.mrb[0].mxu0
        %v3392 = vadd.f32 0.0, %v3391
        %v3393 = vpop.f32.mrb[0].mxu0
        %3394 = vmatprep.mubr.f32.mxu0 0.0
        %3395 = vmatmul.mubr.f32.gmra.mrb[0].mxu0 %v3234
        %v3396 = vpop.f32.mrb[0].mxu0
        %v3397 = vadd.f32 0.0, %v3396
        %v3398 = vpop.f32.mrb[0].mxu0
        %3399 = vmatprep.mubr.f32.mxu0 0.0
        %3400 = vmatmul.mubr.f32.gmra.mrb[0].mxu0 %v3236
        %v3401 = vpop.f32.mrb[0].mxu0
        %v3402 = vadd.f32 0.0, %v3401
        %v3403 = vpop.f32.mrb[0].mxu0
        %3404 = vmatprep.mubr.f32.mxu0 0.0
        %3405 = vmatmul.mubr.f32.gmra.mrb[0].mxu0 %v3238
        %v3406 = vpop.f32.mrb[0].mxu0
        %v3407 = vadd.f32 0.0, %v3406
        %v3408 = vpop.f32.mrb[0].mxu0
        %3409 = vmatprep.mubr.f32.mxu0 0.0
        %3410 = vmatmul.mubr.f32.gmra.mrb[0].mxu0 %v3240
        %v3411 = vpop.f32.mrb[0].mxu0
        %v3412 = vadd.f32 0.0, %v3411
        %v3413 = vpop.f32.mrb[0].mxu0
        %3414 = vmatprep.mubr.f32.mxu0 0.0
        %3415 = vmatmul.mubr.f32.gmra.mrb[0].mxu0 %v3242
        %v3416 = vpop.f32.mrb[0].mxu0
        %v3417 = vadd.f32 0.0, %v3416
        %v3418 = vpop.f32.mrb[0].mxu0
        %3419 = vmatprep.mubr.f32.mxu0 0.0
        %3420 = vmatmul.mubr.f32.gmra.mrb[0].mxu0 %v3244
        %v3421 = vpop.f32.mrb[0].mxu0
        %v3422 = vadd.f32 0.0, %v3421
        %v3423 = vpop.f32.mrb[0].mxu0
        %3424 = vmatprep.mubr.f32.mxu0 0.0
        %3425 = vmatmul.mubr.f32.gmra.mrb[0].mxu0 %v3246
        %v3426 = vpop.f32.mrb[0].mxu0
        %v3427 = vadd.f32 0.0, %v3426
        %v3428 = vpop.f32.mrb[0].mxu0
        %3429 = vmatprep.mubr.f32.mxu0 0.0
        %3430 = vmatmul.mubr.f32.gmra.mrb[0].mxu0 %v3248
        %v3431 = vpop.f32.mrb[0].mxu0
        %v3432 = vadd.f32 0.0, %v3431
        %v3433 = vpop.f32.mrb[0].mxu0
        %3434 = vdwg.mxu0
        %v3435 = vadd.f32 %v3126, %v3317
        %v3436 = vadd.f32 %v3127, %v3322
        %v3437 = vadd.f32 %v3128, %v3327
        %v3438 = vadd.f32 %v3129, %v3332
        %v3439 = vadd.f32 %v3130, %v3337
        %v3440 = vadd.f32 %v3131, %v3342
        %v3441 = vadd.f32 %v3132, %v3347
        %v3442 = vadd.f32 %v3133, %v3352
        %v3443 = vadd.f32 %v3134, %v3357
        %v3444 = vadd.f32 %v3135, %v3362
        %v3445 = vadd.f32 %v3136, %v3367
        %v3446 = vadd.f32 %v3137, %v3372
        %v3447 = vadd.f32 %v3138, %v3377
        %v3448 = vadd.f32 %v3139, %v3382
        %v3449 = vadd.f32 %v3140, %v3387
        %v3450 = vadd.f32 %v3141, %v3392
        %v3451 = vadd.f32 %v3142, %v3397
        %v3452 = vadd.f32 %v3143, %v3402
        %v3453 = vadd.f32 %v3144, %v3407
        %v3454 = vadd.f32 %v3145, %v3412
        %v3455 = vadd.f32 %v3146, %v3417
        %v3456 = vadd.f32 %v3147, %v3422
        %v3457 = vadd.f32 %v3148, %v3427
        %v3458 = vadd.f32 %v3149, %v3432
        %s3459 = scalar_lea.vmem %s3, 16
        %v3460 = vld [vmem:[%s3459] sm:$0xff]
        %v3461 = vrot.slane %v2831, 2
        %v3462 = vrot.slane %v2832, 2
        %v3463 = vsel %vm957, %v3461, %v3462
        %v3464 = vrot.slane %v2833, 2
        %v3465 = vsel %vm957, %v3462, %v3464
        %v3466 = vrot.slane %v2834, 2
        %v3467 = vsel %vm957, %v3464, %v3466
        %v3468 = vrot.slane %v2835, 2
        %v3469 = vsel %vm957, %v3466, %v3468
        %v3470 = vrot.slane %v2836, 2
        %v3471 = vsel %vm957, %v3468, %v3470
        %v3472 = vrot.slane %v2837, 2
        %v3473 = vsel %vm957, %v3470, %v3472
        %v3474 = vrot.slane %v2838, 2
        %v3475 = vsel %vm957, %v3472, %v3474
        %v3476 = vrot.slane %v2839, 2
        %v3477 = vsel %vm957, %v3474, %v3476
        %v3478 = vrot.slane %v2840, 2
        %v3479 = vsel %vm957, %v3476, %v3478
        %v3480 = vrot.slane %v2841, 2
        %v3481 = vsel %vm957, %v3478, %v3480
        %v3482 = vrot.slane %v2842, 2
        %v3483 = vsel %vm957, %v3480, %v3482
        %v3484 = vrot.slane %v2843, 2
        %v3485 = vsel %vm957, %v3482, %v3484
        %v3486 = vrot.slane %v2844, 2
        %v3487 = vsel %vm957, %v3484, %v3486
        %v3488 = vrot.slane %v2845, 2
        %v3489 = vsel %vm957, %v3486, %v3488
        %v3490 = vrot.slane %v2846, 2
        %v3491 = vsel %vm957, %v3488, %v3490
        %v3492 = vrot.slane %v2847, 2
        %v3493 = vsel %vm957, %v3490, %v3492
        %v3494 = vrot.slane %v2848, 2
        %v3495 = vsel %vm957, %v3492, %v3494
        %v3496 = vrot.slane %v2849, 2
        %v3497 = vsel %vm957, %v3494, %v3496
        %v3498 = vrot.slane %v2850, 2
        %v3499 = vsel %vm957, %v3496, %v3498
        %v3500 = vrot.slane %v2851, 2
        %v3501 = vsel %vm957, %v3498, %v3500
        %v3502 = vrot.slane %v2852, 2
        %v3503 = vsel %vm957, %v3500, %v3502
        %v3504 = vrot.slane %v2853, 2
        %v3505 = vsel %vm957, %v3502, %v3504
        %v3506 = vrot.slane %v2854, 2
        %v3507 = vsel %vm957, %v3504, %v3506
        %v3508 = vrot.slane %v2855, 2
        %v3509 = vsel %vm957, %v3506, %v3508
        %v3510 = vsel %vm2868, %v3463, 0
        %v3512 = vsel %vm2868, %v3465, 0
        %v3514 = vsel %vm2868, %v3467, 0
        %v3516 = vsel %vm2868, %v3469, 0
        %v3518 = vsel %vm2868, %v3471, 0
        %v3520 = vsel %vm2868, %v3473, 0
        %v3522 = vsel %vm2868, %v3475, 0
        %v3524 = vsel %vm2868, %v3477, 0
        %v3526 = vsel %vm2868, %v3479, 0
        %v3528 = vsel %vm2868, %v3481, 0
        %v3530 = vsel %vm2868, %v3483, 0
        %v3532 = vsel %vm2868, %v3485, 0
        %v3534 = vsel %vm2868, %v3487, 0
        %v3536 = vsel %vm2868, %v3489, 0
        %v3538 = vsel %vm2868, %v3491, 0
        %v3540 = vsel %vm2868, %v3493, 0
        %v3542 = vsel %vm2868, %v3495, 0
        %v3544 = vsel %vm2868, %v3497, 0
        %v3546 = vsel %vm2868, %v3499, 0
        %v3548 = vsel %vm2868, %v3501, 0
        %v3550 = vsel %vm2868, %v3503, 0
        %v3552 = vsel %vm2868, %v3505, 0
        %v3554 = vsel %vm2868, %v3507, 0
        %v3556 = vsel %vm2868, %v3509, 0
        %3558 = vmatprep.subr.mxu0 0.0
        %3559 = vmatpush1.msra.mxu0 %v3460
        %3560 = vmatprep.subr.mxu0 0.0
        %3561 = vmatpush1.msra.mxu0 0.0
        %3562 = vmatprep.subr.mxu0 0.0
        %3563 = vmatpush1.msra.mxu0 0.0
        %3564 = vmatprep.subr.mxu0 0.0
        %3565 = vmatpush1.msra.mxu0 0.0
        %3566 = vmatprep.subr.mxu0 0.0
        %3567 = vmatpush1.msra.mxu0 0.0
        %3568 = vmatprep.subr.mxu0 0.0
        %3569 = vmatpush1.msra.mxu0 0.0
        %3570 = vmatprep.subr.mxu0 0.0
        %3571 = vmatpush1.msra.mxu0 0.0
        %3572 = vmatprep.subr.mxu0 0.0
        %3573 = vmatpush1.msra.mxu0 0.0
        %3574 = vmatprep.subr.mxu0 0.0
        %3575 = vmatpush1.msra.mxu0 0.0
        %3576 = vmatprep.subr.mxu0 0.0
        %3577 = vmatpush1.msra.mxu0 0.0
        %3578 = vmatprep.subr.mxu0 0.0
        %3579 = vmatpush1.msra.mxu0 0.0
        %3580 = vmatprep.subr.mxu0 0.0
        %3581 = vmatpush1.msra.mxu0 0.0
        %3582 = vmatprep.subr.mxu0 0.0
        %3583 = vmatpush1.msra.mxu0 0.0
        %3584 = vmatprep.subr.mxu0 0.0
        %3585 = vmatpush1.msra.mxu0 0.0
        %3586 = vmatprep.subr.mxu0 0.0
        %3587 = vmatpush1.msra.mxu0 0.0
        %3588 = vmatprep.subr.mxu0 0.0
        %3589 = vmatpush1.msra.mxu0 0.0
        %3590 = vmatprep.subr.mxu0 0.0
        %3591 = vmatpush1.msra.mxu0 0.0
        %3592 = vmatprep.subr.mxu0 0.0
        %3593 = vmatpush1.msra.mxu0 0.0
        %3594 = vmatprep.subr.mxu0 0.0
        %3595 = vmatpush1.msra.mxu0 0.0
        %3596 = vmatprep.subr.mxu0 0.0
        %3597 = vmatpush1.msra.mxu0 0.0
        %3598 = vmatprep.subr.mxu0 0.0
        %3599 = vmatpush1.msra.mxu0 0.0
        %3600 = vmatprep.subr.mxu0 0.0
        %3601 = vmatpush1.msra.mxu0 0.0
        %3602 = vmatprep.subr.mxu0 0.0
        %3603 = vmatpush1.msra.mxu0 0.0
        %3604 = vmatprep.subr.mxu0 0.0
        %3605 = vmatpush1.msra.mxu0 0.0
        %3606 = vmatprep.subr.mxu0 0.0
        %3607 = vmatpush1.msra.mxu0 0.0
        %3608 = vmatprep.subr.mxu0 0.0
        %3609 = vmatpush1.msra.mxu0 0.0
        %3610 = vmatprep.subr.mxu0 0.0
        %3611 = vmatpush1.msra.mxu0 0.0
        %3612 = vmatprep.subr.mxu0 0.0
        %3613 = vmatpush1.msra.mxu0 0.0
        %3614 = vmatprep.subr.mxu0 0.0
        %3615 = vmatpush1.msra.mxu0 0.0
        %3616 = vmatprep.subr.mxu0 0.0
        %3617 = vmatpush1.msra.mxu0 0.0
        %3618 = vmatprep.subr.mxu0 0.0
        %3619 = vmatpush1.msra.mxu0 0.0
        %3620 = vmatprep.subr.mxu0 0.0
        %3621 = vmatpush1.msra.mxu0 0.0
        %3622 = vmatprep.mubr.f32.mxu0 0.0
        %3623 = vmatmul.mubr.f32.gmra.mrb[0].mxu0 %v3510
        %v3624 = vpop.f32.mrb[0].mxu0
        %v3625 = vadd.f32 0.0, %v3624
        %v3626 = vpop.f32.mrb[0].mxu0
        %3627 = vmatprep.mubr.f32.mxu0 0.0
        %3628 = vmatmul.mubr.f32.gmra.mrb[0].mxu0 %v3512
        %v3629 = vpop.f32.mrb[0].mxu0
        %v3630 = vadd.f32 0.0, %v3629
        %v3631 = vpop.f32.mrb[0].mxu0
        %3632 = vmatprep.mubr.f32.mxu0 0.0
        %3633 = vmatmul.mubr.f32.gmra.mrb[0].mxu0 %v3514
        %v3634 = vpop.f32.mrb[0].mxu0
        %v3635 = vadd.f32 0.0, %v3634
        %v3636 = vpop.f32.mrb[0].mxu0
        %3637 = vmatprep.mubr.f32.mxu0 0.0
        %3638 = vmatmul.mubr.f32.gmra.mrb[0].mxu0 %v3516
        %v3639 = vpop.f32.mrb[0].mxu0
        %v3640 = vadd.f32 0.0, %v3639
        %v3641 = vpop.f32.mrb[0].mxu0
        %3642 = vmatprep.mubr.f32.mxu0 0.0
        %3643 = vmatmul.mubr.f32.gmra.mrb[0].mxu0 %v3518
        %v3644 = vpop.f32.mrb[0].mxu0
        %v3645 = vadd.f32 0.0, %v3644
        %v3646 = vpop.f32.mrb[0].mxu0
        %3647 = vmatprep.mubr.f32.mxu0 0.0
        %3648 = vmatmul.mubr.f32.gmra.mrb[0].mxu0 %v3520
        %v3649 = vpop.f32.mrb[0].mxu0
        %v3650 = vadd.f32 0.0, %v3649
        %v3651 = vpop.f32.mrb[0].mxu0
        %3652 = vmatprep.mubr.f32.mxu0 0.0
        %3653 = vmatmul.mubr.f32.gmra.mrb[0].mxu0 %v3522
        %v3654 = vpop.f32.mrb[0].mxu0
        %v3655 = vadd.f32 0.0, %v3654
        %v3656 = vpop.f32.mrb[0].mxu0
        %3657 = vmatprep.mubr.f32.mxu0 0.0
        %3658 = vmatmul.mubr.f32.gmra.mrb[0].mxu0 %v3524
        %v3659 = vpop.f32.mrb[0].mxu0
        %v3660 = vadd.f32 0.0, %v3659
        %v3661 = vpop.f32.mrb[0].mxu0
        %3662 = vmatprep.mubr.f32.mxu0 0.0
        %3663 = vmatmul.mubr.f32.gmra.mrb[0].mxu0 %v3526
        %v3664 = vpop.f32.mrb[0].mxu0
        %v3665 = vadd.f32 0.0, %v3664
        %v3666 = vpop.f32.mrb[0].mxu0
        %3667 = vmatprep.mubr.f32.mxu0 0.0
        %3668 = vmatmul.mubr.f32.gmra.mrb[0].mxu0 %v3528
        %v3669 = vpop.f32.mrb[0].mxu0
        %v3670 = vadd.f32 0.0, %v3669
        %v3671 = vpop.f32.mrb[0].mxu0
        %3672 = vmatprep.mubr.f32.mxu0 0.0
        %3673 = vmatmul.mubr.f32.gmra.mrb[0].mxu0 %v3530
        %v3674 = vpop.f32.mrb[0].mxu0
        %v3675 = vadd.f32 0.0, %v3674
        %v3676 = vpop.f32.mrb[0].mxu0
        %3677 = vmatprep.mubr.f32.mxu0 0.0
        %3678 = vmatmul.mubr.f32.gmra.mrb[0].mxu0 %v3532
        %v3679 = vpop.f32.mrb[0].mxu0
        %v3680 = vadd.f32 0.0, %v3679
        %v3681 = vpop.f32.mrb[0].mxu0
        %3682 = vmatprep.mubr.f32.mxu0 0.0
        %3683 = vmatmul.mubr.f32.gmra.mrb[0].mxu0 %v3534
        %v3684 = vpop.f32.mrb[0].mxu0
        %v3685 = vadd.f32 0.0, %v3684
        %v3686 = vpop.f32.mrb[0].mxu0
        %3687 = vmatprep.mubr.f32.mxu0 0.0
        %3688 = vmatmul.mubr.f32.gmra.mrb[0].mxu0 %v3536
        %v3689 = vpop.f32.mrb[0].mxu0
        %v3690 = vadd.f32 0.0, %v3689
        %v3691 = vpop.f32.mrb[0].mxu0
        %3692 = vmatprep.mubr.f32.mxu0 0.0
        %3693 = vmatmul.mubr.f32.gmra.mrb[0].mxu0 %v3538
        %v3694 = vpop.f32.mrb[0].mxu0
        %v3695 = vadd.f32 0.0, %v3694
        %v3696 = vpop.f32.mrb[0].mxu0
        %3697 = vmatprep.mubr.f32.mxu0 0.0
        %3698 = vmatmul.mubr.f32.gmra.mrb[0].mxu0 %v3540
        %v3699 = vpop.f32.mrb[0].mxu0
        %v3700 = vadd.f32 0.0, %v3699
        %v3701 = vpop.f32.mrb[0].mxu0
        %3702 = vmatprep.mubr.f32.mxu0 0.0
        %3703 = vmatmul.mubr.f32.gmra.mrb[0].mxu0 %v3542
        %v3704 = vpop.f32.mrb[0].mxu0
        %v3705 = vadd.f32 0.0, %v3704
        %v3706 = vpop.f32.mrb[0].mxu0
        %3707 = vmatprep.mubr.f32.mxu0 0.0
        %3708 = vmatmul.mubr.f32.gmra.mrb[0].mxu0 %v3544
        %v3709 = vpop.f32.mrb[0].mxu0
        %v3710 = vadd.f32 0.0, %v3709
        %v3711 = vpop.f32.mrb[0].mxu0
        %3712 = vmatprep.mubr.f32.mxu0 0.0
        %3713 = vmatmul.mubr.f32.gmra.mrb[0].mxu0 %v3546
        %v3714 = vpop.f32.mrb[0].mxu0
        %v3715 = vadd.f32 0.0, %v3714
        %v3716 = vpop.f32.mrb[0].mxu0
        %3717 = vmatprep.mubr.f32.mxu0 0.0
        %3718 = vmatmul.mubr.f32.gmra.mrb[0].mxu0 %v3548
        %v3719 = vpop.f32.mrb[0].mxu0
        %v3720 = vadd.f32 0.0, %v3719
        %v3721 = vpop.f32.mrb[0].mxu0
        %3722 = vmatprep.mubr.f32.mxu0 0.0
        %3723 = vmatmul.mubr.f32.gmra.mrb[0].mxu0 %v3550
        %v3724 = vpop.f32.mrb[0].mxu0
        %v3725 = vadd.f32 0.0, %v3724
        %v3726 = vpop.f32.mrb[0].mxu0
        %3727 = vmatprep.mubr.f32.mxu0 0.0
        %3728 = vmatmul.mubr.f32.gmra.mrb[0].mxu0 %v3552
        %v3729 = vpop.f32.mrb[0].mxu0
        %v3730 = vadd.f32 0.0, %v3729
        %v3731 = vpop.f32.mrb[0].mxu0
        %3732 = vmatprep.mubr.f32.mxu0 0.0
        %3733 = vmatmul.mubr.f32.gmra.mrb[0].mxu0 %v3554
        %v3734 = vpop.f32.mrb[0].mxu0
        %v3735 = vadd.f32 0.0, %v3734
        %v3736 = vpop.f32.mrb[0].mxu0
        %3737 = vmatprep.mubr.f32.mxu0 0.0
        %3738 = vmatmul.mubr.f32.gmra.mrb[0].mxu0 %v3556
        %v3739 = vpop.f32.mrb[0].mxu0
        %v3740 = vadd.f32 0.0, %v3739
        %v3741 = vpop.f32.mrb[0].mxu0
        %3742 = vdwg.mxu0
        %v3743 = vadd.f32 %v3435, %v3625
        %v3744 = vadd.f32 %v3436, %v3630
        %v3745 = vadd.f32 %v3437, %v3635
        %v3746 = vadd.f32 %v3438, %v3640
        %v3747 = vadd.f32 %v3439, %v3645
        %v3748 = vadd.f32 %v3440, %v3650
        %v3749 = vadd.f32 %v3441, %v3655
        %v3750 = vadd.f32 %v3442, %v3660
        %v3751 = vadd.f32 %v3443, %v3665
        %v3752 = vadd.f32 %v3444, %v3670
        %v3753 = vadd.f32 %v3445, %v3675
        %v3754 = vadd.f32 %v3446, %v3680
        %v3755 = vadd.f32 %v3447, %v3685
        %v3756 = vadd.f32 %v3448, %v3690
        %v3757 = vadd.f32 %v3449, %v3695
        %v3758 = vadd.f32 %v3450, %v3700
        %v3759 = vadd.f32 %v3451, %v3705
        %v3760 = vadd.f32 %v3452, %v3710
        %v3761 = vadd.f32 %v3453, %v3715
        %v3762 = vadd.f32 %v3454, %v3720
        %v3763 = vadd.f32 %v3455, %v3725
        %v3764 = vadd.f32 %v3456, %v3730
        %v3765 = vadd.f32 %v3457, %v3735
        %v3766 = vadd.f32 %v3458, %v3740
        %s3767 = scalar_lea.vmem %s3, 24
        %v3768 = vld [vmem:[%s3767] sm:$0xff]
        %v3769 = vsel %vm2868, %v2855, 0
        %v3772 = vsel %vm2868, %v2856, 0
        %3774 = vmatprep.subr.mxu0 0.0
        %3775 = vmatpush1.msra.mxu0 %v3768
        %3776 = vmatprep.subr.mxu0 0.0
        %3777 = vmatpush1.msra.mxu0 0.0
        %3778 = vmatprep.subr.mxu0 0.0
        %3779 = vmatpush1.msra.mxu0 0.0
        %3780 = vmatprep.subr.mxu0 0.0
        %3781 = vmatpush1.msra.mxu0 0.0
        %3782 = vmatprep.subr.mxu0 0.0
        %3783 = vmatpush1.msra.mxu0 0.0
        %3784 = vmatprep.subr.mxu0 0.0
        %3785 = vmatpush1.msra.mxu0 0.0
        %3786 = vmatprep.subr.mxu0 0.0
        %3787 = vmatpush1.msra.mxu0 0.0
        %3788 = vmatprep.subr.mxu0 0.0
        %3789 = vmatpush1.msra.mxu0 0.0
        %3790 = vmatprep.subr.mxu0 0.0
        %3791 = vmatpush1.msra.mxu0 0.0
        %3792 = vmatprep.subr.mxu0 0.0
        %3793 = vmatpush1.msra.mxu0 0.0
        %3794 = vmatprep.subr.mxu0 0.0
        %3795 = vmatpush1.msra.mxu0 0.0
        %3796 = vmatprep.subr.mxu0 0.0
        %3797 = vmatpush1.msra.mxu0 0.0
        %3798 = vmatprep.subr.mxu0 0.0
        %3799 = vmatpush1.msra.mxu0 0.0
        %3800 = vmatprep.subr.mxu0 0.0
        %3801 = vmatpush1.msra.mxu0 0.0
        %3802 = vmatprep.subr.mxu0 0.0
        %3803 = vmatpush1.msra.mxu0 0.0
        %3804 = vmatprep.subr.mxu0 0.0
        %3805 = vmatpush1.msra.mxu0 0.0
        %3806 = vmatprep.subr.mxu0 0.0
        %3807 = vmatpush1.msra.mxu0 0.0
        %3808 = vmatprep.subr.mxu0 0.0
        %3809 = vmatpush1.msra.mxu0 0.0
        %3810 = vmatprep.subr.mxu0 0.0
        %3811 = vmatpush1.msra.mxu0 0.0
        %3812 = vmatprep.subr.mxu0 0.0
        %3813 = vmatpush1.msra.mxu0 0.0
        %3814 = vmatprep.subr.mxu0 0.0
        %3815 = vmatpush1.msra.mxu0 0.0
        %3816 = vmatprep.subr.mxu0 0.0
        %3817 = vmatpush1.msra.mxu0 0.0
        %3818 = vmatprep.subr.mxu0 0.0
        %3819 = vmatpush1.msra.mxu0 0.0
        %3820 = vmatprep.subr.mxu0 0.0
        %3821 = vmatpush1.msra.mxu0 0.0
        %3822 = vmatprep.subr.mxu0 0.0
        %3823 = vmatpush1.msra.mxu0 0.0
        %3824 = vmatprep.subr.mxu0 0.0
        %3825 = vmatpush1.msra.mxu0 0.0
        %3826 = vmatprep.subr.mxu0 0.0
        %3827 = vmatpush1.msra.mxu0 0.0
        %3828 = vmatprep.subr.mxu0 0.0
        %3829 = vmatpush1.msra.mxu0 0.0
        %3830 = vmatprep.subr.mxu0 0.0
        %3831 = vmatpush1.msra.mxu0 0.0
        %3832 = vmatprep.subr.mxu0 0.0
        %3833 = vmatpush1.msra.mxu0 0.0
        %3834 = vmatprep.subr.mxu0 0.0
        %3835 = vmatpush1.msra.mxu0 0.0
        %3836 = vmatprep.subr.mxu0 0.0
        %3837 = vmatpush1.msra.mxu0 0.0
        %3838 = vmatprep.mubr.f32.mxu0 0.0
        %3839 = vmatmul.mubr.f32.gmra.mrb[0].mxu0 %v2876
        %v3840 = vpop.f32.mrb[0].mxu0
        %v3841 = vadd.f32 0.0, %v3840
        %v3842 = vpop.f32.mrb[0].mxu0
        %3843 = vmatprep.mubr.f32.mxu0 0.0
        %3844 = vmatmul.mubr.f32.gmra.mrb[0].mxu0 %v2879
        %v3845 = vpop.f32.mrb[0].mxu0
        %v3846 = vadd.f32 0.0, %v3845
        %v3847 = vpop.f32.mrb[0].mxu0
        %3848 = vmatprep.mubr.f32.mxu0 0.0
        %3849 = vmatmul.mubr.f32.gmra.mrb[0].mxu0 %v2882
        %v3850 = vpop.f32.mrb[0].mxu0
        %v3851 = vadd.f32 0.0, %v3850
        %v3852 = vpop.f32.mrb[0].mxu0
        %3853 = vmatprep.mubr.f32.mxu0 0.0
        %3854 = vmatmul.mubr.f32.gmra.mrb[0].mxu0 %v2885
        %v3855 = vpop.f32.mrb[0].mxu0
        %v3856 = vadd.f32 0.0, %v3855
        %v3857 = vpop.f32.mrb[0].mxu0
        %3858 = vmatprep.mubr.f32.mxu0 0.0
        %3859 = vmatmul.mubr.f32.gmra.mrb[0].mxu0 %v2888
        %v3860 = vpop.f32.mrb[0].mxu0
        %v3861 = vadd.f32 0.0, %v3860
        %v3862 = vpop.f32.mrb[0].mxu0
        %3863 = vmatprep.mubr.f32.mxu0 0.0
        %3864 = vmatmul.mubr.f32.gmra.mrb[0].mxu0 %v2891
        %v3865 = vpop.f32.mrb[0].mxu0
        %v3866 = vadd.f32 0.0, %v3865
        %v3867 = vpop.f32.mrb[0].mxu0
        %3868 = vmatprep.mubr.f32.mxu0 0.0
        %3869 = vmatmul.mubr.f32.gmra.mrb[0].mxu0 %v2894
        %v3870 = vpop.f32.mrb[0].mxu0
        %v3871 = vadd.f32 0.0, %v3870
        %v3872 = vpop.f32.mrb[0].mxu0
        %3873 = vmatprep.mubr.f32.mxu0 0.0
        %3874 = vmatmul.mubr.f32.gmra.mrb[0].mxu0 %v2897
        %v3875 = vpop.f32.mrb[0].mxu0
        %v3876 = vadd.f32 0.0, %v3875
        %v3877 = vpop.f32.mrb[0].mxu0
        %3878 = vmatprep.mubr.f32.mxu0 0.0
        %3879 = vmatmul.mubr.f32.gmra.mrb[0].mxu0 %v2900
        %v3880 = vpop.f32.mrb[0].mxu0
        %v3881 = vadd.f32 0.0, %v3880
        %v3882 = vpop.f32.mrb[0].mxu0
        %3883 = vmatprep.mubr.f32.mxu0 0.0
        %3884 = vmatmul.mubr.f32.gmra.mrb[0].mxu0 %v2903
        %v3885 = vpop.f32.mrb[0].mxu0
        %v3886 = vadd.f32 0.0, %v3885
        %v3887 = vpop.f32.mrb[0].mxu0
        %3888 = vmatprep.mubr.f32.mxu0 0.0
        %3889 = vmatmul.mubr.f32.gmra.mrb[0].mxu0 %v2906
        %v3890 = vpop.f32.mrb[0].mxu0
        %v3891 = vadd.f32 0.0, %v3890
        %v3892 = vpop.f32.mrb[0].mxu0
        %3893 = vmatprep.mubr.f32.mxu0 0.0
        %3894 = vmatmul.mubr.f32.gmra.mrb[0].mxu0 %v2909
        %v3895 = vpop.f32.mrb[0].mxu0
        %v3896 = vadd.f32 0.0, %v3895
        %v3897 = vpop.f32.mrb[0].mxu0
        %3898 = vmatprep.mubr.f32.mxu0 0.0
        %3899 = vmatmul.mubr.f32.gmra.mrb[0].mxu0 %v2912
        %v3900 = vpop.f32.mrb[0].mxu0
        %v3901 = vadd.f32 0.0, %v3900
        %v3902 = vpop.f32.mrb[0].mxu0
        %3903 = vmatprep.mubr.f32.mxu0 0.0
        %3904 = vmatmul.mubr.f32.gmra.mrb[0].mxu0 %v2915
        %v3905 = vpop.f32.mrb[0].mxu0
        %v3906 = vadd.f32 0.0, %v3905
        %v3907 = vpop.f32.mrb[0].mxu0
        %3908 = vmatprep.mubr.f32.mxu0 0.0
        %3909 = vmatmul.mubr.f32.gmra.mrb[0].mxu0 %v2918
        %v3910 = vpop.f32.mrb[0].mxu0
        %v3911 = vadd.f32 0.0, %v3910
        %v3912 = vpop.f32.mrb[0].mxu0
        %3913 = vmatprep.mubr.f32.mxu0 0.0
        %3914 = vmatmul.mubr.f32.gmra.mrb[0].mxu0 %v2921
        %v3915 = vpop.f32.mrb[0].mxu0
        %v3916 = vadd.f32 0.0, %v3915
        %v3917 = vpop.f32.mrb[0].mxu0
        %3918 = vmatprep.mubr.f32.mxu0 0.0
        %3919 = vmatmul.mubr.f32.gmra.mrb[0].mxu0 %v2924
        %v3920 = vpop.f32.mrb[0].mxu0
        %v3921 = vadd.f32 0.0, %v3920
        %v3922 = vpop.f32.mrb[0].mxu0
        %3923 = vmatprep.mubr.f32.mxu0 0.0
        %3924 = vmatmul.mubr.f32.gmra.mrb[0].mxu0 %v2927
        %v3925 = vpop.f32.mrb[0].mxu0
        %v3926 = vadd.f32 0.0, %v3925
        %v3927 = vpop.f32.mrb[0].mxu0
        %3928 = vmatprep.mubr.f32.mxu0 0.0
        %3929 = vmatmul.mubr.f32.gmra.mrb[0].mxu0 %v2930
        %v3930 = vpop.f32.mrb[0].mxu0
        %v3931 = vadd.f32 0.0, %v3930
        %v3932 = vpop.f32.mrb[0].mxu0
        %3933 = vmatprep.mubr.f32.mxu0 0.0
        %3934 = vmatmul.mubr.f32.gmra.mrb[0].mxu0 %v2933
        %v3935 = vpop.f32.mrb[0].mxu0
        %v3936 = vadd.f32 0.0, %v3935
        %v3937 = vpop.f32.mrb[0].mxu0
        %3938 = vmatprep.mubr.f32.mxu0 0.0
        %3939 = vmatmul.mubr.f32.gmra.mrb[0].mxu0 %v2936
        %v3940 = vpop.f32.mrb[0].mxu0
        %v3941 = vadd.f32 0.0, %v3940
        %v3942 = vpop.f32.mrb[0].mxu0
        %3943 = vmatprep.mubr.f32.mxu0 0.0
        %3944 = vmatmul.mubr.f32.gmra.mrb[0].mxu0 %v2939
        %v3945 = vpop.f32.mrb[0].mxu0
        %v3946 = vadd.f32 0.0, %v3945
        %v3947 = vpop.f32.mrb[0].mxu0
        %3948 = vmatprep.mubr.f32.mxu0 0.0
        %3949 = vmatmul.mubr.f32.gmra.mrb[0].mxu0 %v3769
        %v3950 = vpop.f32.mrb[0].mxu0
        %v3951 = vadd.f32 0.0, %v3950
        %v3952 = vpop.f32.mrb[0].mxu0
        %3953 = vmatprep.mubr.f32.mxu0 0.0
        %3954 = vmatmul.mubr.f32.gmra.mrb[0].mxu0 %v3772
        %v3955 = vpop.f32.mrb[0].mxu0
        %v3956 = vadd.f32 0.0, %v3955
        %v3957 = vpop.f32.mrb[0].mxu0
        %3958 = vdwg.mxu0
        %v3959 = vadd.f32 %v3743, %v3841
        %v3960 = vadd.f32 %v3744, %v3846
        %v3961 = vadd.f32 %v3745, %v3851
        %v3962 = vadd.f32 %v3746, %v3856
        %v3963 = vadd.f32 %v3747, %v3861
        %v3964 = vadd.f32 %v3748, %v3866
        %v3965 = vadd.f32 %v3749, %v3871
        %v3966 = vadd.f32 %v3750, %v3876
        %v3967 = vadd.f32 %v3751, %v3881
        %v3968 = vadd.f32 %v3752, %v3886
        %v3969 = vadd.f32 %v3753, %v3891
        %v3970 = vadd.f32 %v3754, %v3896
        %v3971 = vadd.f32 %v3755, %v3901
        %v3972 = vadd.f32 %v3756, %v3906
        %v3973 = vadd.f32 %v3757, %v3911
        %v3974 = vadd.f32 %v3758, %v3916
        %v3975 = vadd.f32 %v3759, %v3921
        %v3976 = vadd.f32 %v3760, %v3926
        %v3977 = vadd.f32 %v3761, %v3931
        %v3978 = vadd.f32 %v3762, %v3936
        %v3979 = vadd.f32 %v3763, %v3941
        %v3980 = vadd.f32 %v3764, %v3946
        %v3981 = vadd.f32 %v3765, %v3951
        %v3982 = vadd.f32 %v3766, %v3956
        %s3983 = scalar_lea.vmem %s3, 32
        %v3984 = vld [vmem:[%s3983] sm:$0xff]
        %v3986 = vrot.slane %v2856, 1
        %v3987 = vsel %vm597, %v3200, %v3986
        %v3988 = vrot.slane %v2857, 1
        %v3989 = vsel %vm597, %v3986, %v3988
        %v3990 = vsel %vm2868, %v3987, 0
        %v3992 = vsel %vm2868, %v3989, 0
        %3994 = vmatprep.subr.mxu0 0.0
        %3995 = vmatpush1.msra.mxu0 %v3984
        %3996 = vmatprep.subr.mxu0 0.0
        %3997 = vmatpush1.msra.mxu0 0.0
        %3998 = vmatprep.subr.mxu0 0.0
        %3999 = vmatpush1.msra.mxu0 0.0
        %4000 = vmatprep.subr.mxu0 0.0
        %4001 = vmatpush1.msra.mxu0 0.0
        %4002 = vmatprep.subr.mxu0 0.0
        %4003 = vmatpush1.msra.mxu0 0.0
        %4004 = vmatprep.subr.mxu0 0.0
        %4005 = vmatpush1.msra.mxu0 0.0
        %4006 = vmatprep.subr.mxu0 0.0
        %4007 = vmatpush1.msra.mxu0 0.0
        %4008 = vmatprep.subr.mxu0 0.0
        %4009 = vmatpush1.msra.mxu0 0.0
        %4010 = vmatprep.subr.mxu0 0.0
        %4011 = vmatpush1.msra.mxu0 0.0
        %4012 = vmatprep.subr.mxu0 0.0
        %4013 = vmatpush1.msra.mxu0 0.0
        %4014 = vmatprep.subr.mxu0 0.0
        %4015 = vmatpush1.msra.mxu0 0.0
        %4016 = vmatprep.subr.mxu0 0.0
        %4017 = vmatpush1.msra.mxu0 0.0
        %4018 = vmatprep.subr.mxu0 0.0
        %4019 = vmatpush1.msra.mxu0 0.0
        %4020 = vmatprep.subr.mxu0 0.0
        %4021 = vmatpush1.msra.mxu0 0.0
        %4022 = vmatprep.subr.mxu0 0.0
        %4023 = vmatpush1.msra.mxu0 0.0
        %4024 = vmatprep.subr.mxu0 0.0
        %4025 = vmatpush1.msra.mxu0 0.0
        %4026 = vmatprep.subr.mxu0 0.0
        %4027 = vmatpush1.msra.mxu0 0.0
        %4028 = vmatprep.subr.mxu0 0.0
        %4029 = vmatpush1.msra.mxu0 0.0
        %4030 = vmatprep.subr.mxu0 0.0
        %4031 = vmatpush1.msra.mxu0 0.0
        %4032 = vmatprep.subr.mxu0 0.0
        %4033 = vmatpush1.msra.mxu0 0.0
        %4034 = vmatprep.subr.mxu0 0.0
        %4035 = vmatpush1.msra.mxu0 0.0
        %4036 = vmatprep.subr.mxu0 0.0
        %4037 = vmatpush1.msra.mxu0 0.0
        %4038 = vmatprep.subr.mxu0 0.0
        %4039 = vmatpush1.msra.mxu0 0.0
        %4040 = vmatprep.subr.mxu0 0.0
        %4041 = vmatpush1.msra.mxu0 0.0
        %4042 = vmatprep.subr.mxu0 0.0
        %4043 = vmatpush1.msra.mxu0 0.0
        %4044 = vmatprep.subr.mxu0 0.0
        %4045 = vmatpush1.msra.mxu0 0.0
        %4046 = vmatprep.subr.mxu0 0.0
        %4047 = vmatpush1.msra.mxu0 0.0
        %4048 = vmatprep.subr.mxu0 0.0
        %4049 = vmatpush1.msra.mxu0 0.0
        %4050 = vmatprep.subr.mxu0 0.0
        %4051 = vmatpush1.msra.mxu0 0.0
        %4052 = vmatprep.subr.mxu0 0.0
        %4053 = vmatpush1.msra.mxu0 0.0
        %4054 = vmatprep.subr.mxu0 0.0
        %4055 = vmatpush1.msra.mxu0 0.0
        %4056 = vmatprep.subr.mxu0 0.0
        %4057 = vmatpush1.msra.mxu0 0.0
        %4058 = vmatprep.mubr.f32.mxu0 0.0
        %4059 = vmatmul.mubr.f32.gmra.mrb[0].mxu0 %v3206
        %v4060 = vpop.f32.mrb[0].mxu0
        %v4061 = vadd.f32 0.0, %v4060
        %v4062 = vpop.f32.mrb[0].mxu0
        %4063 = vmatprep.mubr.f32.mxu0 0.0
        %4064 = vmatmul.mubr.f32.gmra.mrb[0].mxu0 %v3208
        %v4065 = vpop.f32.mrb[0].mxu0
        %v4066 = vadd.f32 0.0, %v4065
        %v4067 = vpop.f32.mrb[0].mxu0
        %4068 = vmatprep.mubr.f32.mxu0 0.0
        %4069 = vmatmul.mubr.f32.gmra.mrb[0].mxu0 %v3210
        %v4070 = vpop.f32.mrb[0].mxu0
        %v4071 = vadd.f32 0.0, %v4070
        %v4072 = vpop.f32.mrb[0].mxu0
        %4073 = vmatprep.mubr.f32.mxu0 0.0
        %4074 = vmatmul.mubr.f32.gmra.mrb[0].mxu0 %v3212
        %v4075 = vpop.f32.mrb[0].mxu0
        %v4076 = vadd.f32 0.0, %v4075
        %v4077 = vpop.f32.mrb[0].mxu0
        %4078 = vmatprep.mubr.f32.mxu0 0.0
        %4079 = vmatmul.mubr.f32.gmra.mrb[0].mxu0 %v3214
        %v4080 = vpop.f32.mrb[0].mxu0
        %v4081 = vadd.f32 0.0, %v4080
        %v4082 = vpop.f32.mrb[0].mxu0
        %4083 = vmatprep.mubr.f32.mxu0 0.0
        %4084 = vmatmul.mubr.f32.gmra.mrb[0].mxu0 %v3216
        %v4085 = vpop.f32.mrb[0].mxu0
        %v4086 = vadd.f32 0.0, %v4085
        %v4087 = vpop.f32.mrb[0].mxu0
        %4088 = vmatprep.mubr.f32.mxu0 0.0
        %4089 = vmatmul.mubr.f32.gmra.mrb[0].mxu0 %v3218
        %v4090 = vpop.f32.mrb[0].mxu0
        %v4091 = vadd.f32 0.0, %v4090
        %v4092 = vpop.f32.mrb[0].mxu0
        %4093 = vmatprep.mubr.f32.mxu0 0.0
        %4094 = vmatmul.mubr.f32.gmra.mrb[0].mxu0 %v3220
        %v4095 = vpop.f32.mrb[0].mxu0
        %v4096 = vadd.f32 0.0, %v4095
        %v4097 = vpop.f32.mrb[0].mxu0
        %4098 = vmatprep.mubr.f32.mxu0 0.0
        %4099 = vmatmul.mubr.f32.gmra.mrb[0].mxu0 %v3222
        %v4100 = vpop.f32.mrb[0].mxu0
        %v4101 = vadd.f32 0.0, %v4100
        %v4102 = vpop.f32.mrb[0].mxu0
        %4103 = vmatprep.mubr.f32.mxu0 0.0
        %4104 = vmatmul.mubr.f32.gmra.mrb[0].mxu0 %v3224
        %v4105 = vpop.f32.mrb[0].mxu0
        %v4106 = vadd.f32 0.0, %v4105
        %v4107 = vpop.f32.mrb[0].mxu0
        %4108 = vmatprep.mubr.f32.mxu0 0.0
        %4109 = vmatmul.mubr.f32.gmra.mrb[0].mxu0 %v3226
        %v4110 = vpop.f32.mrb[0].mxu0
        %v4111 = vadd.f32 0.0, %v4110
        %v4112 = vpop.f32.mrb[0].mxu0
        %4113 = vmatprep.mubr.f32.mxu0 0.0
        %4114 = vmatmul.mubr.f32.gmra.mrb[0].mxu0 %v3228
        %v4115 = vpop.f32.mrb[0].mxu0
        %v4116 = vadd.f32 0.0, %v4115
        %v4117 = vpop.f32.mrb[0].mxu0
        %4118 = vmatprep.mubr.f32.mxu0 0.0
        %4119 = vmatmul.mubr.f32.gmra.mrb[0].mxu0 %v3230
        %v4120 = vpop.f32.mrb[0].mxu0
        %v4121 = vadd.f32 0.0, %v4120
        %v4122 = vpop.f32.mrb[0].mxu0
        %4123 = vmatprep.mubr.f32.mxu0 0.0
        %4124 = vmatmul.mubr.f32.gmra.mrb[0].mxu0 %v3232
        %v4125 = vpop.f32.mrb[0].mxu0
        %v4126 = vadd.f32 0.0, %v4125
        %v4127 = vpop.f32.mrb[0].mxu0
        %4128 = vmatprep.mubr.f32.mxu0 0.0
        %4129 = vmatmul.mubr.f32.gmra.mrb[0].mxu0 %v3234
        %v4130 = vpop.f32.mrb[0].mxu0
        %v4131 = vadd.f32 0.0, %v4130
        %v4132 = vpop.f32.mrb[0].mxu0
        %4133 = vmatprep.mubr.f32.mxu0 0.0
        %4134 = vmatmul.mubr.f32.gmra.mrb[0].mxu0 %v3236
        %v4135 = vpop.f32.mrb[0].mxu0
        %v4136 = vadd.f32 0.0, %v4135
        %v4137 = vpop.f32.mrb[0].mxu0
        %4138 = vmatprep.mubr.f32.mxu0 0.0
        %4139 = vmatmul.mubr.f32.gmra.mrb[0].mxu0 %v3238
        %v4140 = vpop.f32.mrb[0].mxu0
        %v4141 = vadd.f32 0.0, %v4140
        %v4142 = vpop.f32.mrb[0].mxu0
        %4143 = vmatprep.mubr.f32.mxu0 0.0
        %4144 = vmatmul.mubr.f32.gmra.mrb[0].mxu0 %v3240
        %v4145 = vpop.f32.mrb[0].mxu0
        %v4146 = vadd.f32 0.0, %v4145
        %v4147 = vpop.f32.mrb[0].mxu0
        %4148 = vmatprep.mubr.f32.mxu0 0.0
        %4149 = vmatmul.mubr.f32.gmra.mrb[0].mxu0 %v3242
        %v4150 = vpop.f32.mrb[0].mxu0
        %v4151 = vadd.f32 0.0, %v4150
        %v4152 = vpop.f32.mrb[0].mxu0
        %4153 = vmatprep.mubr.f32.mxu0 0.0
        %4154 = vmatmul.mubr.f32.gmra.mrb[0].mxu0 %v3244
        %v4155 = vpop.f32.mrb[0].mxu0
        %v4156 = vadd.f32 0.0, %v4155
        %v4157 = vpop.f32.mrb[0].mxu0
        %4158 = vmatprep.mubr.f32.mxu0 0.0
        %4159 = vmatmul.mubr.f32.gmra.mrb[0].mxu0 %v3246
        %v4160 = vpop.f32.mrb[0].mxu0
        %v4161 = vadd.f32 0.0, %v4160
        %v4162 = vpop.f32.mrb[0].mxu0
        %4163 = vmatprep.mubr.f32.mxu0 0.0
        %4164 = vmatmul.mubr.f32.gmra.mrb[0].mxu0 %v3248
        %v4165 = vpop.f32.mrb[0].mxu0
        %v4166 = vadd.f32 0.0, %v4165
        %v4167 = vpop.f32.mrb[0].mxu0
        %4168 = vmatprep.mubr.f32.mxu0 0.0
        %4169 = vmatmul.mubr.f32.gmra.mrb[0].mxu0 %v3990
        %v4170 = vpop.f32.mrb[0].mxu0
        %v4171 = vadd.f32 0.0, %v4170
        %v4172 = vpop.f32.mrb[0].mxu0
        %4173 = vmatprep.mubr.f32.mxu0 0.0
        %4174 = vmatmul.mubr.f32.gmra.mrb[0].mxu0 %v3992
        %v4175 = vpop.f32.mrb[0].mxu0
        %v4176 = vadd.f32 0.0, %v4175
        %v4177 = vpop.f32.mrb[0].mxu0
        %4178 = vdwg.mxu0
        %v4179 = vadd.f32 %v3959, %v4061
        %v4180 = vadd.f32 %v3960, %v4066
        %v4181 = vadd.f32 %v3961, %v4071
        %v4182 = vadd.f32 %v3962, %v4076
        %v4183 = vadd.f32 %v3963, %v4081
        %v4184 = vadd.f32 %v3964, %v4086
        %v4185 = vadd.f32 %v3965, %v4091
        %v4186 = vadd.f32 %v3966, %v4096
        %v4187 = vadd.f32 %v3967, %v4101
        %v4188 = vadd.f32 %v3968, %v4106
        %v4189 = vadd.f32 %v3969, %v4111
        %v4190 = vadd.f32 %v3970, %v4116
        %v4191 = vadd.f32 %v3971, %v4121
        %v4192 = vadd.f32 %v3972, %v4126
        %v4193 = vadd.f32 %v3973, %v4131
        %v4194 = vadd.f32 %v3974, %v4136
        %v4195 = vadd.f32 %v3975, %v4141
        %v4196 = vadd.f32 %v3976, %v4146
        %v4197 = vadd.f32 %v3977, %v4151
        %v4198 = vadd.f32 %v3978, %v4156
        %v4199 = vadd.f32 %v3979, %v4161
        %v4200 = vadd.f32 %v3980, %v4166
        %v4201 = vadd.f32 %v3981, %v4171
        %v4202 = vadd.f32 %v3982, %v4176
        %s4203 = scalar_lea.vmem %s3, 40
        %v4204 = vld [vmem:[%s4203] sm:$0xff]
        %v4205 = vrot.slane %v2856, 2
        %v4206 = vsel %vm957, %v3508, %v4205
        %v4207 = vrot.slane %v2857, 2
        %v4208 = vsel %vm957, %v4205, %v4207
        %v4209 = vsel %vm2868, %v4206, 0
        %v4211 = vsel %vm2868, %v4208, 0
        %4213 = vmatprep.subr.mxu0 0.0
        %4214 = vmatpush1.msra.mxu0 %v4204
        %4215 = vmatprep.subr.mxu0 0.0
        %4216 = vmatpush1.msra.mxu0 0.0
        %4217 = vmatprep.subr.mxu0 0.0
        %4218 = vmatpush1.msra.mxu0 0.0
        %4219 = vmatprep.subr.mxu0 0.0
        %4220 = vmatpush1.msra.mxu0 0.0
        %4221 = vmatprep.subr.mxu0 0.0
        %4222 = vmatpush1.msra.mxu0 0.0
        %4223 = vmatprep.subr.mxu0 0.0
        %4224 = vmatpush1.msra.mxu0 0.0
        %4225 = vmatprep.subr.mxu0 0.0
        %4226 = vmatpush1.msra.mxu0 0.0
        %4227 = vmatprep.subr.mxu0 0.0
        %4228 = vmatpush1.msra.mxu0 0.0
        %4229 = vmatprep.subr.mxu0 0.0
        %4230 = vmatpush1.msra.mxu0 0.0
        %4231 = vmatprep.subr.mxu0 0.0
        %4232 = vmatpush1.msra.mxu0 0.0
        %4233 = vmatprep.subr.mxu0 0.0
        %4234 = vmatpush1.msra.mxu0 0.0
        %4235 = vmatprep.subr.mxu0 0.0
        %4236 = vmatpush1.msra.mxu0 0.0
        %4237 = vmatprep.subr.mxu0 0.0
        %4238 = vmatpush1.msra.mxu0 0.0
        %4239 = vmatprep.subr.mxu0 0.0
        %4240 = vmatpush1.msra.mxu0 0.0
        %4241 = vmatprep.subr.mxu0 0.0
        %4242 = vmatpush1.msra.mxu0 0.0
        %4243 = vmatprep.subr.mxu0 0.0
        %4244 = vmatpush1.msra.mxu0 0.0
        %4245 = vmatprep.subr.mxu0 0.0
        %4246 = vmatpush1.msra.mxu0 0.0
        %4247 = vmatprep.subr.mxu0 0.0
        %4248 = vmatpush1.msra.mxu0 0.0
        %4249 = vmatprep.subr.mxu0 0.0
        %4250 = vmatpush1.msra.mxu0 0.0
        %4251 = vmatprep.subr.mxu0 0.0
        %4252 = vmatpush1.msra.mxu0 0.0
        %4253 = vmatprep.subr.mxu0 0.0
        %4254 = vmatpush1.msra.mxu0 0.0
        %4255 = vmatprep.subr.mxu0 0.0
        %4256 = vmatpush1.msra.mxu0 0.0
        %4257 = vmatprep.subr.mxu0 0.0
        %4258 = vmatpush1.msra.mxu0 0.0
        %4259 = vmatprep.subr.mxu0 0.0
        %4260 = vmatpush1.msra.mxu0 0.0
        %4261 = vmatprep.subr.mxu0 0.0
        %4262 = vmatpush1.msra.mxu0 0.0
        %4263 = vmatprep.subr.mxu0 0.0
        %4264 = vmatpush1.msra.mxu0 0.0
        %4265 = vmatprep.subr.mxu0 0.0
        %4266 = vmatpush1.msra.mxu0 0.0
        %4267 = vmatprep.subr.mxu0 0.0
        %4268 = vmatpush1.msra.mxu0 0.0
        %4269 = vmatprep.subr.mxu0 0.0
        %4270 = vmatpush1.msra.mxu0 0.0
        %4271 = vmatprep.subr.mxu0 0.0
        %4272 = vmatpush1.msra.mxu0 0.0
        %4273 = vmatprep.subr.mxu0 0.0
        %4274 = vmatpush1.msra.mxu0 0.0
        %4275 = vmatprep.subr.mxu0 0.0
        %4276 = vmatpush1.msra.mxu0 0.0
        %4277 = vmatprep.mubr.f32.mxu0 0.0
        %4278 = vmatmul.mubr.f32.gmra.mrb[0].mxu0 %v3514
        %v4279 = vpop.f32.mrb[0].mxu0
        %v4280 = vadd.f32 0.0, %v4279
        %v4281 = vpop.f32.mrb[0].mxu0
        %4282 = vmatprep.mubr.f32.mxu0 0.0
        %4283 = vmatmul.mubr.f32.gmra.mrb[0].mxu0 %v3516
        %v4284 = vpop.f32.mrb[0].mxu0
        %v4285 = vadd.f32 0.0, %v4284
        %v4286 = vpop.f32.mrb[0].mxu0
        %4287 = vmatprep.mubr.f32.mxu0 0.0
        %4288 = vmatmul.mubr.f32.gmra.mrb[0].mxu0 %v3518
        %v4289 = vpop.f32.mrb[0].mxu0
        %v4290 = vadd.f32 0.0, %v4289
        %v4291 = vpop.f32.mrb[0].mxu0
        %4292 = vmatprep.mubr.f32.mxu0 0.0
        %4293 = vmatmul.mubr.f32.gmra.mrb[0].mxu0 %v3520
        %v4294 = vpop.f32.mrb[0].mxu0
        %v4295 = vadd.f32 0.0, %v4294
        %v4296 = vpop.f32.mrb[0].mxu0
        %4297 = vmatprep.mubr.f32.mxu0 0.0
        %4298 = vmatmul.mubr.f32.gmra.mrb[0].mxu0 %v3522
        %v4299 = vpop.f32.mrb[0].mxu0
        %v4300 = vadd.f32 0.0, %v4299
        %v4301 = vpop.f32.mrb[0].mxu0
        %4302 = vmatprep.mubr.f32.mxu0 0.0
        %4303 = vmatmul.mubr.f32.gmra.mrb[0].mxu0 %v3524
        %v4304 = vpop.f32.mrb[0].mxu0
        %v4305 = vadd.f32 0.0, %v4304
        %v4306 = vpop.f32.mrb[0].mxu0
        %4307 = vmatprep.mubr.f32.mxu0 0.0
        %4308 = vmatmul.mubr.f32.gmra.mrb[0].mxu0 %v3526
        %v4309 = vpop.f32.mrb[0].mxu0
        %v4310 = vadd.f32 0.0, %v4309
        %v4311 = vpop.f32.mrb[0].mxu0
        %4312 = vmatprep.mubr.f32.mxu0 0.0
        %4313 = vmatmul.mubr.f32.gmra.mrb[0].mxu0 %v3528
        %v4314 = vpop.f32.mrb[0].mxu0
        %v4315 = vadd.f32 0.0, %v4314
        %v4316 = vpop.f32.mrb[0].mxu0
        %4317 = vmatprep.mubr.f32.mxu0 0.0
        %4318 = vmatmul.mubr.f32.gmra.mrb[0].mxu0 %v3530
        %v4319 = vpop.f32.mrb[0].mxu0
        %v4320 = vadd.f32 0.0, %v4319
        %v4321 = vpop.f32.mrb[0].mxu0
        %4322 = vmatprep.mubr.f32.mxu0 0.0
        %4323 = vmatmul.mubr.f32.gmra.mrb[0].mxu0 %v3532
        %v4324 = vpop.f32.mrb[0].mxu0
        %v4325 = vadd.f32 0.0, %v4324
        %v4326 = vpop.f32.mrb[0].mxu0
        %4327 = vmatprep.mubr.f32.mxu0 0.0
        %4328 = vmatmul.mubr.f32.gmra.mrb[0].mxu0 %v3534
        %v4329 = vpop.f32.mrb[0].mxu0
        %v4330 = vadd.f32 0.0, %v4329
        %v4331 = vpop.f32.mrb[0].mxu0
        %4332 = vmatprep.mubr.f32.mxu0 0.0
        %4333 = vmatmul.mubr.f32.gmra.mrb[0].mxu0 %v3536
        %v4334 = vpop.f32.mrb[0].mxu0
        %v4335 = vadd.f32 0.0, %v4334
        %v4336 = vpop.f32.mrb[0].mxu0
        %4337 = vmatprep.mubr.f32.mxu0 0.0
        %4338 = vmatmul.mubr.f32.gmra.mrb[0].mxu0 %v3538
        %v4339 = vpop.f32.mrb[0].mxu0
        %v4340 = vadd.f32 0.0, %v4339
        %v4341 = vpop.f32.mrb[0].mxu0
        %4342 = vmatprep.mubr.f32.mxu0 0.0
        %4343 = vmatmul.mubr.f32.gmra.mrb[0].mxu0 %v3540
        %v4344 = vpop.f32.mrb[0].mxu0
        %v4345 = vadd.f32 0.0, %v4344
        %v4346 = vpop.f32.mrb[0].mxu0
        %4347 = vmatprep.mubr.f32.mxu0 0.0
        %4348 = vmatmul.mubr.f32.gmra.mrb[0].mxu0 %v3542
        %v4349 = vpop.f32.mrb[0].mxu0
        %v4350 = vadd.f32 0.0, %v4349
        %v4351 = vpop.f32.mrb[0].mxu0
        %4352 = vmatprep.mubr.f32.mxu0 0.0
        %4353 = vmatmul.mubr.f32.gmra.mrb[0].mxu0 %v3544
        %v4354 = vpop.f32.mrb[0].mxu0
        %v4355 = vadd.f32 0.0, %v4354
        %v4356 = vpop.f32.mrb[0].mxu0
        %4357 = vmatprep.mubr.f32.mxu0 0.0
        %4358 = vmatmul.mubr.f32.gmra.mrb[0].mxu0 %v3546
        %v4359 = vpop.f32.mrb[0].mxu0
        %v4360 = vadd.f32 0.0, %v4359
        %v4361 = vpop.f32.mrb[0].mxu0
        %4362 = vmatprep.mubr.f32.mxu0 0.0
        %4363 = vmatmul.mubr.f32.gmra.mrb[0].mxu0 %v3548
        %v4364 = vpop.f32.mrb[0].mxu0
        %v4365 = vadd.f32 0.0, %v4364
        %v4366 = vpop.f32.mrb[0].mxu0
        %4367 = vmatprep.mubr.f32.mxu0 0.0
        %4368 = vmatmul.mubr.f32.gmra.mrb[0].mxu0 %v3550
        %v4369 = vpop.f32.mrb[0].mxu0
        %v4370 = vadd.f32 0.0, %v4369
        %v4371 = vpop.f32.mrb[0].mxu0
        %4372 = vmatprep.mubr.f32.mxu0 0.0
        %4373 = vmatmul.mubr.f32.gmra.mrb[0].mxu0 %v3552
        %v4374 = vpop.f32.mrb[0].mxu0
        %v4375 = vadd.f32 0.0, %v4374
        %v4376 = vpop.f32.mrb[0].mxu0
        %4377 = vmatprep.mubr.f32.mxu0 0.0
        %4378 = vmatmul.mubr.f32.gmra.mrb[0].mxu0 %v3554
        %v4379 = vpop.f32.mrb[0].mxu0
        %v4380 = vadd.f32 0.0, %v4379
        %v4381 = vpop.f32.mrb[0].mxu0
        %4382 = vmatprep.mubr.f32.mxu0 0.0
        %4383 = vmatmul.mubr.f32.gmra.mrb[0].mxu0 %v3556
        %v4384 = vpop.f32.mrb[0].mxu0
        %v4385 = vadd.f32 0.0, %v4384
        %v4386 = vpop.f32.mrb[0].mxu0
        %4387 = vmatprep.mubr.f32.mxu0 0.0
        %4388 = vmatmul.mubr.f32.gmra.mrb[0].mxu0 %v4209
        %v4389 = vpop.f32.mrb[0].mxu0
        %v4390 = vadd.f32 0.0, %v4389
        %v4391 = vpop.f32.mrb[0].mxu0
        %4392 = vmatprep.mubr.f32.mxu0 0.0
        %4393 = vmatmul.mubr.f32.gmra.mrb[0].mxu0 %v4211
        %v4394 = vpop.f32.mrb[0].mxu0
        %v4395 = vadd.f32 0.0, %v4394
        %v4396 = vpop.f32.mrb[0].mxu0
        %4397 = vdwg.mxu0
        %v4398 = vadd.f32 %v4179, %v4280
        %v4399 = vadd.f32 %v4180, %v4285
        %v4400 = vadd.f32 %v4181, %v4290
        %v4401 = vadd.f32 %v4182, %v4295
        %v4402 = vadd.f32 %v4183, %v4300
        %v4403 = vadd.f32 %v4184, %v4305
        %v4404 = vadd.f32 %v4185, %v4310
        %v4405 = vadd.f32 %v4186, %v4315
        %v4406 = vadd.f32 %v4187, %v4320
        %v4407 = vadd.f32 %v4188, %v4325
        %v4408 = vadd.f32 %v4189, %v4330
        %v4409 = vadd.f32 %v4190, %v4335
        %v4410 = vadd.f32 %v4191, %v4340
        %v4411 = vadd.f32 %v4192, %v4345
        %v4412 = vadd.f32 %v4193, %v4350
        %v4413 = vadd.f32 %v4194, %v4355
        %v4414 = vadd.f32 %v4195, %v4360
        %v4415 = vadd.f32 %v4196, %v4365
        %v4416 = vadd.f32 %v4197, %v4370
        %v4417 = vadd.f32 %v4198, %v4375
        %v4418 = vadd.f32 %v4199, %v4380
        %v4419 = vadd.f32 %v4200, %v4385
        %v4420 = vadd.f32 %v4201, %v4390
        %v4421 = vadd.f32 %v4202, %v4395
        %s4422 = scalar_lea.vmem %s3, 48
        %v4423 = vld [vmem:[%s4422] sm:$0xff]
        %v4424 = vsel %vm2868, %v2857, 0
        %v4427 = vsel %vm2868, %v2858, 0
        %4429 = vmatprep.subr.mxu0 0.0
        %4430 = vmatpush1.msra.mxu0 %v4423
        %4431 = vmatprep.subr.mxu0 0.0
        %4432 = vmatpush1.msra.mxu0 0.0
        %4433 = vmatprep.subr.mxu0 0.0
        %4434 = vmatpush1.msra.mxu0 0.0
        %4435 = vmatprep.subr.mxu0 0.0
        %4436 = vmatpush1.msra.mxu0 0.0
        %4437 = vmatprep.subr.mxu0 0.0
        %4438 = vmatpush1.msra.mxu0 0.0
        %4439 = vmatprep.subr.mxu0 0.0
        %4440 = vmatpush1.msra.mxu0 0.0
        %4441 = vmatprep.subr.mxu0 0.0
        %4442 = vmatpush1.msra.mxu0 0.0
        %4443 = vmatprep.subr.mxu0 0.0
        %4444 = vmatpush1.msra.mxu0 0.0
        %4445 = vmatprep.subr.mxu0 0.0
        %4446 = vmatpush1.msra.mxu0 0.0
        %4447 = vmatprep.subr.mxu0 0.0
        %4448 = vmatpush1.msra.mxu0 0.0
        %4449 = vmatprep.subr.mxu0 0.0
        %4450 = vmatpush1.msra.mxu0 0.0
        %4451 = vmatprep.subr.mxu0 0.0
        %4452 = vmatpush1.msra.mxu0 0.0
        %4453 = vmatprep.subr.mxu0 0.0
        %4454 = vmatpush1.msra.mxu0 0.0
        %4455 = vmatprep.subr.mxu0 0.0
        %4456 = vmatpush1.msra.mxu0 0.0
        %4457 = vmatprep.subr.mxu0 0.0
        %4458 = vmatpush1.msra.mxu0 0.0
        %4459 = vmatprep.subr.mxu0 0.0
        %4460 = vmatpush1.msra.mxu0 0.0
        %4461 = vmatprep.subr.mxu0 0.0
        %4462 = vmatpush1.msra.mxu0 0.0
        %4463 = vmatprep.subr.mxu0 0.0
        %4464 = vmatpush1.msra.mxu0 0.0
        %4465 = vmatprep.subr.mxu0 0.0
        %4466 = vmatpush1.msra.mxu0 0.0
        %4467 = vmatprep.subr.mxu0 0.0
        %4468 = vmatpush1.msra.mxu0 0.0
        %4469 = vmatprep.subr.mxu0 0.0
        %4470 = vmatpush1.msra.mxu0 0.0
        %4471 = vmatprep.subr.mxu0 0.0
        %4472 = vmatpush1.msra.mxu0 0.0
        %4473 = vmatprep.subr.mxu0 0.0
        %4474 = vmatpush1.msra.mxu0 0.0
        %4475 = vmatprep.subr.mxu0 0.0
        %4476 = vmatpush1.msra.mxu0 0.0
        %4477 = vmatprep.subr.mxu0 0.0
        %4478 = vmatpush1.msra.mxu0 0.0
        %4479 = vmatprep.subr.mxu0 0.0
        %4480 = vmatpush1.msra.mxu0 0.0
        %4481 = vmatprep.subr.mxu0 0.0
        %4482 = vmatpush1.msra.mxu0 0.0
        %4483 = vmatprep.subr.mxu0 0.0
        %4484 = vmatpush1.msra.mxu0 0.0
        %4485 = vmatprep.subr.mxu0 0.0
        %4486 = vmatpush1.msra.mxu0 0.0
        %4487 = vmatprep.subr.mxu0 0.0
        %4488 = vmatpush1.msra.mxu0 0.0
        %4489 = vmatprep.subr.mxu0 0.0
        %4490 = vmatpush1.msra.mxu0 0.0
        %4491 = vmatprep.subr.mxu0 0.0
        %4492 = vmatpush1.msra.mxu0 0.0
        %4493 = vmatprep.mubr.f32.mxu0 0.0
        %4494 = vmatmul.mubr.f32.gmra.mrb[0].mxu0 %v2882
        %v4495 = vpop.f32.mrb[0].mxu0
        %v4496 = vadd.f32 0.0, %v4495
        %v4497 = vpop.f32.mrb[0].mxu0
        %4498 = vmatprep.mubr.f32.mxu0 0.0
        %4499 = vmatmul.mubr.f32.gmra.mrb[0].mxu0 %v2885
        %v4500 = vpop.f32.mrb[0].mxu0
        %v4501 = vadd.f32 0.0, %v4500
        %v4502 = vpop.f32.mrb[0].mxu0
        %4503 = vmatprep.mubr.f32.mxu0 0.0
        %4504 = vmatmul.mubr.f32.gmra.mrb[0].mxu0 %v2888
        %v4505 = vpop.f32.mrb[0].mxu0
        %v4506 = vadd.f32 0.0, %v4505
        %v4507 = vpop.f32.mrb[0].mxu0
        %4508 = vmatprep.mubr.f32.mxu0 0.0
        %4509 = vmatmul.mubr.f32.gmra.mrb[0].mxu0 %v2891
        %v4510 = vpop.f32.mrb[0].mxu0
        %v4511 = vadd.f32 0.0, %v4510
        %v4512 = vpop.f32.mrb[0].mxu0
        %4513 = vmatprep.mubr.f32.mxu0 0.0
        %4514 = vmatmul.mubr.f32.gmra.mrb[0].mxu0 %v2894
        %v4515 = vpop.f32.mrb[0].mxu0
        %v4516 = vadd.f32 0.0, %v4515
        %v4517 = vpop.f32.mrb[0].mxu0
        %4518 = vmatprep.mubr.f32.mxu0 0.0
        %4519 = vmatmul.mubr.f32.gmra.mrb[0].mxu0 %v2897
        %v4520 = vpop.f32.mrb[0].mxu0
        %v4521 = vadd.f32 0.0, %v4520
        %v4522 = vpop.f32.mrb[0].mxu0
        %4523 = vmatprep.mubr.f32.mxu0 0.0
        %4524 = vmatmul.mubr.f32.gmra.mrb[0].mxu0 %v2900
        %v4525 = vpop.f32.mrb[0].mxu0
        %v4526 = vadd.f32 0.0, %v4525
        %v4527 = vpop.f32.mrb[0].mxu0
        %4528 = vmatprep.mubr.f32.mxu0 0.0
        %4529 = vmatmul.mubr.f32.gmra.mrb[0].mxu0 %v2903
        %v4530 = vpop.f32.mrb[0].mxu0
        %v4531 = vadd.f32 0.0, %v4530
        %v4532 = vpop.f32.mrb[0].mxu0
        %4533 = vmatprep.mubr.f32.mxu0 0.0
        %4534 = vmatmul.mubr.f32.gmra.mrb[0].mxu0 %v2906
        %v4535 = vpop.f32.mrb[0].mxu0
        %v4536 = vadd.f32 0.0, %v4535
        %v4537 = vpop.f32.mrb[0].mxu0
        %4538 = vmatprep.mubr.f32.mxu0 0.0
        %4539 = vmatmul.mubr.f32.gmra.mrb[0].mxu0 %v2909
        %v4540 = vpop.f32.mrb[0].mxu0
        %v4541 = vadd.f32 0.0, %v4540
        %v4542 = vpop.f32.mrb[0].mxu0
        %4543 = vmatprep.mubr.f32.mxu0 0.0
        %4544 = vmatmul.mubr.f32.gmra.mrb[0].mxu0 %v2912
        %v4545 = vpop.f32.mrb[0].mxu0
        %v4546 = vadd.f32 0.0, %v4545
        %v4547 = vpop.f32.mrb[0].mxu0
        %4548 = vmatprep.mubr.f32.mxu0 0.0
        %4549 = vmatmul.mubr.f32.gmra.mrb[0].mxu0 %v2915
        %v4550 = vpop.f32.mrb[0].mxu0
        %v4551 = vadd.f32 0.0, %v4550
        %v4552 = vpop.f32.mrb[0].mxu0
        %4553 = vmatprep.mubr.f32.mxu0 0.0
        %4554 = vmatmul.mubr.f32.gmra.mrb[0].mxu0 %v2918
        %v4555 = vpop.f32.mrb[0].mxu0
        %v4556 = vadd.f32 0.0, %v4555
        %v4557 = vpop.f32.mrb[0].mxu0
        %4558 = vmatprep.mubr.f32.mxu0 0.0
        %4559 = vmatmul.mubr.f32.gmra.mrb[0].mxu0 %v2921
        %v4560 = vpop.f32.mrb[0].mxu0
        %v4561 = vadd.f32 0.0, %v4560
        %v4562 = vpop.f32.mrb[0].mxu0
        %4563 = vmatprep.mubr.f32.mxu0 0.0
        %4564 = vmatmul.mubr.f32.gmra.mrb[0].mxu0 %v2924
        %v4565 = vpop.f32.mrb[0].mxu0
        %v4566 = vadd.f32 0.0, %v4565
        %v4567 = vpop.f32.mrb[0].mxu0
        %4568 = vmatprep.mubr.f32.mxu0 0.0
        %4569 = vmatmul.mubr.f32.gmra.mrb[0].mxu0 %v2927
        %v4570 = vpop.f32.mrb[0].mxu0
        %v4571 = vadd.f32 0.0, %v4570
        %v4572 = vpop.f32.mrb[0].mxu0
        %4573 = vmatprep.mubr.f32.mxu0 0.0
        %4574 = vmatmul.mubr.f32.gmra.mrb[0].mxu0 %v2930
        %v4575 = vpop.f32.mrb[0].mxu0
        %v4576 = vadd.f32 0.0, %v4575
        %v4577 = vpop.f32.mrb[0].mxu0
        %4578 = vmatprep.mubr.f32.mxu0 0.0
        %4579 = vmatmul.mubr.f32.gmra.mrb[0].mxu0 %v2933
        %v4580 = vpop.f32.mrb[0].mxu0
        %v4581 = vadd.f32 0.0, %v4580
        %v4582 = vpop.f32.mrb[0].mxu0
        %4583 = vmatprep.mubr.f32.mxu0 0.0
        %4584 = vmatmul.mubr.f32.gmra.mrb[0].mxu0 %v2936
        %v4585 = vpop.f32.mrb[0].mxu0
        %v4586 = vadd.f32 0.0, %v4585
        %v4587 = vpop.f32.mrb[0].mxu0
        %4588 = vmatprep.mubr.f32.mxu0 0.0
        %4589 = vmatmul.mubr.f32.gmra.mrb[0].mxu0 %v2939
        %v4590 = vpop.f32.mrb[0].mxu0
        %v4591 = vadd.f32 0.0, %v4590
        %v4592 = vpop.f32.mrb[0].mxu0
        %4593 = vmatprep.mubr.f32.mxu0 0.0
        %4594 = vmatmul.mubr.f32.gmra.mrb[0].mxu0 %v3769
        %v4595 = vpop.f32.mrb[0].mxu0
        %v4596 = vadd.f32 0.0, %v4595
        %v4597 = vpop.f32.mrb[0].mxu0
        %4598 = vmatprep.mubr.f32.mxu0 0.0
        %4599 = vmatmul.mubr.f32.gmra.mrb[0].mxu0 %v3772
        %v4600 = vpop.f32.mrb[0].mxu0
        %v4601 = vadd.f32 0.0, %v4600
        %v4602 = vpop.f32.mrb[0].mxu0
        %4603 = vmatprep.mubr.f32.mxu0 0.0
        %4604 = vmatmul.mubr.f32.gmra.mrb[0].mxu0 %v4424
        %v4605 = vpop.f32.mrb[0].mxu0
        %v4606 = vadd.f32 0.0, %v4605
        %v4607 = vpop.f32.mrb[0].mxu0
        %4608 = vmatprep.mubr.f32.mxu0 0.0
        %4609 = vmatmul.mubr.f32.gmra.mrb[0].mxu0 %v4427
        %v4610 = vpop.f32.mrb[0].mxu0
        %v4611 = vadd.f32 0.0, %v4610
        %v4612 = vpop.f32.mrb[0].mxu0
        %4613 = vdwg.mxu0
        %v4614 = vadd.f32 %v4398, %v4496
        %v4615 = vadd.f32 %v4399, %v4501
        %v4616 = vadd.f32 %v4400, %v4506
        %v4617 = vadd.f32 %v4401, %v4511
        %v4618 = vadd.f32 %v4402, %v4516
        %v4619 = vadd.f32 %v4403, %v4521
        %v4620 = vadd.f32 %v4404, %v4526
        %v4621 = vadd.f32 %v4405, %v4531
        %v4622 = vadd.f32 %v4406, %v4536
        %v4623 = vadd.f32 %v4407, %v4541
        %v4624 = vadd.f32 %v4408, %v4546
        %v4625 = vadd.f32 %v4409, %v4551
        %v4626 = vadd.f32 %v4410, %v4556
        %v4627 = vadd.f32 %v4411, %v4561
        %v4628 = vadd.f32 %v4412, %v4566
        %v4629 = vadd.f32 %v4413, %v4571
        %v4630 = vadd.f32 %v4414, %v4576
        %v4631 = vadd.f32 %v4415, %v4581
        %v4632 = vadd.f32 %v4416, %v4586
        %v4633 = vadd.f32 %v4417, %v4591
        %v4634 = vadd.f32 %v4418, %v4596
        %v4635 = vadd.f32 %v4419, %v4601
        %v4636 = vadd.f32 %v4420, %v4606
        %v4637 = vadd.f32 %v4421, %v4611
        %s4638 = scalar_lea.vmem %s3, 56
        %v4639 = vld [vmem:[%s4638] sm:$0xff]
        %v4641 = vrot.slane %v2858, 1
        %v4642 = vsel %vm597, %v3988, %v4641
        %v4643 = vrot.slane %v2859, 1
        %v4644 = vsel %vm597, %v4641, %v4643
        %v4645 = vsel %vm2868, %v4642, 0
        %v4647 = vsel %vm2868, %v4644, 0
        %4649 = vmatprep.subr.mxu0 0.0
        %4650 = vmatpush1.msra.mxu0 %v4639
        %4651 = vmatprep.subr.mxu0 0.0
        %4652 = vmatpush1.msra.mxu0 0.0
        %4653 = vmatprep.subr.mxu0 0.0
        %4654 = vmatpush1.msra.mxu0 0.0
        %4655 = vmatprep.subr.mxu0 0.0
        %4656 = vmatpush1.msra.mxu0 0.0
        %4657 = vmatprep.subr.mxu0 0.0
        %4658 = vmatpush1.msra.mxu0 0.0
        %4659 = vmatprep.subr.mxu0 0.0
        %4660 = vmatpush1.msra.mxu0 0.0
        %4661 = vmatprep.subr.mxu0 0.0
        %4662 = vmatpush1.msra.mxu0 0.0
        %4663 = vmatprep.subr.mxu0 0.0
        %4664 = vmatpush1.msra.mxu0 0.0
        %4665 = vmatprep.subr.mxu0 0.0
        %4666 = vmatpush1.msra.mxu0 0.0
        %4667 = vmatprep.subr.mxu0 0.0
        %4668 = vmatpush1.msra.mxu0 0.0
        %4669 = vmatprep.subr.mxu0 0.0
        %4670 = vmatpush1.msra.mxu0 0.0
        %4671 = vmatprep.subr.mxu0 0.0
        %4672 = vmatpush1.msra.mxu0 0.0
        %4673 = vmatprep.subr.mxu0 0.0
        %4674 = vmatpush1.msra.mxu0 0.0
        %4675 = vmatprep.subr.mxu0 0.0
        %4676 = vmatpush1.msra.mxu0 0.0
        %4677 = vmatprep.subr.mxu0 0.0
        %4678 = vmatpush1.msra.mxu0 0.0
        %4679 = vmatprep.subr.mxu0 0.0
        %4680 = vmatpush1.msra.mxu0 0.0
        %4681 = vmatprep.subr.mxu0 0.0
        %4682 = vmatpush1.msra.mxu0 0.0
        %4683 = vmatprep.subr.mxu0 0.0
        %4684 = vmatpush1.msra.mxu0 0.0
        %4685 = vmatprep.subr.mxu0 0.0
        %4686 = vmatpush1.msra.mxu0 0.0
        %4687 = vmatprep.subr.mxu0 0.0
        %4688 = vmatpush1.msra.mxu0 0.0
        %4689 = vmatprep.subr.mxu0 0.0
        %4690 = vmatpush1.msra.mxu0 0.0
        %4691 = vmatprep.subr.mxu0 0.0
        %4692 = vmatpush1.msra.mxu0 0.0
        %4693 = vmatprep.subr.mxu0 0.0
        %4694 = vmatpush1.msra.mxu0 0.0
        %4695 = vmatprep.subr.mxu0 0.0
        %4696 = vmatpush1.msra.mxu0 0.0
        %4697 = vmatprep.subr.mxu0 0.0
        %4698 = vmatpush1.msra.mxu0 0.0
        %4699 = vmatprep.subr.mxu0 0.0
        %4700 = vmatpush1.msra.mxu0 0.0
        %4701 = vmatprep.subr.mxu0 0.0
        %4702 = vmatpush1.msra.mxu0 0.0
        %4703 = vmatprep.subr.mxu0 0.0
        %4704 = vmatpush1.msra.mxu0 0.0
        %4705 = vmatprep.subr.mxu0 0.0
        %4706 = vmatpush1.msra.mxu0 0.0
        %4707 = vmatprep.subr.mxu0 0.0
        %4708 = vmatpush1.msra.mxu0 0.0
        %4709 = vmatprep.subr.mxu0 0.0
        %4710 = vmatpush1.msra.mxu0 0.0
        %4711 = vmatprep.subr.mxu0 0.0
        %4712 = vmatpush1.msra.mxu0 0.0
        %4713 = vmatprep.mubr.f32.mxu0 0.0
        %4714 = vmatmul.mubr.f32.gmra.mrb[0].mxu0 %v3210
        %v4715 = vpop.f32.mrb[0].mxu0
        %v4716 = vadd.f32 0.0, %v4715
        %v4717 = vpop.f32.mrb[0].mxu0
        %4718 = vmatprep.mubr.f32.mxu0 0.0
        %4719 = vmatmul.mubr.f32.gmra.mrb[0].mxu0 %v3212
        %v4720 = vpop.f32.mrb[0].mxu0
        %v4721 = vadd.f32 0.0, %v4720
        %v4722 = vpop.f32.mrb[0].mxu0
        %4723 = vmatprep.mubr.f32.mxu0 0.0
        %4724 = vmatmul.mubr.f32.gmra.mrb[0].mxu0 %v3214
        %v4725 = vpop.f32.mrb[0].mxu0
        %v4726 = vadd.f32 0.0, %v4725
        %v4727 = vpop.f32.mrb[0].mxu0
        %4728 = vmatprep.mubr.f32.mxu0 0.0
        %4729 = vmatmul.mubr.f32.gmra.mrb[0].mxu0 %v3216
        %v4730 = vpop.f32.mrb[0].mxu0
        %v4731 = vadd.f32 0.0, %v4730
        %v4732 = vpop.f32.mrb[0].mxu0
        %4733 = vmatprep.mubr.f32.mxu0 0.0
        %4734 = vmatmul.mubr.f32.gmra.mrb[0].mxu0 %v3218
        %v4735 = vpop.f32.mrb[0].mxu0
        %v4736 = vadd.f32 0.0, %v4735
        %v4737 = vpop.f32.mrb[0].mxu0
        %4738 = vmatprep.mubr.f32.mxu0 0.0
        %4739 = vmatmul.mubr.f32.gmra.mrb[0].mxu0 %v3220
        %v4740 = vpop.f32.mrb[0].mxu0
        %v4741 = vadd.f32 0.0, %v4740
        %v4742 = vpop.f32.mrb[0].mxu0
        %4743 = vmatprep.mubr.f32.mxu0 0.0
        %4744 = vmatmul.mubr.f32.gmra.mrb[0].mxu0 %v3222
        %v4745 = vpop.f32.mrb[0].mxu0
        %v4746 = vadd.f32 0.0, %v4745
        %v4747 = vpop.f32.mrb[0].mxu0
        %4748 = vmatprep.mubr.f32.mxu0 0.0
        %4749 = vmatmul.mubr.f32.gmra.mrb[0].mxu0 %v3224
        %v4750 = vpop.f32.mrb[0].mxu0
        %v4751 = vadd.f32 0.0, %v4750
        %v4752 = vpop.f32.mrb[0].mxu0
        %4753 = vmatprep.mubr.f32.mxu0 0.0
        %4754 = vmatmul.mubr.f32.gmra.mrb[0].mxu0 %v3226
        %v4755 = vpop.f32.mrb[0].mxu0
        %v4756 = vadd.f32 0.0, %v4755
        %v4757 = vpop.f32.mrb[0].mxu0
        %4758 = vmatprep.mubr.f32.mxu0 0.0
        %4759 = vmatmul.mubr.f32.gmra.mrb[0].mxu0 %v3228
        %v4760 = vpop.f32.mrb[0].mxu0
        %v4761 = vadd.f32 0.0, %v4760
        %v4762 = vpop.f32.mrb[0].mxu0
        %4763 = vmatprep.mubr.f32.mxu0 0.0
        %4764 = vmatmul.mubr.f32.gmra.mrb[0].mxu0 %v3230
        %v4765 = vpop.f32.mrb[0].mxu0
        %v4766 = vadd.f32 0.0, %v4765
        %v4767 = vpop.f32.mrb[0].mxu0
        %4768 = vmatprep.mubr.f32.mxu0 0.0
        %4769 = vmatmul.mubr.f32.gmra.mrb[0].mxu0 %v3232
        %v4770 = vpop.f32.mrb[0].mxu0
        %v4771 = vadd.f32 0.0, %v4770
        %v4772 = vpop.f32.mrb[0].mxu0
        %4773 = vmatprep.mubr.f32.mxu0 0.0
        %4774 = vmatmul.mubr.f32.gmra.mrb[0].mxu0 %v3234
        %v4775 = vpop.f32.mrb[0].mxu0
        %v4776 = vadd.f32 0.0, %v4775
        %v4777 = vpop.f32.mrb[0].mxu0
        %4778 = vmatprep.mubr.f32.mxu0 0.0
        %4779 = vmatmul.mubr.f32.gmra.mrb[0].mxu0 %v3236
        %v4780 = vpop.f32.mrb[0].mxu0
        %v4781 = vadd.f32 0.0, %v4780
        %v4782 = vpop.f32.mrb[0].mxu0
        %4783 = vmatprep.mubr.f32.mxu0 0.0
        %4784 = vmatmul.mubr.f32.gmra.mrb[0].mxu0 %v3238
        %v4785 = vpop.f32.mrb[0].mxu0
        %v4786 = vadd.f32 0.0, %v4785
        %v4787 = vpop.f32.mrb[0].mxu0
        %4788 = vmatprep.mubr.f32.mxu0 0.0
        %4789 = vmatmul.mubr.f32.gmra.mrb[0].mxu0 %v3240
        %v4790 = vpop.f32.mrb[0].mxu0
        %v4791 = vadd.f32 0.0, %v4790
        %v4792 = vpop.f32.mrb[0].mxu0
        %4793 = vmatprep.mubr.f32.mxu0 0.0
        %4794 = vmatmul.mubr.f32.gmra.mrb[0].mxu0 %v3242
        %v4795 = vpop.f32.mrb[0].mxu0
        %v4796 = vadd.f32 0.0, %v4795
        %v4797 = vpop.f32.mrb[0].mxu0
        %4798 = vmatprep.mubr.f32.mxu0 0.0
        %4799 = vmatmul.mubr.f32.gmra.mrb[0].mxu0 %v3244
        %v4800 = vpop.f32.mrb[0].mxu0
        %v4801 = vadd.f32 0.0, %v4800
        %v4802 = vpop.f32.mrb[0].mxu0
        %4803 = vmatprep.mubr.f32.mxu0 0.0
        %4804 = vmatmul.mubr.f32.gmra.mrb[0].mxu0 %v3246
        %v4805 = vpop.f32.mrb[0].mxu0
        %v4806 = vadd.f32 0.0, %v4805
        %v4807 = vpop.f32.mrb[0].mxu0
        %4808 = vmatprep.mubr.f32.mxu0 0.0
        %4809 = vmatmul.mubr.f32.gmra.mrb[0].mxu0 %v3248
        %v4810 = vpop.f32.mrb[0].mxu0
        %v4811 = vadd.f32 0.0, %v4810
        %v4812 = vpop.f32.mrb[0].mxu0
        %4813 = vmatprep.mubr.f32.mxu0 0.0
        %4814 = vmatmul.mubr.f32.gmra.mrb[0].mxu0 %v3990
        %v4815 = vpop.f32.mrb[0].mxu0
        %v4816 = vadd.f32 0.0, %v4815
        %v4817 = vpop.f32.mrb[0].mxu0
        %4818 = vmatprep.mubr.f32.mxu0 0.0
        %4819 = vmatmul.mubr.f32.gmra.mrb[0].mxu0 %v3992
        %v4820 = vpop.f32.mrb[0].mxu0
        %v4821 = vadd.f32 0.0, %v4820
        %v4822 = vpop.f32.mrb[0].mxu0
        %4823 = vmatprep.mubr.f32.mxu0 0.0
        %4824 = vmatmul.mubr.f32.gmra.mrb[0].mxu0 %v4645
        %v4825 = vpop.f32.mrb[0].mxu0
        %v4826 = vadd.f32 0.0, %v4825
        %v4827 = vpop.f32.mrb[0].mxu0
        %4828 = vmatprep.mubr.f32.mxu0 0.0
        %4829 = vmatmul.mubr.f32.gmra.mrb[0].mxu0 %v4647
        %v4830 = vpop.f32.mrb[0].mxu0
        %v4831 = vadd.f32 0.0, %v4830
        %v4832 = vpop.f32.mrb[0].mxu0
        %4833 = vdwg.mxu0
        %v4834 = vadd.f32 %v4614, %v4716
        %v4835 = vadd.f32 %v4615, %v4721
        %v4836 = vadd.f32 %v4616, %v4726
        %v4837 = vadd.f32 %v4617, %v4731
        %v4838 = vadd.f32 %v4618, %v4736
        %v4839 = vadd.f32 %v4619, %v4741
        %v4840 = vadd.f32 %v4620, %v4746
        %v4841 = vadd.f32 %v4621, %v4751
        %v4842 = vadd.f32 %v4622, %v4756
        %v4843 = vadd.f32 %v4623, %v4761
        %v4844 = vadd.f32 %v4624, %v4766
        %v4845 = vadd.f32 %v4625, %v4771
        %v4846 = vadd.f32 %v4626, %v4776
        %v4847 = vadd.f32 %v4627, %v4781
        %v4848 = vadd.f32 %v4628, %v4786
        %v4849 = vadd.f32 %v4629, %v4791
        %v4850 = vadd.f32 %v4630, %v4796
        %v4851 = vadd.f32 %v4631, %v4801
        %v4852 = vadd.f32 %v4632, %v4806
        %v4853 = vadd.f32 %v4633, %v4811
        %v4854 = vadd.f32 %v4634, %v4816
        %v4855 = vadd.f32 %v4635, %v4821
        %v4856 = vadd.f32 %v4636, %v4826
        %v4857 = vadd.f32 %v4637, %v4831
        %s4858 = scalar_lea.vmem %s3, 64
        %v4859 = vld [vmem:[%s4858] sm:$0xff]
        %v4860 = vrot.slane %v2858, 2
        %v4861 = vsel %vm957, %v4207, %v4860
        %v4862 = vrot.slane %v2859, 2
        %v4863 = vsel %vm957, %v4860, %v4862
        %v4864 = vsel %vm2868, %v4861, 0
        %v4866 = vsel %vm2868, %v4863, 0
        %4868 = vmatprep.subr.mxu0 0.0
        %4869 = vmatpush1.msra.mxu0 %v4859
        %4870 = vmatprep.subr.mxu0 0.0
        %4871 = vmatpush1.msra.mxu0 0.0
        %4872 = vmatprep.subr.mxu0 0.0
        %4873 = vmatpush1.msra.mxu0 0.0
        %4874 = vmatprep.subr.mxu0 0.0
        %4875 = vmatpush1.msra.mxu0 0.0
        %4876 = vmatprep.subr.mxu0 0.0
        %4877 = vmatpush1.msra.mxu0 0.0
        %4878 = vmatprep.subr.mxu0 0.0
        %4879 = vmatpush1.msra.mxu0 0.0
        %4880 = vmatprep.subr.mxu0 0.0
        %4881 = vmatpush1.msra.mxu0 0.0
        %4882 = vmatprep.subr.mxu0 0.0
        %4883 = vmatpush1.msra.mxu0 0.0
        %4884 = vmatprep.subr.mxu0 0.0
        %4885 = vmatpush1.msra.mxu0 0.0
        %4886 = vmatprep.subr.mxu0 0.0
        %4887 = vmatpush1.msra.mxu0 0.0
        %4888 = vmatprep.subr.mxu0 0.0
        %4889 = vmatpush1.msra.mxu0 0.0
        %4890 = vmatprep.subr.mxu0 0.0
        %4891 = vmatpush1.msra.mxu0 0.0
        %4892 = vmatprep.subr.mxu0 0.0
        %4893 = vmatpush1.msra.mxu0 0.0
        %4894 = vmatprep.subr.mxu0 0.0
        %4895 = vmatpush1.msra.mxu0 0.0
        %4896 = vmatprep.subr.mxu0 0.0
        %4897 = vmatpush1.msra.mxu0 0.0
        %4898 = vmatprep.subr.mxu0 0.0
        %4899 = vmatpush1.msra.mxu0 0.0
        %4900 = vmatprep.subr.mxu0 0.0
        %4901 = vmatpush1.msra.mxu0 0.0
        %4902 = vmatprep.subr.mxu0 0.0
        %4903 = vmatpush1.msra.mxu0 0.0
        %4904 = vmatprep.subr.mxu0 0.0
        %4905 = vmatpush1.msra.mxu0 0.0
        %4906 = vmatprep.subr.mxu0 0.0
        %4907 = vmatpush1.msra.mxu0 0.0
        %4908 = vmatprep.subr.mxu0 0.0
        %4909 = vmatpush1.msra.mxu0 0.0
        %4910 = vmatprep.subr.mxu0 0.0
        %4911 = vmatpush1.msra.mxu0 0.0
        %4912 = vmatprep.subr.mxu0 0.0
        %4913 = vmatpush1.msra.mxu0 0.0
        %4914 = vmatprep.subr.mxu0 0.0
        %4915 = vmatpush1.msra.mxu0 0.0
        %4916 = vmatprep.subr.mxu0 0.0
        %4917 = vmatpush1.msra.mxu0 0.0
        %4918 = vmatprep.subr.mxu0 0.0
        %4919 = vmatpush1.msra.mxu0 0.0
        %4920 = vmatprep.subr.mxu0 0.0
        %4921 = vmatpush1.msra.mxu0 0.0
        %4922 = vmatprep.subr.mxu0 0.0
        %4923 = vmatpush1.msra.mxu0 0.0
        %4924 = vmatprep.subr.mxu0 0.0
        %4925 = vmatpush1.msra.mxu0 0.0
        %4926 = vmatprep.subr.mxu0 0.0
        %4927 = vmatpush1.msra.mxu0 0.0
        %4928 = vmatprep.subr.mxu0 0.0
        %4929 = vmatpush1.msra.mxu0 0.0
        %4930 = vmatprep.subr.mxu0 0.0
        %4931 = vmatpush1.msra.mxu0 0.0
        %4932 = vmatprep.mubr.f32.mxu0 0.0
        %4933 = vmatmul.mubr.f32.gmra.mrb[0].mxu0 %v3518
        %v4934 = vpop.f32.mrb[0].mxu0
        %v4935 = vadd.f32 0.0, %v4934
        %v4936 = vpop.f32.mrb[0].mxu0
        %4937 = vmatprep.mubr.f32.mxu0 0.0
        %4938 = vmatmul.mubr.f32.gmra.mrb[0].mxu0 %v3520
        %v4939 = vpop.f32.mrb[0].mxu0
        %v4940 = vadd.f32 0.0, %v4939
        %v4941 = vpop.f32.mrb[0].mxu0
        %4942 = vmatprep.mubr.f32.mxu0 0.0
        %4943 = vmatmul.mubr.f32.gmra.mrb[0].mxu0 %v3522
        %v4944 = vpop.f32.mrb[0].mxu0
        %v4945 = vadd.f32 0.0, %v4944
        %v4946 = vpop.f32.mrb[0].mxu0
        %4947 = vmatprep.mubr.f32.mxu0 0.0
        %4948 = vmatmul.mubr.f32.gmra.mrb[0].mxu0 %v3524
        %v4949 = vpop.f32.mrb[0].mxu0
        %v4950 = vadd.f32 0.0, %v4949
        %v4951 = vpop.f32.mrb[0].mxu0
        %4952 = vmatprep.mubr.f32.mxu0 0.0
        %4953 = vmatmul.mubr.f32.gmra.mrb[0].mxu0 %v3526
        %v4954 = vpop.f32.mrb[0].mxu0
        %v4955 = vadd.f32 0.0, %v4954
        %v4956 = vpop.f32.mrb[0].mxu0
        %4957 = vmatprep.mubr.f32.mxu0 0.0
        %4958 = vmatmul.mubr.f32.gmra.mrb[0].mxu0 %v3528
        %v4959 = vpop.f32.mrb[0].mxu0
        %v4960 = vadd.f32 0.0, %v4959
        %v4961 = vpop.f32.mrb[0].mxu0
        %4962 = vmatprep.mubr.f32.mxu0 0.0
        %4963 = vmatmul.mubr.f32.gmra.mrb[0].mxu0 %v3530
        %v4964 = vpop.f32.mrb[0].mxu0
        %v4965 = vadd.f32 0.0, %v4964
        %v4966 = vpop.f32.mrb[0].mxu0
        %4967 = vmatprep.mubr.f32.mxu0 0.0
        %4968 = vmatmul.mubr.f32.gmra.mrb[0].mxu0 %v3532
        %v4969 = vpop.f32.mrb[0].mxu0
        %v4970 = vadd.f32 0.0, %v4969
        %v4971 = vpop.f32.mrb[0].mxu0
        %4972 = vmatprep.mubr.f32.mxu0 0.0
        %4973 = vmatmul.mubr.f32.gmra.mrb[0].mxu0 %v3534
        %v4974 = vpop.f32.mrb[0].mxu0
        %v4975 = vadd.f32 0.0, %v4974
        %v4976 = vpop.f32.mrb[0].mxu0
        %4977 = vmatprep.mubr.f32.mxu0 0.0
        %4978 = vmatmul.mubr.f32.gmra.mrb[0].mxu0 %v3536
        %v4979 = vpop.f32.mrb[0].mxu0
        %v4980 = vadd.f32 0.0, %v4979
        %v4981 = vpop.f32.mrb[0].mxu0
        %4982 = vmatprep.mubr.f32.mxu0 0.0
        %4983 = vmatmul.mubr.f32.gmra.mrb[0].mxu0 %v3538
        %v4984 = vpop.f32.mrb[0].mxu0
        %v4985 = vadd.f32 0.0, %v4984
        %v4986 = vpop.f32.mrb[0].mxu0
        %4987 = vmatprep.mubr.f32.mxu0 0.0
        %4988 = vmatmul.mubr.f32.gmra.mrb[0].mxu0 %v3540
        %v4989 = vpop.f32.mrb[0].mxu0
        %v4990 = vadd.f32 0.0, %v4989
        %v4991 = vpop.f32.mrb[0].mxu0
        %4992 = vmatprep.mubr.f32.mxu0 0.0
        %4993 = vmatmul.mubr.f32.gmra.mrb[0].mxu0 %v3542
        %v4994 = vpop.f32.mrb[0].mxu0
        %v4995 = vadd.f32 0.0, %v4994
        %v4996 = vpop.f32.mrb[0].mxu0
        %4997 = vmatprep.mubr.f32.mxu0 0.0
        %4998 = vmatmul.mubr.f32.gmra.mrb[0].mxu0 %v3544
        %v4999 = vpop.f32.mrb[0].mxu0
        %v5000 = vadd.f32 0.0, %v4999
        %v5001 = vpop.f32.mrb[0].mxu0
        %5002 = vmatprep.mubr.f32.mxu0 0.0
        %5003 = vmatmul.mubr.f32.gmra.mrb[0].mxu0 %v3546
        %v5004 = vpop.f32.mrb[0].mxu0
        %v5005 = vadd.f32 0.0, %v5004
        %v5006 = vpop.f32.mrb[0].mxu0
        %5007 = vmatprep.mubr.f32.mxu0 0.0
        %5008 = vmatmul.mubr.f32.gmra.mrb[0].mxu0 %v3548
        %v5009 = vpop.f32.mrb[0].mxu0
        %v5010 = vadd.f32 0.0, %v5009
        %v5011 = vpop.f32.mrb[0].mxu0
        %5012 = vmatprep.mubr.f32.mxu0 0.0
        %5013 = vmatmul.mubr.f32.gmra.mrb[0].mxu0 %v3550
        %v5014 = vpop.f32.mrb[0].mxu0
        %v5015 = vadd.f32 0.0, %v5014
        %v5016 = vpop.f32.mrb[0].mxu0
        %5017 = vmatprep.mubr.f32.mxu0 0.0
        %5018 = vmatmul.mubr.f32.gmra.mrb[0].mxu0 %v3552
        %v5019 = vpop.f32.mrb[0].mxu0
        %v5020 = vadd.f32 0.0, %v5019
        %v5021 = vpop.f32.mrb[0].mxu0
        %5022 = vmatprep.mubr.f32.mxu0 0.0
        %5023 = vmatmul.mubr.f32.gmra.mrb[0].mxu0 %v3554
        %v5024 = vpop.f32.mrb[0].mxu0
        %v5025 = vadd.f32 0.0, %v5024
        %v5026 = vpop.f32.mrb[0].mxu0
        %5027 = vmatprep.mubr.f32.mxu0 0.0
        %5028 = vmatmul.mubr.f32.gmra.mrb[0].mxu0 %v3556
        %v5029 = vpop.f32.mrb[0].mxu0
        %v5030 = vadd.f32 0.0, %v5029
        %v5031 = vpop.f32.mrb[0].mxu0
        %5032 = vmatprep.mubr.f32.mxu0 0.0
        %5033 = vmatmul.mubr.f32.gmra.mrb[0].mxu0 %v4209
        %v5034 = vpop.f32.mrb[0].mxu0
        %v5035 = vadd.f32 0.0, %v5034
        %v5036 = vpop.f32.mrb[0].mxu0
        %5037 = vmatprep.mubr.f32.mxu0 0.0
        %5038 = vmatmul.mubr.f32.gmra.mrb[0].mxu0 %v4211
        %v5039 = vpop.f32.mrb[0].mxu0
        %v5040 = vadd.f32 0.0, %v5039
        %v5041 = vpop.f32.mrb[0].mxu0
        %5042 = vmatprep.mubr.f32.mxu0 0.0
        %5043 = vmatmul.mubr.f32.gmra.mrb[0].mxu0 %v4864
        %v5044 = vpop.f32.mrb[0].mxu0
        %v5045 = vadd.f32 0.0, %v5044
        %v5046 = vpop.f32.mrb[0].mxu0
        %5047 = vmatprep.mubr.f32.mxu0 0.0
        %5048 = vmatmul.mubr.f32.gmra.mrb[0].mxu0 %v4866
        %v5049 = vpop.f32.mrb[0].mxu0
        %v5050 = vadd.f32 0.0, %v5049
        %v5051 = vpop.f32.mrb[0].mxu0
        %5052 = vdwg.mxu0
        %v5053 = vadd.f32 %v4834, %v4935
        %v5054 = vadd.f32 %v4835, %v4940
        %v5055 = vadd.f32 %v4836, %v4945
        %v5056 = vadd.f32 %v4837, %v4950
        %v5057 = vadd.f32 %v4838, %v4955
        %v5058 = vadd.f32 %v4839, %v4960
        %v5059 = vadd.f32 %v4840, %v4965
        %v5060 = vadd.f32 %v4841, %v4970
        %v5061 = vadd.f32 %v4842, %v4975
        %v5062 = vadd.f32 %v4843, %v4980
        %v5063 = vadd.f32 %v4844, %v4985
        %v5064 = vadd.f32 %v4845, %v4990
        %v5065 = vadd.f32 %v4846, %v4995
        %v5066 = vadd.f32 %v4847, %v5000
        %v5067 = vadd.f32 %v4848, %v5005
        %v5068 = vadd.f32 %v4849, %v5010
        %v5069 = vadd.f32 %v4850, %v5015
        %v5070 = vadd.f32 %v4851, %v5020
        %v5071 = vadd.f32 %v4852, %v5025
        %v5072 = vadd.f32 %v4853, %v5030
        %v5073 = vadd.f32 %v4854, %v5035
        %v5074 = vadd.f32 %v4855, %v5040
        %v5075 = vadd.f32 %v4856, %v5045
        %v5076 = vadd.f32 %v4857, %v5050
        %5077 = vst [vmem:[%s217] sm:$0xff] %v5053
        %5078 = vst [vmem:[%s217 + $0x8] sm:$0xff] %v5054
        %5079 = vst [vmem:[%s217 + $0x10] sm:$0xff] %v5055
        %5080 = vst [vmem:[%s217 + $0x18] sm:$0xff] %v5056
        %5081 = vst [vmem:[%s217 + $0x20] sm:$0xff] %v5057
        %5082 = vst [vmem:[%s217 + $0x28] sm:$0xff] %v5058
        %5083 = vst [vmem:[%s217 + $0x30] sm:$0xff] %v5059
        %5084 = vst [vmem:[%s217 + $0x38] sm:$0xff] %v5060
        %5085 = vst [vmem:[%s217 + $0x40] sm:$0xff] %v5061
        %5086 = vst [vmem:[%s217 + $0x48] sm:$0xff] %v5062
        %5087 = vst [vmem:[%s217 + $0x50] sm:$0xff] %v5063
        %5088 = vst [vmem:[%s217 + $0x58] sm:$0xff] %v5064
        %5089 = vst [vmem:[%s217 + $0x60] sm:$0xff] %v5065
        %5090 = vst [vmem:[%s217 + $0x68] sm:$0xff] %v5066
        %5091 = vst [vmem:[%s217 + $0x70] sm:$0xff] %v5067
        %5092 = vst [vmem:[%s217 + $0x78] sm:$0xff] %v5068
        %5093 = vst [vmem:[%s217 + $0x80] sm:$0xff] %v5069
        %5094 = vst [vmem:[%s217 + $0x88] sm:$0xff] %v5070
        %5095 = vst [vmem:[%s217 + $0x90] sm:$0xff] %v5071
        %5096 = vst [vmem:[%s217 + $0x98] sm:$0xff] %v5072
        %5097 = vst [vmem:[%s217 + $0xa0] sm:$0xff] %v5073
        %5098 = vst [vmem:[%s217 + $0xa8] sm:$0xff] %v5074
        %5099 = vst [vmem:[%s217 + $0xb0] sm:$0xff] %v5075
        %5100 = vst [vmem:[%s217 + $0xb8] sm:$0xff] %v5076
        %s5101 = sand.u32 %s137, 1
        %s5102 = scalar_lea.sflag [#allocation3], %s5101
        %s5103 = sand.u32 %s137, 1
        %s5104 = smul.addr %s5103, 192
        %s5105 = scalar_lea.vmem [#allocation2], %s5104
        // Predicated region
        $region41: #{tpu_custom_call.1} parent=39 // pred_check
          %p5106 = pneg %p147
        $region42: #{tpu_custom_call.1} parent=39 // pred_check_branch
          %5108 = sbr.rel (%p5106) target = $region44
        $region43: #{tpu_custom_call.1} parent=39 // pred_region
          %s5110 = ssub.s32 3072, 3072
          %5111 = vsyncadd %s5102, %s5110
          %s5112 = smul.addr %s19, 24
          %s5113 = smul.addr %s5112, 128
          %s5114 = scalar_lea.hbm %s5, %s5113
          %s5115 = sshll.u32 %s5105, 4
          %s5116 = int_to_ptr.vmem [resolvable:$true] %s5115
          %5121 = dma.vmem_to_hbm [thread:$0]  %s5116, 3072, %s5114, %s5102, 128, 128, 8
        $region44: #{tpu_custom_call.1} parent=39 // pred_fallthru
          _
      $region40: #{tpu_custom_call.1} parent=5 // pred_fallthru
        _
      %p5122 = scmp.le.s32.totalorder 2, %s14
      // Predicated region
      $region45: #{tpu_custom_call.1} parent=5 // pred_check
        %p5123 = pneg %p5122
      $region46: #{tpu_custom_call.1} parent=5 // pred_check_branch
        %5125 = sbr.rel (%p5123) target = $region48
      $region47: #{tpu_custom_call.1} parent=5 // pred_region
        %s5126 = ssub.s32 %s14, 2
        // Predicated region
        $region49: #{tpu_custom_call.1} parent=47 // pred_check
          %p5127 = pneg %p153
        $region50: #{tpu_custom_call.1} parent=47 // pred_check_branch
          %5129 = sbr.rel (%p5127) target = $region52
        $region51: #{tpu_custom_call.1} parent=47 // pred_region
          %s5130 = sand.u32 %s138, 1
          %s5131 = scalar_lea.sflag [#allocation3], %s5130
          %s5132 = sand.u32 %s138, 1
          %s5133 = smul.addr %s5132, 192
          %s5134 = scalar_lea.vmem [#allocation2], %s5133
          %5135 = dma.done %s5131, 3072
        $region52: #{tpu_custom_call.1} parent=47 // pred_fallthru
          _
      $region48: #{tpu_custom_call.1} parent=5 // pred_fallthru
        _
    $region6: #{tpu_custom_call.1} parent=1 // loop_footer
      %s18 = sadd.s32 1, %s14
    $region7: #{tpu_custom_call.1} parent=1 // loop_footer_branch
      %13 = sbr.rel target = $region3
    $region8: #{tpu_custom_call.1} parent=1 // loop_exit
      _
    %5136 = vsyncpa [#allocation3], 1
    %s5137 = scalar_lea.sflag [#allocation3], 1
    %5138 = vsyncpa %s5137, 1

</llo_original>
